<compile_context>
chip_gen: v6e
topology: v6e:2x2x1
jax: 0.10.0
libtpu: 0.0.40
codegen_flags: <defaults>
</compile_context>

<pallas_src>
import numpy as np
import jax
import jax.numpy as jnp
from jax import lax
from jax.experimental import pallas as pl
from jax.experimental.pallas import tpu as pltpu

# ---------------- configuration (small shapes) ----------------
B = 2            # batch
NC = 4           # coils (module doc says 15; coil count is never asserted)
H = 32           # image height
W = 32           # image width == mask_width
WZ = 40          # zero_fill_width
ACCEL = 4
NUM_CENTRAL = 6
PATCH = 32       # extract_central_patch size
ALPHA = 0.1
NCW = NC * W     # 128  -- lane-packed coil*width axis
NLP = 16         # acquired ky lines padded 15 -> 16


# ---------------- SamplingFunction setup (host-side constants) ----------------
def compute_sampling_positions(width, accel=ACCEL, ncl=NUM_CENTRAL):
    center = width // 2
    half = ncl // 2
    central = np.arange(center - half, center + half + ncl % 2)
    all_lines = np.arange(width)
    accel_lines = all_lines[::accel]
    accel_lines = accel_lines[~np.isin(accel_lines, central)]
    return np.sort(np.concatenate([central, accel_lines]))


MASK_KY = compute_sampling_positions(W)
ZF_KY = compute_sampling_positions(WZ)
NL = len(ZF_KY)                      # number of acquired ky lines (15)
OFF = (WZ - PATCH) // 2              # central-patch column offset

FIXED_MASK = np.zeros((H, W), dtype=np.float32)
FIXED_MASK[:, MASK_KY] = 1.0


# ---------------- shifted (ortho) DFT matrices ----------------
def shifted_dft(n, inverse=False):
    """Matrix A s.t. A @ x == fftshift(fft(ifftshift(x), norm='ortho'))."""
    eye = np.eye(n, dtype=np.complex64)
    x = np.fft.ifftshift(eye, axes=0)
    f = (np.fft.ifft(x, axis=0, norm='ortho') if inverse
         else np.fft.fft(x, axis=0, norm='ortho'))
    return np.fft.fftshift(f, axes=0).astype(np.complex64)


_A_W_T = shifted_dft(W).T                   # forward DFT, applied on columns
_B_W_T = shifted_dft(W, inverse=True).T     # inverse DFT, columns
_B_H = shifted_dft(H, inverse=True)         # inverse DFT, rows
_B_WZ_T = shifted_dft(WZ, inverse=True).T   # inverse DFT, zero-fill width

# Collapsed operators (valid because the 1-D line mask is constant along H and
# the shifted ortho FFT pair satisfies B_H @ A_H == I):
_MASK_W = np.zeros(W, np.float32)
_MASK_W[MASK_KY] = 1.0
_G = (_A_W_T @ np.diag(_MASK_W).astype(np.complex64) @ _B_W_T).astype(np.complex64)
_P = _B_WZ_T[ZF_KY, OFF:OFF + PATCH].astype(np.complex64)       # (NL, PATCH)


def _block_diag(m, reps):
    r, c = m.shape
    out = np.zeros((reps * r, reps * c), m.dtype)
    for i in range(reps):
        out[i * r:(i + 1) * r, i * c:(i + 1) * c] = m
    return out


def _build_constants():
    """4 bf16 operator matrices (ALPHA folded into P and G)."""
    p_pad = np.zeros((NLP, W), np.complex64)
    p_pad[:NL] = ALPHA * _P
    pb = _block_diag(p_pad, NC)                                 # (NC*NLP, NCW)
    gb = _block_diag((ALPHA * _G).astype(np.complex64), NC)     # (NCW, NCW)
    pcat = np.concatenate([pb.real, pb.imag], axis=1)           # (64, 256)
    gcat = np.concatenate([gb.real, gb.imag], axis=1)           # (128, 256)
    bhcat = np.concatenate([_B_H.real, _B_H.imag], axis=0)      # (64, 32)
    sumb = np.tile(np.eye(W, dtype=np.float32), (NC, NC))       # (128, 128)
    cast = lambda a: jnp.asarray(a, dtype=jnp.bfloat16)
    return cast(pcat), cast(bhcat), cast(gcat), cast(sumb)


# ---------------- fused forward (single pallas_call) ----------------
def build_unrolled_forward(conv_w, conv_b):
    """Returns jitted forward(zerofill, undersampled_ksp, cs_maps) -> [B,1,H,W]."""
    pcat, bhcat, gcat, sumb = _build_constants()
    # TODO(synk): model1/model2/model3 are unspecified constructor args of the
    # PyTorch module; deterministic 3x3 convs (2 real channels <-> complex)
    # stand in, with weights/biases baked in at build time.
    w_list = np.asarray(conv_w, np.float32).tolist()   # [m][co][ci][dy][dx]
    b_list = np.asarray(conv_b, np.float32).tolist()   # [m][co]

    def kernel(zf_ref, ksp_ref, cs_ref, pcat_ref, bhcat_ref, gcat_ref,
               sumb_ref, out_ref):
        f32 = jnp.float32
        bf16 = jnp.bfloat16

        def mdot(a, b):
            # MXU matmul: bf16 operands, f32 accumulate.
            return jnp.dot(a.astype(bf16), b, preferred_element_type=f32)

        # ---- W_e = sum_c conj(Cs_c) * (B_H @ (ksp_c @ alpha*P)) ----
        # ksp lane-packed (H, NC*NLP); Pblock block-diag; [Re|Im] concat so each
        # complex product is 2 matmuls with N = 256.
        tr_cat = mdot(ksp_ref[0], pcat_ref[...])          # (H, 2*NCW)
        ti_cat = mdot(ksp_ref[1], pcat_ref[...])
        t_r = tr_cat[:, :NCW] - ti_cat[:, NCW:]
        t_i = tr_cat[:, NCW:] + ti_cat[:, :NCW]

        bh = bhcat_ref[...]                               # [BH_r ; BH_i]  (2H, H)
        yr_cat = mdot(bh, t_r)                            # (2H, NCW)
        yi_cat = mdot(bh, t_i)
        y_r = yr_cat[:H] - yi_cat[H:]
        y_i = yi_cat[:H] + yr_cat[H:]

        cs_r = cs_ref[0]                                  # (H, NCW) f32
        cs_i = cs_ref[1]
        v_r = y_r * cs_r + y_i * cs_i                     # conj(Cs) * Y
        v_i = y_i * cs_r - y_r * cs_i
        we_r = mdot(v_r, sumb_ref[...])                   # coil-sum, broadcast
        we_i = mdot(v_i, sumb_ref[...])                   # back to every block

        # ---- stand-in regularizer: 3x3 conv via pltpu.roll + VPU FMAs ----
        def conv3x3(widx, xin_r, xin_i):
            row = lax.broadcasted_iota(jnp.int32, (H, NCW), 0)
            col = lax.broadcasted_iota(jnp.int32, (H, NCW), 1) % W
            row_first, row_last = row == 0, row == H - 1
            col_first, col_last = col == 0, col == W - 1

            def sh_rows(x, sy):          # value at [y+sy, :], zero padded
                if sy == 0:
                    return x
                r = pltpu.roll(x, (-sy) % H, axis=0)
                return jnp.where(row_last if sy > 0 else row_first, 0.0, r)

            def sh_cols(x, sx):          # value at [:, w+sx], zero padded per block
                if sx == 0:
                    return x
                r = pltpu.roll(x, (-sx) % NCW, axis=1)
                return jnp.where(col_last if sx > 0 else col_first, 0.0, r)

            acc_r = jnp.full((H, NCW), b_list[widx][0], f32)
            acc_i = jnp.full((H, NCW), b_list[widx][1], f32)
            for ci, xin in enumerate((xin_r, xin_i)):
                for dy in range(3):
                    xrow = sh_rows(xin, dy - 1)
                    for dx in range(3):
                        xs = sh_cols(xrow, dx - 1)
                        acc_r = acc_r + w_list[widx][0][ci][dy][dx] * xs
                        acc_i = acc_i + w_list[widx][1][ci][dy][dx] * xs
            return acc_r, acc_i

        # ---- 3 unrolled data-consistency + regularizer iterations ----
        ck_r = zf_ref[0]                                  # coil-broadcast (H, NCW)
        ck_i = zf_ref[1]
        for m in range(3):
            csr = cs_ref[0]      # re-read per iteration: cheap VMEM loads keep
            csi = cs_ref[1]      # live vreg ranges short
            x_r = ck_r * csr - ck_i * csi                 # C_k * Cs
            x_i = ck_r * csi + ck_i * csr
            zr_cat = mdot(x_r, gcat_ref[...])             # (H, 2*NCW)
            zi_cat = mdot(x_i, gcat_ref[...])
            z_r = zr_cat[:, :NCW] - zi_cat[:, NCW:]
            z_i = zr_cat[:, NCW:] + zi_cat[:, :NCW]
            u_r = z_r * csr + z_i * csi                   # conj(Cs) * Z
            u_i = z_i * csr - z_r * csi
            e_r = mdot(u_r, sumb_ref[...])                # alpha already in G
            e_i = mdot(u_i, sumb_ref[...])
            in_r = ck_r + we_r - e_r                      # C_k + W_e - a*E^H E
            in_i = ck_i + we_i - e_i
            ck_r, ck_i = conv3x3(m, in_r, in_i)

        out_ref[0] = ck_r                                 # lane-dense 128-wide stores
        out_ref[1] = ck_i

    # advisory cost hint for the XLA scheduler
    flops_b = (2 * 2 * H * (NC * NLP) * (2 * NCW)
               + 2 * 2 * (2 * H) * H * NCW
               + 2 * 2 * H * NCW * NCW
               + 3 * (2 * 2 * H * NCW * (2 * NCW) + 2 * 2 * H * NCW * NCW))
    bytes_b = (2 * H * NCW * 4 + 2 * H * NC * NLP * 2
               + 2 * H * NCW * 4 + 2 * H * NCW * 4)
    const_bytes = 2 * (64 * 256 + 64 * 32 + 128 * 256 + 128 * 128)
    cost = pl.CostEstimate(flops=B * flops_b, transcendentals=0,
                           bytes_accessed=B * bytes_b + const_bytes)

    @jax.jit
    def forward(zerofill, undersampled_ksp, cs_maps):
        # TODO(synk): at production sizes pass pre-split real/imag planes to
        # avoid these wrapper-side materializations (v5e HBM bandwidth).
        # zerofill [B,1,H,W] -> coil-broadcast (B,2,H,NC*W) f32
        zf_ri = jnp.concatenate([zerofill.real, zerofill.imag], axis=1)
        zf_b = jnp.tile(zf_ri, (1, 1, 1, NC)).astype(jnp.float32)
        # k-space [B,NC,H,NL] -> pad NL->16, coil-outer lane packing, bf16
        ksp_p = jnp.pad(undersampled_ksp, ((0, 0), (0, 0), (0, 0), (0, NLP - NL)))
        k_ri = jnp.stack([ksp_p.real, ksp_p.imag], axis=1)        # (B,2,NC,H,NLP)
        k_ri = (jnp.transpose(k_ri, (0, 1, 3, 2, 4))
                .reshape(B, 2, H, NC * NLP).astype(jnp.bfloat16))
        # coil maps [B,NC,H,W] -> coil-outer lane packing, f32 (VPU operand)
        cs_ri = jnp.stack([cs_maps.real, cs_maps.imag], axis=1)   # (B,2,NC,H,W)
        cs_ri = (jnp.transpose(cs_ri, (0, 1, 3, 2, 4))
                 .reshape(B, 2, H, NCW).astype(jnp.float32))

        out = pl.pallas_call(
            kernel,
            out_shape=jax.ShapeDtypeStruct((B, 2, H, NCW), jnp.float32),
            grid=(B,),
            in_specs=[
                pl.BlockSpec((None, 2, H, NCW), lambda b: (b, 0, 0, 0)),
                pl.BlockSpec((None, 2, H, NC * NLP), lambda b: (b, 0, 0, 0)),
                pl.BlockSpec((None, 2, H, NCW), lambda b: (b, 0, 0, 0)),
                pl.BlockSpec((NC * NLP, 2 * NCW), lambda b: (0, 0)),
                pl.BlockSpec((2 * H, H), lambda b: (0, 0)),
                pl.BlockSpec((NCW, 2 * NCW), lambda b: (0, 0)),
                pl.BlockSpec((NCW, NCW), lambda b: (0, 0)),
            ],
            out_specs=pl.BlockSpec((None, 2, H, NCW), lambda b: (b, 0, 0, 0)),
            compiler_params=pltpu.CompilerParams(
                dimension_semantics=("parallel",)),
            cost_estimate=cost,
        )(zf_b, k_ri, cs_ri, pcat, bhcat, gcat, sumb)
        # every 32-lane coil block carries the same image; take block 0
        img = out[:, 0, :, :W] + 1j * out[:, 1, :, :W]
        return img[:, None, :, :].astype(jnp.complex64)

    return forward


# ---------------- pure-jnp (FFT-based) reference of the torch forward ----------------
def reference_forward(zerofill, ksp, cs, conv_w, conv_b):
    def ft2(x):
        x = jnp.fft.ifftshift(x, axes=(-2, -1))
        x = jnp.fft.fftn(x, axes=(-2, -1), norm='ortho')
        return jnp.fft.fftshift(x, axes=(-2, -1))

    def ift2(x):
        x = jnp.fft.ifftshift(x, axes=(-2, -1))
        x = jnp.fft.ifftn(x, axes=(-2, -1), norm='ortho')
        return jnp.fft.fftshift(x, axes=(-2, -1))

    def conv3x3(m, x):                       # same stand-in regularizer
        x2 = jnp.concatenate([x.real, x.imag], axis=1).astype(jnp.float32)
        xp = jnp.pad(x2, ((0, 0), (0, 0), (1, 1), (1, 1)))
        outs = []
        for co in range(2):
            acc = jnp.full((B, H, W), float(conv_b[m, co]), jnp.float32)
            for ci in range(2):
                for dy in range(3):
                    for dx in range(3):
                        acc = acc + float(conv_w[m, co, ci, dy, dx]) * \
                            xp[:, ci, dy:dy + H, dx:dx + W]
            outs.append(acc)
        return (outs[0] + 1j * outs[1])[:, None, :, :].astype(jnp.complex64)

    mask = jnp.asarray(FIXED_MASK)
    zfill = jnp.zeros((B, NC, H, WZ), jnp.complex64)
    zfill = zfill.at[..., jnp.asarray(ZF_KY)].set(ksp)
    patch = ift2(zfill)[..., :, OFF:OFF + PATCH]
    We = ALPHA * jnp.sum(patch * jnp.conj(cs), axis=1, keepdims=True)

    ck = zerofill
    for m in range(3):
        EhE = jnp.sum(jnp.conj(cs) * ift2(mask * ft2(ck * cs)),
                      axis=1, keepdims=True)
        ck = conv3x3(m, ck + We - ALPHA * EhE)
    return ck


# ---------------- main ----------------
if __name__ == "__main__":
    key = jax.random.PRNGKey(0)
    ks = jax.random.split(key, 5)

    def crandn(k, shape, scale=1.0):
        kr, ki = jax.random.split(k)
        return (scale * (jax.random.normal(kr, shape)
                         + 1j * jax.random.normal(ki, shape))).astype(jnp.complex64)

    zerofill = crandn(ks[0], (B, 1, H, W))              # [B,1,H,W] complex64
    undersampled_ksp = crandn(ks[1], (B, NC, H, NL))    # [B,NC,H,#ky-lines]
    cs_maps = crandn(ks[2], (B, NC, H, W), 0.3)         # [B,NC,H,W]

    conv_w = np.asarray(jax.random.normal(ks[3], (3, 2, 2, 3, 3))) * 0.1
    conv_b = np.asarray(jax.random.normal(ks[4], (3, 2))) * 0.01

    forward = build_unrolled_forward(conv_w, conv_b)
    out = jax.block_until_ready(forward(zerofill, undersampled_ksp, cs_maps))
    assert out.shape == (B, 1, H, W) and out.dtype == jnp.complex64

    ref = jax.block_until_ready(
        reference_forward(zerofill, undersampled_ksp, cs_maps, conv_w, conv_b))
    err = float(jnp.max(jnp.abs(out - ref)))
    scale = float(jnp.max(jnp.abs(ref)))
    # bf16 MXU operands (f32 accumulate): observed error stays ~1e-3 absolute,
    # well inside this tolerance.
    assert np.isfinite(err) and err <= 2e-2 * scale + 1e-3, \
        f"mismatch vs FFT reference: abs err {err:.3e}, ref scale {scale:.3e}"
    print("KERNEL_OK")
</pallas_src>

<mosaic_0001>
module attributes {stable_mosaic.version = 11 : i64} {
  func.func @kernel(%arg0: i32, %arg1: memref<1x2x32x128xf32, #tpu.memory_space<vmem>>, %arg2: memref<1x2x32x64xbf16, #tpu.memory_space<vmem>>, %arg3: memref<1x2x32x128xf32, #tpu.memory_space<vmem>>, %arg4: memref<64x256xbf16, #tpu.memory_space<vmem>>, %arg5: memref<64x32xbf16, #tpu.memory_space<vmem>>, %arg6: memref<128x256xbf16, #tpu.memory_space<vmem>>, %arg7: memref<128x128xbf16, #tpu.memory_space<vmem>>, %arg8: memref<1x2x32x128xf32, #tpu.memory_space<vmem>>) attributes {dimension_semantics = [#tpu.dimension_semantics<parallel>], iteration_bounds = array<i64: 2>, scalar_prefetch = 0 : i64, scratch_operands = 0 : i64, tpu.core_type = #tpu.core_type<tc>, window_params = [{transform_indices = @transform_0, window_bounds = array<i64: 1, 2, 32, 128>}, {transform_indices = @transform_1, window_bounds = array<i64: 1, 2, 32, 64>}, {transform_indices = @transform_2, window_bounds = array<i64: 1, 2, 32, 128>}, {pipeline_mode = #tpu.pipeline_mode<synchronous>, transform_indices = @transform_3, window_bounds = array<i64: 64, 256>}, {pipeline_mode = #tpu.pipeline_mode<synchronous>, transform_indices = @transform_4, window_bounds = array<i64: 64, 32>}, {pipeline_mode = #tpu.pipeline_mode<synchronous>, transform_indices = @transform_5, window_bounds = array<i64: 128, 256>}, {pipeline_mode = #tpu.pipeline_mode<synchronous>, transform_indices = @transform_6, window_bounds = array<i64: 128, 128>}, {transform_indices = @transform_7, window_bounds = array<i64: 1, 2, 32, 128>}]} {
    %c0 = arith.constant 0 : index
    %c0_0 = arith.constant 0 : index
    %c0_1 = arith.constant 0 : index
    %c0_2 = arith.constant 0 : index
    %0 = vector.load %arg2[%c0, %c0_0, %c0_1, %c0_2] : memref<1x2x32x64xbf16, #tpu.memory_space<vmem>>, vector<1x1x32x64xbf16>
    %1 = vector.shape_cast %0 : vector<1x1x32x64xbf16> to vector<32x64xbf16>
    %c0_3 = arith.constant 0 : index
    %c0_4 = arith.constant 0 : index
    %2 = vector.load %arg4[%c0_3, %c0_4] : memref<64x256xbf16, #tpu.memory_space<vmem>>, vector<64x256xbf16>
    %cst = arith.constant dense<0.000000e+00> : vector<32x256xf32>
    %3 = tpu.matmul %1, %2, %cst {dimension_numbers = #tpu.dot_dimension_numbers<[1], [0], [0], [1], [0, 0, 1, 1], [], []>} : vector<32x64xbf16>, vector<64x256xbf16>, vector<32x256xf32> -> vector<32x256xf32>
    %c0_5 = arith.constant 0 : index
    %c1 = arith.constant 1 : index
    %c0_6 = arith.constant 0 : index
    %c0_7 = arith.constant 0 : index
    %4 = vector.load %arg2[%c0_5, %c1, %c0_6, %c0_7] : memref<1x2x32x64xbf16, #tpu.memory_space<vmem>>, vector<1x1x32x64xbf16>
    %5 = vector.shape_cast %4 : vector<1x1x32x64xbf16> to vector<32x64xbf16>
    %c0_8 = arith.constant 0 : index
    %c0_9 = arith.constant 0 : index
    %6 = vector.load %arg4[%c0_8, %c0_9] : memref<64x256xbf16, #tpu.memory_space<vmem>>, vector<64x256xbf16>
    %cst_10 = arith.constant dense<0.000000e+00> : vector<32x256xf32>
    %7 = tpu.matmul %5, %6, %cst_10 {dimension_numbers = #tpu.dot_dimension_numbers<[1], [0], [0], [1], [0, 0, 1, 1], [], []>} : vector<32x64xbf16>, vector<64x256xbf16>, vector<32x256xf32> -> vector<32x256xf32>
    %8 = vector.extract_strided_slice %3 {offsets = [0, 0], sizes = [32, 128], strides = [1, 1]} : vector<32x256xf32> to vector<32x128xf32>
    %9 = vector.extract_strided_slice %7 {offsets = [0, 128], sizes = [32, 128], strides = [1, 1]} : vector<32x256xf32> to vector<32x128xf32>
    %10 = arith.subf %8, %9 : vector<32x128xf32>
    %11 = vector.extract_strided_slice %3 {offsets = [0, 128], sizes = [32, 128], strides = [1, 1]} : vector<32x256xf32> to vector<32x128xf32>
    %12 = vector.extract_strided_slice %7 {offsets = [0, 0], sizes = [32, 128], strides = [1, 1]} : vector<32x256xf32> to vector<32x128xf32>
    %13 = arith.addf %11, %12 : vector<32x128xf32>
    %c0_11 = arith.constant 0 : index
    %c0_12 = arith.constant 0 : index
    %14 = vector.load %arg5[%c0_11, %c0_12] : memref<64x32xbf16, #tpu.memory_space<vmem>>, vector<64x32xbf16>
    %cst_13 = arith.constant dense<0.000000e+00> : vector<64x128xf32>
    %15 = tpu.matmul %14, %10, %cst_13 {dimension_numbers = #tpu.dot_dimension_numbers<[1], [0], [0], [1], [0, 0, 1, 1], [], []>} : vector<64x32xbf16>, vector<32x128xf32>, vector<64x128xf32> -> vector<64x128xf32>
    %cst_14 = arith.constant dense<0.000000e+00> : vector<64x128xf32>
    %16 = tpu.matmul %14, %13, %cst_14 {dimension_numbers = #tpu.dot_dimension_numbers<[1], [0], [0], [1], [0, 0, 1, 1], [], []>} : vector<64x32xbf16>, vector<32x128xf32>, vector<64x128xf32> -> vector<64x128xf32>
    %17 = vector.extract_strided_slice %15 {offsets = [0, 0], sizes = [32, 128], strides = [1, 1]} : vector<64x128xf32> to vector<32x128xf32>
    %18 = vector.extract_strided_slice %16 {offsets = [32, 0], sizes = [32, 128], strides = [1, 1]} : vector<64x128xf32> to vector<32x128xf32>
    %19 = arith.subf %17, %18 : vector<32x128xf32>
    %20 = vector.extract_strided_slice %16 {offsets = [0, 0], sizes = [32, 128], strides = [1, 1]} : vector<64x128xf32> to vector<32x128xf32>
    %21 = vector.extract_strided_slice %15 {offsets = [32, 0], sizes = [32, 128], strides = [1, 1]} : vector<64x128xf32> to vector<32x128xf32>
    %22 = arith.addf %20, %21 : vector<32x128xf32>
    %c0_15 = arith.constant 0 : index
    %c0_16 = arith.constant 0 : index
    %c0_17 = arith.constant 0 : index
    %c0_18 = arith.constant 0 : index
    %23 = vector.load %arg3[%c0_15, %c0_16, %c0_17, %c0_18] : memref<1x2x32x128xf32, #tpu.memory_space<vmem>>, vector<1x1x32x128xf32>
    %24 = vector.shape_cast %23 : vector<1x1x32x128xf32> to vector<32x128xf32>
    %c0_19 = arith.constant 0 : index
    %c1_20 = arith.constant 1 : index
    %c0_21 = arith.constant 0 : index
    %c0_22 = arith.constant 0 : index
    %25 = vector.load %arg3[%c0_19, %c1_20, %c0_21, %c0_22] : memref<1x2x32x128xf32, #tpu.memory_space<vmem>>, vector<1x1x32x128xf32>
    %26 = vector.shape_cast %25 : vector<1x1x32x128xf32> to vector<32x128xf32>
    %27 = arith.mulf %19, %24 : vector<32x128xf32>
    %28 = arith.mulf %22, %26 : vector<32x128xf32>
    %29 = arith.addf %27, %28 : vector<32x128xf32>
    %30 = arith.mulf %22, %24 : vector<32x128xf32>
    %31 = arith.mulf %19, %26 : vector<32x128xf32>
    %32 = arith.subf %30, %31 : vector<32x128xf32>
    %c0_23 = arith.constant 0 : index
    %c0_24 = arith.constant 0 : index
    %33 = vector.load %arg7[%c0_23, %c0_24] : memref<128x128xbf16, #tpu.memory_space<vmem>>, vector<128x128xbf16>
    %34 = arith.truncf %29 : vector<32x128xf32> to vector<32x128xbf16>
    %cst_25 = arith.constant dense<0.000000e+00> : vector<32x128xf32>
    %35 = tpu.matmul %34, %33, %cst_25 {dimension_numbers = #tpu.dot_dimension_numbers<[1], [0], [0], [1], [0, 0, 1, 1], [], []>} : vector<32x128xbf16>, vector<128x128xbf16>, vector<32x128xf32> -> vector<32x128xf32>
    %c0_26 = arith.constant 0 : index
    %c0_27 = arith.constant 0 : index
    %36 = vector.load %arg7[%c0_26, %c0_27] : memref<128x128xbf16, #tpu.memory_space<vmem>>, vector<128x128xbf16>
    %37 = arith.truncf %32 : vector<32x128xf32> to vector<32x128xbf16>
    %cst_28 = arith.constant dense<0.000000e+00> : vector<32x128xf32>
    %38 = tpu.matmul %37, %36, %cst_28 {dimension_numbers = #tpu.dot_dimension_numbers<[1], [0], [0], [1], [0, 0, 1, 1], [], []>} : vector<32x128xbf16>, vector<128x128xbf16>, vector<32x128xf32> -> vector<32x128xf32>
    %c0_29 = arith.constant 0 : index
    %c0_30 = arith.constant 0 : index
    %c0_31 = arith.constant 0 : index
    %c0_32 = arith.constant 0 : index
    %39 = vector.load %arg1[%c0_29, %c0_30, %c0_31, %c0_32] : memref<1x2x32x128xf32, #tpu.memory_space<vmem>>, vector<1x1x32x128xf32>
    %40 = vector.shape_cast %39 : vector<1x1x32x128xf32> to vector<32x128xf32>
    %c0_33 = arith.constant 0 : index
    %c1_34 = arith.constant 1 : index
    %c0_35 = arith.constant 0 : index
    %c0_36 = arith.constant 0 : index
    %41 = vector.load %arg1[%c0_33, %c1_34, %c0_35, %c0_36] : memref<1x2x32x128xf32, #tpu.memory_space<vmem>>, vector<1x1x32x128xf32>
    %42 = vector.shape_cast %41 : vector<1x1x32x128xf32> to vector<32x128xf32>
    %c0_37 = arith.constant 0 : index
    %c0_38 = arith.constant 0 : index
    %c0_39 = arith.constant 0 : index
    %c0_40 = arith.constant 0 : index
    %43 = vector.load %arg3[%c0_37, %c0_38, %c0_39, %c0_40] : memref<1x2x32x128xf32, #tpu.memory_space<vmem>>, vector<1x1x32x128xf32>
    %44 = vector.shape_cast %43 : vector<1x1x32x128xf32> to vector<32x128xf32>
    %c0_41 = arith.constant 0 : index
    %c1_42 = arith.constant 1 : index
    %c0_43 = arith.constant 0 : index
    %c0_44 = arith.constant 0 : index
    %45 = vector.load %arg3[%c0_41, %c1_42, %c0_43, %c0_44] : memref<1x2x32x128xf32, #tpu.memory_space<vmem>>, vector<1x1x32x128xf32>
    %46 = vector.shape_cast %45 : vector<1x1x32x128xf32> to vector<32x128xf32>
    %47 = arith.mulf %40, %44 : vector<32x128xf32>
    %48 = arith.mulf %42, %46 : vector<32x128xf32>
    %49 = arith.subf %47, %48 : vector<32x128xf32>
    %50 = arith.mulf %40, %46 : vector<32x128xf32>
    %51 = arith.mulf %42, %44 : vector<32x128xf32>
    %52 = arith.addf %50, %51 : vector<32x128xf32>
    %c0_45 = arith.constant 0 : index
    %c0_46 = arith.constant 0 : index
    %53 = vector.load %arg6[%c0_45, %c0_46] : memref<128x256xbf16, #tpu.memory_space<vmem>>, vector<128x256xbf16>
    %54 = arith.truncf %49 : vector<32x128xf32> to vector<32x128xbf16>
    %cst_47 = arith.constant dense<0.000000e+00> : vector<32x256xf32>
    %55 = tpu.matmul %54, %53, %cst_47 {dimension_numbers = #tpu.dot_dimension_numbers<[1], [0], [0], [1], [0, 0, 1, 1], [], []>} : vector<32x128xbf16>, vector<128x256xbf16>, vector<32x256xf32> -> vector<32x256xf32>
    %c0_48 = arith.constant 0 : index
    %c0_49 = arith.constant 0 : index
    %56 = vector.load %arg6[%c0_48, %c0_49] : memref<128x256xbf16, #tpu.memory_space<vmem>>, vector<128x256xbf16>
    %57 = arith.truncf %52 : vector<32x128xf32> to vector<32x128xbf16>
    %cst_50 = arith.constant dense<0.000000e+00> : vector<32x256xf32>
    %58 = tpu.matmul %57, %56, %cst_50 {dimension_numbers = #tpu.dot_dimension_numbers<[1], [0], [0], [1], [0, 0, 1, 1], [], []>} : vector<32x128xbf16>, vector<128x256xbf16>, vector<32x256xf32> -> vector<32x256xf32>
    %59 = vector.extract_strided_slice %55 {offsets = [0, 0], sizes = [32, 128], strides = [1, 1]} : vector<32x256xf32> to vector<32x128xf32>
    %60 = vector.extract_strided_slice %58 {offsets = [0, 128], sizes = [32, 128], strides = [1, 1]} : vector<32x256xf32> to vector<32x128xf32>
    %61 = arith.subf %59, %60 : vector<32x128xf32>
    %62 = vector.extract_strided_slice %55 {offsets = [0, 128], sizes = [32, 128], strides = [1, 1]} : vector<32x256xf32> to vector<32x128xf32>
    %63 = vector.extract_strided_slice %58 {offsets = [0, 0], sizes = [32, 128], strides = [1, 1]} : vector<32x256xf32> to vector<32x128xf32>
    %64 = arith.addf %62, %63 : vector<32x128xf32>
    %65 = arith.mulf %61, %44 : vector<32x128xf32>
    %66 = arith.mulf %64, %46 : vector<32x128xf32>
    %67 = arith.addf %65, %66 : vector<32x128xf32>
    %68 = arith.mulf %64, %44 : vector<32x128xf32>
    %69 = arith.mulf %61, %46 : vector<32x128xf32>
    %70 = arith.subf %68, %69 : vector<32x128xf32>
    %c0_51 = arith.constant 0 : index
    %c0_52 = arith.constant 0 : index
    %71 = vector.load %arg7[%c0_51, %c0_52] : memref<128x128xbf16, #tpu.memory_space<vmem>>, vector<128x128xbf16>
    %72 = arith.truncf %67 : vector<32x128xf32> to vector<32x128xbf16>
    %cst_53 = arith.constant dense<0.000000e+00> : vector<32x128xf32>
    %73 = tpu.matmul %72, %71, %cst_53 {dimension_numbers = #tpu.dot_dimension_numbers<[1], [0], [0], [1], [0, 0, 1, 1], [], []>} : vector<32x128xbf16>, vector<128x128xbf16>, vector<32x128xf32> -> vector<32x128xf32>
    %c0_54 = arith.constant 0 : index
    %c0_55 = arith.constant 0 : index
    %74 = vector.load %arg7[%c0_54, %c0_55] : memref<128x128xbf16, #tpu.memory_space<vmem>>, vector<128x128xbf16>
    %75 = arith.truncf %70 : vector<32x128xf32> to vector<32x128xbf16>
    %cst_56 = arith.constant dense<0.000000e+00> : vector<32x128xf32>
    %76 = tpu.matmul %75, %74, %cst_56 {dimension_numbers = #tpu.dot_dimension_numbers<[1], [0], [0], [1], [0, 0, 1, 1], [], []>} : vector<32x128xbf16>, vector<128x128xbf16>, vector<32x128xf32> -> vector<32x128xf32>
    %77 = arith.addf %40, %35 : vector<32x128xf32>
    %78 = arith.subf %77, %73 : vector<32x128xf32>
    %79 = arith.addf %42, %38 : vector<32x128xf32>
    %80 = arith.subf %79, %76 : vector<32x128xf32>
    %81 = tpu.iota {dimensions = array<i32: 0>} : vector<32x128xi32>
    %82 = tpu.iota {dimensions = array<i32: 1>} : vector<32x128xi32>
    %c32_i32 = arith.constant 32 : i32
    %c0_i32 = arith.constant 0 : i32
    %83 = arith.cmpi eq, %c32_i32, %c0_i32 : i32
    %c1_i32 = arith.constant 1 : i32
    %84 = arith.select %83, %c1_i32, %c32_i32 : i32
    %85 = vector.broadcast %84 : i32 to vector<32x128xi32>
    %86 = arith.remsi %82, %85 : vector<32x128xi32>
    %c0_i32_57 = arith.constant 0 : i32
    %87 = vector.broadcast %c0_i32_57 : i32 to vector<32x128xi32>
    %88 = arith.cmpi ne, %86, %87 : vector<32x128xi32>
    %c0_i32_58 = arith.constant 0 : i32
    %89 = vector.broadcast %c0_i32_58 : i32 to vector<32x128xi32>
    %90 = arith.cmpi slt, %86, %89 : vector<32x128xi32>
    %c0_i32_59 = arith.constant 0 : i32
    %91 = arith.cmpi slt, %84, %c0_i32_59 : i32
    %92 = vector.broadcast %91 : i1 to vector<32x128xi1>
    %93 = vector.broadcast %92 : vector<32x128xi1> to vector<32x128xi1>
    %94 = arith.xori %90, %93 : vector<32x128xi1>
    %95 = arith.andi %94, %88 : vector<32x128xi1>
    %96 = vector.broadcast %84 : i32 to vector<32x128xi32>
    %97 = arith.addi %86, %96 : vector<32x128xi32>
    %98 = arith.select %95, %97, %86 : vector<32x128xi1>, vector<32x128xi32>
    %c0_i32_60 = arith.constant 0 : i32
    %99 = vector.broadcast %c0_i32_60 : i32 to vector<32x128xi32>
    %100 = arith.cmpi eq, %81, %99 : vector<32x128xi32>
    %c31_i32 = arith.constant 31 : i32
    %101 = vector.broadcast %c31_i32 : i32 to vector<32x128xi32>
    %102 = arith.cmpi eq, %81, %101 : vector<32x128xi32>
    %c0_i32_61 = arith.constant 0 : i32
    %103 = vector.broadcast %c0_i32_61 : i32 to vector<32x128xi32>
    %104 = arith.cmpi eq, %98, %103 : vector<32x128xi32>
    %c31_i32_62 = arith.constant 31 : i32
    %105 = vector.broadcast %c31_i32_62 : i32 to vector<32x128xi32>
    %106 = arith.cmpi eq, %98, %105 : vector<32x128xi32>
    %cst_63 = arith.constant -0.0102088535 : f32
    %107 = vector.broadcast %cst_63 : f32 to vector<32x128xf32>
    %cst_64 = arith.constant 0.0060980767 : f32
    %108 = vector.broadcast %cst_64 : f32 to vector<32x128xf32>
    %c1_i32_65 = arith.constant 1 : i32
    %109 = tpu.dynamic_rotate %78 by %c1_i32_65 dim 0 : vector<32x128xf32>, i32 -> vector<32x128xf32>
    %cst_66 = arith.constant 0.000000e+00 : f32
    %110 = vector.broadcast %cst_66 : f32 to vector<32x128xf32>
    %111 = arith.select %100, %110, %109 : vector<32x128xi1>, vector<32x128xf32>
    %c1_i32_67 = arith.constant 1 : i32
    %112 = tpu.dynamic_rotate %111 by %c1_i32_67 dim 1 : vector<32x128xf32>, i32 -> vector<32x128xf32>
    %cst_68 = arith.constant 0.000000e+00 : f32
    %113 = vector.broadcast %cst_68 : f32 to vector<32x128xf32>
    %114 = arith.select %104, %113, %112 : vector<32x128xi1>, vector<32x128xf32>
    %cst_69 = arith.constant -0.0621943585 : f32
    %115 = vector.broadcast %cst_69 : f32 to vector<32x128xf32>
    %116 = arith.mulf %115, %114 : vector<32x128xf32>
    %117 = arith.addf %107, %116 : vector<32x128xf32>
    %cst_70 = arith.constant 0.0804353579 : f32
    %118 = vector.broadcast %cst_70 : f32 to vector<32x128xf32>
    %119 = arith.mulf %118, %114 : vector<32x128xf32>
    %120 = arith.addf %108, %119 : vector<32x128xf32>
    %cst_71 = arith.constant 0.0624804086 : f32
    %121 = vector.broadcast %cst_71 : f32 to vector<32x128xf32>
    %122 = arith.mulf %121, %111 : vector<32x128xf32>
    %123 = arith.addf %117, %122 : vector<32x128xf32>
    %cst_72 = arith.constant 0.0534675606 : f32
    %124 = vector.broadcast %cst_72 : f32 to vector<32x128xf32>
    %125 = arith.mulf %124, %111 : vector<32x128xf32>
    %126 = arith.addf %120, %125 : vector<32x128xf32>
    %c127_i32 = arith.constant 127 : i32
    %127 = tpu.dynamic_rotate %111 by %c127_i32 dim 1 : vector<32x128xf32>, i32 -> vector<32x128xf32>
    %cst_73 = arith.constant 0.000000e+00 : f32
    %128 = vector.broadcast %cst_73 : f32 to vector<32x128xf32>
    %129 = arith.select %106, %128, %127 : vector<32x128xi1>, vector<32x128xf32>
    %cst_74 = arith.constant 0.16820775 : f32
    %130 = vector.broadcast %cst_74 : f32 to vector<32x128xf32>
    %131 = arith.mulf %130, %129 : vector<32x128xf32>
    %132 = arith.addf %123, %131 : vector<32x128xf32>
    %cst_75 = arith.constant 0.155783787 : f32
    %133 = vector.broadcast %cst_75 : f32 to vector<32x128xf32>
    %134 = arith.mulf %133, %129 : vector<32x128xf32>
    %135 = arith.addf %126, %134 : vector<32x128xf32>
    %c1_i32_76 = arith.constant 1 : i32
    %136 = tpu.dynamic_rotate %78 by %c1_i32_76 dim 1 : vector<32x128xf32>, i32 -> vector<32x128xf32>
    %cst_77 = arith.constant 0.000000e+00 : f32
    %137 = vector.broadcast %cst_77 : f32 to vector<32x128xf32>
    %138 = arith.select %104, %137, %136 : vector<32x128xi1>, vector<32x128xf32>
    %cst_78 = arith.constant -0.0808012783 : f32
    %139 = vector.broadcast %cst_78 : f32 to vector<32x128xf32>
    %140 = arith.mulf %139, %138 : vector<32x128xf32>
    %141 = arith.addf %132, %140 : vector<32x128xf32>
    %cst_79 = arith.constant -0.0377203301 : f32
    %142 = vector.broadcast %cst_79 : f32 to vector<32x128xf32>
    %143 = arith.mulf %142, %138 : vector<32x128xf32>
    %144 = arith.addf %135, %143 : vector<32x128xf32>
    %cst_80 = arith.constant -0.236621782 : f32
    %145 = vector.broadcast %cst_80 : f32 to vector<32x128xf32>
    %146 = arith.mulf %145, %78 : vector<32x128xf32>
    %147 = arith.addf %141, %146 : vector<32x128xf32>
    %cst_81 = arith.constant -0.0939235985 : f32
    %148 = vector.broadcast %cst_81 : f32 to vector<32x128xf32>
    %149 = arith.mulf %148, %78 : vector<32x128xf32>
    %150 = arith.addf %144, %149 : vector<32x128xf32>
    %c127_i32_82 = arith.constant 127 : i32
    %151 = tpu.dynamic_rotate %78 by %c127_i32_82 dim 1 : vector<32x128xf32>, i32 -> vector<32x128xf32>
    %cst_83 = arith.constant 0.000000e+00 : f32
    %152 = vector.broadcast %cst_83 : f32 to vector<32x128xf32>
    %153 = arith.select %106, %152, %151 : vector<32x128xi1>, vector<32x128xf32>
    %cst_84 = arith.constant 0.0895946323 : f32
    %154 = vector.broadcast %cst_84 : f32 to vector<32x128xf32>
    %155 = arith.mulf %154, %153 : vector<32x128xf32>
    %156 = arith.addf %147, %155 : vector<32x128xf32>
    %cst_85 = arith.constant -0.0514096618 : f32
    %157 = vector.broadcast %cst_85 : f32 to vector<32x128xf32>
    %158 = arith.mulf %157, %153 : vector<32x128xf32>
    %159 = arith.addf %150, %158 : vector<32x128xf32>
    %c31_i32_86 = arith.constant 31 : i32
    %160 = tpu.dynamic_rotate %78 by %c31_i32_86 dim 0 : vector<32x128xf32>, i32 -> vector<32x128xf32>
    %cst_87 = arith.constant 0.000000e+00 : f32
    %161 = vector.broadcast %cst_87 : f32 to vector<32x128xf32>
    %162 = arith.select %102, %161, %160 : vector<32x128xi1>, vector<32x128xf32>
    %c1_i32_88 = arith.constant 1 : i32
    %163 = tpu.dynamic_rotate %162 by %c1_i32_88 dim 1 : vector<32x128xf32>, i32 -> vector<32x128xf32>
    %cst_89 = arith.constant 0.000000e+00 : f32
    %164 = vector.broadcast %cst_89 : f32 to vector<32x128xf32>
    %165 = arith.select %104, %164, %163 : vector<32x128xi1>, vector<32x128xf32>
    %cst_90 = arith.constant 0.146280751 : f32
    %166 = vector.broadcast %cst_90 : f32 to vector<32x128xf32>
    %167 = arith.mulf %166, %165 : vector<32x128xf32>
    %168 = arith.addf %156, %167 : vector<32x128xf32>
    %cst_91 = arith.constant -0.227865249 : f32
    %169 = vector.broadcast %cst_91 : f32 to vector<32x128xf32>
    %170 = arith.mulf %169, %165 : vector<32x128xf32>
    %171 = arith.addf %159, %170 : vector<32x128xf32>
    %cst_92 = arith.constant -0.0595528744 : f32
    %172 = vector.broadcast %cst_92 : f32 to vector<32x128xf32>
    %173 = arith.mulf %172, %162 : vector<32x128xf32>
    %174 = arith.addf %168, %173 : vector<32x128xf32>
    %cst_93 = arith.constant -0.153957129 : f32
    %175 = vector.broadcast %cst_93 : f32 to vector<32x128xf32>
    %176 = arith.mulf %175, %162 : vector<32x128xf32>
    %177 = arith.addf %171, %176 : vector<32x128xf32>
    %c127_i32_94 = arith.constant 127 : i32
    %178 = tpu.dynamic_rotate %162 by %c127_i32_94 dim 1 : vector<32x128xf32>, i32 -> vector<32x128xf32>
    %cst_95 = arith.constant 0.000000e+00 : f32
    %179 = vector.broadcast %cst_95 : f32 to vector<32x128xf32>
    %180 = arith.select %106, %179, %178 : vector<32x128xi1>, vector<32x128xf32>
    %cst_96 = arith.constant 0.120923474 : f32
    %181 = vector.broadcast %cst_96 : f32 to vector<32x128xf32>
    %182 = arith.mulf %181, %180 : vector<32x128xf32>
    %183 = arith.addf %174, %182 : vector<32x128xf32>
    %cst_97 = arith.constant 0.0759254768 : f32
    %184 = vector.broadcast %cst_97 : f32 to vector<32x128xf32>
    %185 = arith.mulf %184, %180 : vector<32x128xf32>
    %186 = arith.addf %177, %185 : vector<32x128xf32>
    %c1_i32_98 = arith.constant 1 : i32
    %187 = tpu.dynamic_rotate %80 by %c1_i32_98 dim 0 : vector<32x128xf32>, i32 -> vector<32x128xf32>
    %cst_99 = arith.constant 0.000000e+00 : f32
    %188 = vector.broadcast %cst_99 : f32 to vector<32x128xf32>
    %189 = arith.select %100, %188, %187 : vector<32x128xi1>, vector<32x128xf32>
    %c1_i32_100 = arith.constant 1 : i32
    %190 = tpu.dynamic_rotate %189 by %c1_i32_100 dim 1 : vector<32x128xf32>, i32 -> vector<32x128xf32>
    %cst_101 = arith.constant 0.000000e+00 : f32
    %191 = vector.broadcast %cst_101 : f32 to vector<32x128xf32>
    %192 = arith.select %104, %191, %190 : vector<32x128xi1>, vector<32x128xf32>
    %cst_102 = arith.constant 0.147575364 : f32
    %193 = vector.broadcast %cst_102 : f32 to vector<32x128xf32>
    %194 = arith.mulf %193, %192 : vector<32x128xf32>
    %195 = arith.addf %183, %194 : vector<32x128xf32>
    %cst_103 = arith.constant 0.0407675914 : f32
    %196 = vector.broadcast %cst_103 : f32 to vector<32x128xf32>
    %197 = arith.mulf %196, %192 : vector<32x128xf32>
    %198 = arith.addf %186, %197 : vector<32x128xf32>
    %cst_104 = arith.constant -0.174425647 : f32
    %199 = vector.broadcast %cst_104 : f32 to vector<32x128xf32>
    %200 = arith.mulf %199, %189 : vector<32x128xf32>
    %201 = arith.addf %195, %200 : vector<32x128xf32>
    %cst_105 = arith.constant -5.065530e-02 : f32
    %202 = vector.broadcast %cst_105 : f32 to vector<32x128xf32>
    %203 = arith.mulf %202, %189 : vector<32x128xf32>
    %204 = arith.addf %198, %203 : vector<32x128xf32>
    %c127_i32_106 = arith.constant 127 : i32
    %205 = tpu.dynamic_rotate %189 by %c127_i32_106 dim 1 : vector<32x128xf32>, i32 -> vector<32x128xf32>
    %cst_107 = arith.constant 0.000000e+00 : f32
    %206 = vector.broadcast %cst_107 : f32 to vector<32x128xf32>
    %207 = arith.select %106, %206, %205 : vector<32x128xi1>, vector<32x128xf32>
    %cst_108 = arith.constant -0.0470179133 : f32
    %208 = vector.broadcast %cst_108 : f32 to vector<32x128xf32>
    %209 = arith.mulf %208, %207 : vector<32x128xf32>
    %210 = arith.addf %201, %209 : vector<32x128xf32>
    %cst_109 = arith.constant 0.107391022 : f32
    %211 = vector.broadcast %cst_109 : f32 to vector<32x128xf32>
    %212 = arith.mulf %211, %207 : vector<32x128xf32>
    %213 = arith.addf %204, %212 : vector<32x128xf32>
    %c1_i32_110 = arith.constant 1 : i32
    %214 = tpu.dynamic_rotate %80 by %c1_i32_110 dim 1 : vector<32x128xf32>, i32 -> vector<32x128xf32>
    %cst_111 = arith.constant 0.000000e+00 : f32
    %215 = vector.broadcast %cst_111 : f32 to vector<32x128xf32>
    %216 = arith.select %104, %215, %214 : vector<32x128xi1>, vector<32x128xf32>
    %cst_112 = arith.constant -0.0772548914 : f32
    %217 = vector.broadcast %cst_112 : f32 to vector<32x128xf32>
    %218 = arith.mulf %217, %216 : vector<32x128xf32>
    %219 = arith.addf %210, %218 : vector<32x128xf32>
    %cst_113 = arith.constant -0.0942836627 : f32
    %220 = vector.broadcast %cst_113 : f32 to vector<32x128xf32>
    %221 = arith.mulf %220, %216 : vector<32x128xf32>
    %222 = arith.addf %213, %221 : vector<32x128xf32>
    %cst_114 = arith.constant -0.0970396772 : f32
    %223 = vector.broadcast %cst_114 : f32 to vector<32x128xf32>
    %224 = arith.mulf %223, %80 : vector<32x128xf32>
    %225 = arith.addf %219, %224 : vector<32x128xf32>
    %cst_115 = arith.constant -0.196070269 : f32
    %226 = vector.broadcast %cst_115 : f32 to vector<32x128xf32>
    %227 = arith.mulf %226, %80 : vector<32x128xf32>
    %228 = arith.addf %222, %227 : vector<32x128xf32>
    %c127_i32_116 = arith.constant 127 : i32
    %229 = tpu.dynamic_rotate %80 by %c127_i32_116 dim 1 : vector<32x128xf32>, i32 -> vector<32x128xf32>
    %cst_117 = arith.constant 0.000000e+00 : f32
    %230 = vector.broadcast %cst_117 : f32 to vector<32x128xf32>
    %231 = arith.select %106, %230, %229 : vector<32x128xi1>, vector<32x128xf32>
    %cst_118 = arith.constant 0.209614784 : f32
    %232 = vector.broadcast %cst_118 : f32 to vector<32x128xf32>
    %233 = arith.mulf %232, %231 : vector<32x128xf32>
    %234 = arith.addf %225, %233 : vector<32x128xf32>
    %cst_119 = arith.constant 0.0573993437 : f32
    %235 = vector.broadcast %cst_119 : f32 to vector<32x128xf32>
    %236 = arith.mulf %235, %231 : vector<32x128xf32>
    %237 = arith.addf %228, %236 : vector<32x128xf32>
    %c31_i32_120 = arith.constant 31 : i32
    %238 = tpu.dynamic_rotate %80 by %c31_i32_120 dim 0 : vector<32x128xf32>, i32 -> vector<32x128xf32>
    %cst_121 = arith.constant 0.000000e+00 : f32
    %239 = vector.broadcast %cst_121 : f32 to vector<32x128xf32>
    %240 = arith.select %102, %239, %238 : vector<32x128xi1>, vector<32x128xf32>
    %c1_i32_122 = arith.constant 1 : i32
    %241 = tpu.dynamic_rotate %240 by %c1_i32_122 dim 1 : vector<32x128xf32>, i32 -> vector<32x128xf32>
    %cst_123 = arith.constant 0.000000e+00 : f32
    %242 = vector.broadcast %cst_123 : f32 to vector<32x128xf32>
    %243 = arith.select %104, %242, %241 : vector<32x128xi1>, vector<32x128xf32>
    %cst_124 = arith.constant 0.0233610608 : f32
    %244 = vector.broadcast %cst_124 : f32 to vector<32x128xf32>
    %245 = arith.mulf %244, %243 : vector<32x128xf32>
    %246 = arith.addf %234, %245 : vector<32x128xf32>
    %cst_125 = arith.constant 0.130148649 : f32
    %247 = vector.broadcast %cst_125 : f32 to vector<32x128xf32>
    %248 = arith.mulf %247, %243 : vector<32x128xf32>
    %249 = arith.addf %237, %248 : vector<32x128xf32>
    %cst_126 = arith.constant 0.0545560531 : f32
    %250 = vector.broadcast %cst_126 : f32 to vector<32x128xf32>
    %251 = arith.mulf %250, %240 : vector<32x128xf32>
    %252 = arith.addf %246, %251 : vector<32x128xf32>
    %cst_127 = arith.constant 0.240993425 : f32
    %253 = vector.broadcast %cst_127 : f32 to vector<32x128xf32>
    %254 = arith.mulf %253, %240 : vector<32x128xf32>
    %255 = arith.addf %249, %254 : vector<32x128xf32>
    %c127_i32_128 = arith.constant 127 : i32
    %256 = tpu.dynamic_rotate %240 by %c127_i32_128 dim 1 : vector<32x128xf32>, i32 -> vector<32x128xf32>
    %cst_129 = arith.constant 0.000000e+00 : f32
    %257 = vector.broadcast %cst_129 : f32 to vector<32x128xf32>
    %258 = arith.select %106, %257, %256 : vector<32x128xi1>, vector<32x128xf32>
    %cst_130 = arith.constant -0.0970148071 : f32
    %259 = vector.broadcast %cst_130 : f32 to vector<32x128xf32>
    %260 = arith.mulf %259, %258 : vector<32x128xf32>
    %261 = arith.addf %252, %260 : vector<32x128xf32>
    %cst_131 = arith.constant -0.141939491 : f32
    %262 = vector.broadcast %cst_131 : f32 to vector<32x128xf32>
    %263 = arith.mulf %262, %258 : vector<32x128xf32>
    %264 = arith.addf %255, %263 : vector<32x128xf32>
    %c0_132 = arith.constant 0 : index
    %c0_133 = arith.constant 0 : index
    %c0_134 = arith.constant 0 : index
    %c0_135 = arith.constant 0 : index
    %265 = vector.load %arg3[%c0_132, %c0_133, %c0_134, %c0_135] : memref<1x2x32x128xf32, #tpu.memory_space<vmem>>, vector<1x1x32x128xf32>
    %266 = vector.shape_cast %265 : vector<1x1x32x128xf32> to vector<32x128xf32>
    %c0_136 = arith.constant 0 : index
    %c1_137 = arith.constant 1 : index
    %c0_138 = arith.constant 0 : index
    %c0_139 = arith.constant 0 : index
    %267 = vector.load %arg3[%c0_136, %c1_137, %c0_138, %c0_139] : memref<1x2x32x128xf32, #tpu.memory_space<vmem>>, vector<1x1x32x128xf32>
    %268 = vector.shape_cast %267 : vector<1x1x32x128xf32> to vector<32x128xf32>
    %269 = arith.mulf %261, %266 : vector<32x128xf32>
    %270 = arith.mulf %264, %268 : vector<32x128xf32>
    %271 = arith.subf %269, %270 : vector<32x128xf32>
    %272 = arith.mulf %261, %268 : vector<32x128xf32>
    %273 = arith.mulf %264, %266 : vector<32x128xf32>
    %274 = arith.addf %272, %273 : vector<32x128xf32>
    %c0_140 = arith.constant 0 : index
    %c0_141 = arith.constant 0 : index
    %275 = vector.load %arg6[%c0_140, %c0_141] : memref<128x256xbf16, #tpu.memory_space<vmem>>, vector<128x256xbf16>
    %276 = arith.truncf %271 : vector<32x128xf32> to vector<32x128xbf16>
    %cst_142 = arith.constant dense<0.000000e+00> : vector<32x256xf32>
    %277 = tpu.matmul %276, %275, %cst_142 {dimension_numbers = #tpu.dot_dimension_numbers<[1], [0], [0], [1], [0, 0, 1, 1], [], []>} : vector<32x128xbf16>, vector<128x256xbf16>, vector<32x256xf32> -> vector<32x256xf32>
    %c0_143 = arith.constant 0 : index
    %c0_144 = arith.constant 0 : index
    %278 = vector.load %arg6[%c0_143, %c0_144] : memref<128x256xbf16, #tpu.memory_space<vmem>>, vector<128x256xbf16>
    %279 = arith.truncf %274 : vector<32x128xf32> to vector<32x128xbf16>
    %cst_145 = arith.constant dense<0.000000e+00> : vector<32x256xf32>
    %280 = tpu.matmul %279, %278, %cst_145 {dimension_numbers = #tpu.dot_dimension_numbers<[1], [0], [0], [1], [0, 0, 1, 1], [], []>} : vector<32x128xbf16>, vector<128x256xbf16>, vector<32x256xf32> -> vector<32x256xf32>
    %281 = vector.extract_strided_slice %277 {offsets = [0, 0], sizes = [32, 128], strides = [1, 1]} : vector<32x256xf32> to vector<32x128xf32>
    %282 = vector.extract_strided_slice %280 {offsets = [0, 128], sizes = [32, 128], strides = [1, 1]} : vector<32x256xf32> to vector<32x128xf32>
    %283 = arith.subf %281, %282 : vector<32x128xf32>
    %284 = vector.extract_strided_slice %277 {offsets = [0, 128], sizes = [32, 128], strides = [1, 1]} : vector<32x256xf32> to vector<32x128xf32>
    %285 = vector.extract_strided_slice %280 {offsets = [0, 0], sizes = [32, 128], strides = [1, 1]} : vector<32x256xf32> to vector<32x128xf32>
    %286 = arith.addf %284, %285 : vector<32x128xf32>
    %287 = arith.mulf %283, %266 : vector<32x128xf32>
    %288 = arith.mulf %286, %268 : vector<32x128xf32>
    %289 = arith.addf %287, %288 : vector<32x128xf32>
    %290 = arith.mulf %286, %266 : vector<32x128xf32>
    %291 = arith.mulf %283, %268 : vector<32x128xf32>
    %292 = arith.subf %290, %291 : vector<32x128xf32>
    %c0_146 = arith.constant 0 : index
    %c0_147 = arith.constant 0 : index
    %293 = vector.load %arg7[%c0_146, %c0_147] : memref<128x128xbf16, #tpu.memory_space<vmem>>, vector<128x128xbf16>
    %294 = arith.truncf %289 : vector<32x128xf32> to vector<32x128xbf16>
    %cst_148 = arith.constant dense<0.000000e+00> : vector<32x128xf32>
    %295 = tpu.matmul %294, %293, %cst_148 {dimension_numbers = #tpu.dot_dimension_numbers<[1], [0], [0], [1], [0, 0, 1, 1], [], []>} : vector<32x128xbf16>, vector<128x128xbf16>, vector<32x128xf32> -> vector<32x128xf32>
    %c0_149 = arith.constant 0 : index
    %c0_150 = arith.constant 0 : index
    %296 = vector.load %arg7[%c0_149, %c0_150] : memref<128x128xbf16, #tpu.memory_space<vmem>>, vector<128x128xbf16>
    %297 = arith.truncf %292 : vector<32x128xf32> to vector<32x128xbf16>
    %cst_151 = arith.constant dense<0.000000e+00> : vector<32x128xf32>
    %298 = tpu.matmul %297, %296, %cst_151 {dimension_numbers = #tpu.dot_dimension_numbers<[1], [0], [0], [1], [0, 0, 1, 1], [], []>} : vector<32x128xbf16>, vector<128x128xbf16>, vector<32x128xf32> -> vector<32x128xf32>
    %299 = arith.addf %261, %35 : vector<32x128xf32>
    %300 = arith.subf %299, %295 : vector<32x128xf32>
    %301 = arith.addf %264, %38 : vector<32x128xf32>
    %302 = arith.subf %301, %298 : vector<32x128xf32>
    %303 = tpu.iota {dimensions = array<i32: 0>} : vector<32x128xi32>
    %304 = tpu.iota {dimensions = array<i32: 1>} : vector<32x128xi32>
    %c32_i32_152 = arith.constant 32 : i32
    %c0_i32_153 = arith.constant 0 : i32
    %305 = arith.cmpi eq, %c32_i32_152, %c0_i32_153 : i32
    %c1_i32_154 = arith.constant 1 : i32
    %306 = arith.select %305, %c1_i32_154, %c32_i32_152 : i32
    %307 = vector.broadcast %306 : i32 to vector<32x128xi32>
    %308 = arith.remsi %304, %307 : vector<32x128xi32>
    %c0_i32_155 = arith.constant 0 : i32
    %309 = vector.broadcast %c0_i32_155 : i32 to vector<32x128xi32>
    %310 = arith.cmpi ne, %308, %309 : vector<32x128xi32>
    %c0_i32_156 = arith.constant 0 : i32
    %311 = vector.broadcast %c0_i32_156 : i32 to vector<32x128xi32>
    %312 = arith.cmpi slt, %308, %311 : vector<32x128xi32>
    %c0_i32_157 = arith.constant 0 : i32
    %313 = arith.cmpi slt, %306, %c0_i32_157 : i32
    %314 = vector.broadcast %313 : i1 to vector<32x128xi1>
    %315 = vector.broadcast %314 : vector<32x128xi1> to vector<32x128xi1>
    %316 = arith.xori %312, %315 : vector<32x128xi1>
    %317 = arith.andi %316, %310 : vector<32x128xi1>
    %318 = vector.broadcast %306 : i32 to vector<32x128xi32>
    %319 = arith.addi %308, %318 : vector<32x128xi32>
    %320 = arith.select %317, %319, %308 : vector<32x128xi1>, vector<32x128xi32>
    %c0_i32_158 = arith.constant 0 : i32
    %321 = vector.broadcast %c0_i32_158 : i32 to vector<32x128xi32>
    %322 = arith.cmpi eq, %303, %321 : vector<32x128xi32>
    %c31_i32_159 = arith.constant 31 : i32
    %323 = vector.broadcast %c31_i32_159 : i32 to vector<32x128xi32>
    %324 = arith.cmpi eq, %303, %323 : vector<32x128xi32>
    %c0_i32_160 = arith.constant 0 : i32
    %325 = vector.broadcast %c0_i32_160 : i32 to vector<32x128xi32>
    %326 = arith.cmpi eq, %320, %325 : vector<32x128xi32>
    %c31_i32_161 = arith.constant 31 : i32
    %327 = vector.broadcast %c31_i32_161 : i32 to vector<32x128xi32>
    %328 = arith.cmpi eq, %320, %327 : vector<32x128xi32>
    %cst_162 = arith.constant -0.012941693 : f32
    %329 = vector.broadcast %cst_162 : f32 to vector<32x128xf32>
    %cst_163 = arith.constant -0.00121447199 : f32
    %330 = vector.broadcast %cst_163 : f32 to vector<32x128xf32>
    %c1_i32_164 = arith.constant 1 : i32
    %331 = tpu.dynamic_rotate %300 by %c1_i32_164 dim 0 : vector<32x128xf32>, i32 -> vector<32x128xf32>
    %cst_165 = arith.constant 0.000000e+00 : f32
    %332 = vector.broadcast %cst_165 : f32 to vector<32x128xf32>
    %333 = arith.select %322, %332, %331 : vector<32x128xi1>, vector<32x128xf32>
    %c1_i32_166 = arith.constant 1 : i32
    %334 = tpu.dynamic_rotate %333 by %c1_i32_166 dim 1 : vector<32x128xf32>, i32 -> vector<32x128xf32>
    %cst_167 = arith.constant 0.000000e+00 : f32
    %335 = vector.broadcast %cst_167 : f32 to vector<32x128xf32>
    %336 = arith.select %326, %335, %334 : vector<32x128xi1>, vector<32x128xf32>
    %cst_168 = arith.constant 0.0467434488 : f32
    %337 = vector.broadcast %cst_168 : f32 to vector<32x128xf32>
    %338 = arith.mulf %337, %336 : vector<32x128xf32>
    %339 = arith.addf %329, %338 : vector<32x128xf32>
    %cst_169 = arith.constant 0.0545946173 : f32
    %340 = vector.broadcast %cst_169 : f32 to vector<32x128xf32>
    %341 = arith.mulf %340, %336 : vector<32x128xf32>
    %342 = arith.addf %330, %341 : vector<32x128xf32>
    %cst_170 = arith.constant 0.0479224585 : f32
    %343 = vector.broadcast %cst_170 : f32 to vector<32x128xf32>
    %344 = arith.mulf %343, %333 : vector<32x128xf32>
    %345 = arith.addf %339, %344 : vector<32x128xf32>
    %cst_171 = arith.constant 0.0219785087 : f32
    %346 = vector.broadcast %cst_171 : f32 to vector<32x128xf32>
    %347 = arith.mulf %346, %333 : vector<32x128xf32>
    %348 = arith.addf %342, %347 : vector<32x128xf32>
    %c127_i32_172 = arith.constant 127 : i32
    %349 = tpu.dynamic_rotate %333 by %c127_i32_172 dim 1 : vector<32x128xf32>, i32 -> vector<32x128xf32>
    %cst_173 = arith.constant 0.000000e+00 : f32
    %350 = vector.broadcast %cst_173 : f32 to vector<32x128xf32>
    %351 = arith.select %328, %350, %349 : vector<32x128xi1>, vector<32x128xf32>
    %cst_174 = arith.constant -0.0241651908 : f32
    %352 = vector.broadcast %cst_174 : f32 to vector<32x128xf32>
    %353 = arith.mulf %352, %351 : vector<32x128xf32>
    %354 = arith.addf %345, %353 : vector<32x128xf32>
    %cst_175 = arith.constant -0.045455277 : f32
    %355 = vector.broadcast %cst_175 : f32 to vector<32x128xf32>
    %356 = arith.mulf %355, %351 : vector<32x128xf32>
    %357 = arith.addf %348, %356 : vector<32x128xf32>
    %c1_i32_176 = arith.constant 1 : i32
    %358 = tpu.dynamic_rotate %300 by %c1_i32_176 dim 1 : vector<32x128xf32>, i32 -> vector<32x128xf32>
    %cst_177 = arith.constant 0.000000e+00 : f32
    %359 = vector.broadcast %cst_177 : f32 to vector<32x128xf32>
    %360 = arith.select %326, %359, %358 : vector<32x128xi1>, vector<32x128xf32>
    %cst_178 = arith.constant -0.0379637368 : f32
    %361 = vector.broadcast %cst_178 : f32 to vector<32x128xf32>
    %362 = arith.mulf %361, %360 : vector<32x128xf32>
    %363 = arith.addf %354, %362 : vector<32x128xf32>
    %cst_179 = arith.constant -0.250614822 : f32
    %364 = vector.broadcast %cst_179 : f32 to vector<32x128xf32>
    %365 = arith.mulf %364, %360 : vector<32x128xf32>
    %366 = arith.addf %357, %365 : vector<32x128xf32>
    %cst_180 = arith.constant -0.190375909 : f32
    %367 = vector.broadcast %cst_180 : f32 to vector<32x128xf32>
    %368 = arith.mulf %367, %300 : vector<32x128xf32>
    %369 = arith.addf %363, %368 : vector<32x128xf32>
    %cst_181 = arith.constant 0.0157048758 : f32
    %370 = vector.broadcast %cst_181 : f32 to vector<32x128xf32>
    %371 = arith.mulf %370, %300 : vector<32x128xf32>
    %372 = arith.addf %366, %371 : vector<32x128xf32>
    %c127_i32_182 = arith.constant 127 : i32
    %373 = tpu.dynamic_rotate %300 by %c127_i32_182 dim 1 : vector<32x128xf32>, i32 -> vector<32x128xf32>
    %cst_183 = arith.constant 0.000000e+00 : f32
    %374 = vector.broadcast %cst_183 : f32 to vector<32x128xf32>
    %375 = arith.select %328, %374, %373 : vector<32x128xi1>, vector<32x128xf32>
    %cst_184 = arith.constant -0.168433771 : f32
    %376 = vector.broadcast %cst_184 : f32 to vector<32x128xf32>
    %377 = arith.mulf %376, %375 : vector<32x128xf32>
    %378 = arith.addf %369, %377 : vector<32x128xf32>
    %cst_185 = arith.constant 0.068345122 : f32
    %379 = vector.broadcast %cst_185 : f32 to vector<32x128xf32>
    %380 = arith.mulf %379, %375 : vector<32x128xf32>
    %381 = arith.addf %372, %380 : vector<32x128xf32>
    %c31_i32_186 = arith.constant 31 : i32
    %382 = tpu.dynamic_rotate %300 by %c31_i32_186 dim 0 : vector<32x128xf32>, i32 -> vector<32x128xf32>
    %cst_187 = arith.constant 0.000000e+00 : f32
    %383 = vector.broadcast %cst_187 : f32 to vector<32x128xf32>
    %384 = arith.select %324, %383, %382 : vector<32x128xi1>, vector<32x128xf32>
    %c1_i32_188 = arith.constant 1 : i32
    %385 = tpu.dynamic_rotate %384 by %c1_i32_188 dim 1 : vector<32x128xf32>, i32 -> vector<32x128xf32>
    %cst_189 = arith.constant 0.000000e+00 : f32
    %386 = vector.broadcast %cst_189 : f32 to vector<32x128xf32>
    %387 = arith.select %326, %386, %385 : vector<32x128xi1>, vector<32x128xf32>
    %cst_190 = arith.constant 0.0553553179 : f32
    %388 = vector.broadcast %cst_190 : f32 to vector<32x128xf32>
    %389 = arith.mulf %388, %387 : vector<32x128xf32>
    %390 = arith.addf %378, %389 : vector<32x128xf32>
    %cst_191 = arith.constant -0.0878507644 : f32
    %391 = vector.broadcast %cst_191 : f32 to vector<32x128xf32>
    %392 = arith.mulf %391, %387 : vector<32x128xf32>
    %393 = arith.addf %381, %392 : vector<32x128xf32>
    %cst_192 = arith.constant 0.0249587726 : f32
    %394 = vector.broadcast %cst_192 : f32 to vector<32x128xf32>
    %395 = arith.mulf %394, %384 : vector<32x128xf32>
    %396 = arith.addf %390, %395 : vector<32x128xf32>
    %cst_193 = arith.constant -0.0688871443 : f32
    %397 = vector.broadcast %cst_193 : f32 to vector<32x128xf32>
    %398 = arith.mulf %397, %384 : vector<32x128xf32>
    %399 = arith.addf %393, %398 : vector<32x128xf32>
    %c127_i32_194 = arith.constant 127 : i32
    %400 = tpu.dynamic_rotate %384 by %c127_i32_194 dim 1 : vector<32x128xf32>, i32 -> vector<32x128xf32>
    %cst_195 = arith.constant 0.000000e+00 : f32
    %401 = vector.broadcast %cst_195 : f32 to vector<32x128xf32>
    %402 = arith.select %328, %401, %400 : vector<32x128xi1>, vector<32x128xf32>
    %cst_196 = arith.constant 0.120585792 : f32
    %403 = vector.broadcast %cst_196 : f32 to vector<32x128xf32>
    %404 = arith.mulf %403, %402 : vector<32x128xf32>
    %405 = arith.addf %396, %404 : vector<32x128xf32>
    %cst_197 = arith.constant 0.087950334 : f32
    %406 = vector.broadcast %cst_197 : f32 to vector<32x128xf32>
    %407 = arith.mulf %406, %402 : vector<32x128xf32>
    %408 = arith.addf %399, %407 : vector<32x128xf32>
    %c1_i32_198 = arith.constant 1 : i32
    %409 = tpu.dynamic_rotate %302 by %c1_i32_198 dim 0 : vector<32x128xf32>, i32 -> vector<32x128xf32>
    %cst_199 = arith.constant 0.000000e+00 : f32
    %410 = vector.broadcast %cst_199 : f32 to vector<32x128xf32>
    %411 = arith.select %322, %410, %409 : vector<32x128xi1>, vector<32x128xf32>
    %c1_i32_200 = arith.constant 1 : i32
    %412 = tpu.dynamic_rotate %411 by %c1_i32_200 dim 1 : vector<32x128xf32>, i32 -> vector<32x128xf32>
    %cst_201 = arith.constant 0.000000e+00 : f32
    %413 = vector.broadcast %cst_201 : f32 to vector<32x128xf32>
    %414 = arith.select %326, %413, %412 : vector<32x128xi1>, vector<32x128xf32>
    %cst_202 = arith.constant -1.565640e-02 : f32
    %415 = vector.broadcast %cst_202 : f32 to vector<32x128xf32>
    %416 = arith.mulf %415, %414 : vector<32x128xf32>
    %417 = arith.addf %405, %416 : vector<32x128xf32>
    %cst_203 = arith.constant -0.0131642176 : f32
    %418 = vector.broadcast %cst_203 : f32 to vector<32x128xf32>
    %419 = arith.mulf %418, %414 : vector<32x128xf32>
    %420 = arith.addf %408, %419 : vector<32x128xf32>
    %cst_204 = arith.constant -4.269450e-03 : f32
    %421 = vector.broadcast %cst_204 : f32 to vector<32x128xf32>
    %422 = arith.mulf %421, %411 : vector<32x128xf32>
    %423 = arith.addf %417, %422 : vector<32x128xf32>
    %cst_205 = arith.constant 0.00763903419 : f32
    %424 = vector.broadcast %cst_205 : f32 to vector<32x128xf32>
    %425 = arith.mulf %424, %411 : vector<32x128xf32>
    %426 = arith.addf %420, %425 : vector<32x128xf32>
    %c127_i32_206 = arith.constant 127 : i32
    %427 = tpu.dynamic_rotate %411 by %c127_i32_206 dim 1 : vector<32x128xf32>, i32 -> vector<32x128xf32>
    %cst_207 = arith.constant 0.000000e+00 : f32
    %428 = vector.broadcast %cst_207 : f32 to vector<32x128xf32>
    %429 = arith.select %328, %428, %427 : vector<32x128xi1>, vector<32x128xf32>
    %cst_208 = arith.constant -0.0122792302 : f32
    %430 = vector.broadcast %cst_208 : f32 to vector<32x128xf32>
    %431 = arith.mulf %430, %429 : vector<32x128xf32>
    %432 = arith.addf %423, %431 : vector<32x128xf32>
    %cst_209 = arith.constant -0.080988422 : f32
    %433 = vector.broadcast %cst_209 : f32 to vector<32x128xf32>
    %434 = arith.mulf %433, %429 : vector<32x128xf32>
    %435 = arith.addf %426, %434 : vector<32x128xf32>
    %c1_i32_210 = arith.constant 1 : i32
    %436 = tpu.dynamic_rotate %302 by %c1_i32_210 dim 1 : vector<32x128xf32>, i32 -> vector<32x128xf32>
    %cst_211 = arith.constant 0.000000e+00 : f32
    %437 = vector.broadcast %cst_211 : f32 to vector<32x128xf32>
    %438 = arith.select %326, %437, %436 : vector<32x128xi1>, vector<32x128xf32>
    %cst_212 = arith.constant 0.0411248021 : f32
    %439 = vector.broadcast %cst_212 : f32 to vector<32x128xf32>
    %440 = arith.mulf %439, %438 : vector<32x128xf32>
    %441 = arith.addf %432, %440 : vector<32x128xf32>
    %cst_213 = arith.constant 0.0789105221 : f32
    %442 = vector.broadcast %cst_213 : f32 to vector<32x128xf32>
    %443 = arith.mulf %442, %438 : vector<32x128xf32>
    %444 = arith.addf %435, %443 : vector<32x128xf32>
    %cst_214 = arith.constant 0.0335753337 : f32
    %445 = vector.broadcast %cst_214 : f32 to vector<32x128xf32>
    %446 = arith.mulf %445, %302 : vector<32x128xf32>
    %447 = arith.addf %441, %446 : vector<32x128xf32>
    %cst_215 = arith.constant -0.0743008628 : f32
    %448 = vector.broadcast %cst_215 : f32 to vector<32x128xf32>
    %449 = arith.mulf %448, %302 : vector<32x128xf32>
    %450 = arith.addf %444, %449 : vector<32x128xf32>
    %c127_i32_216 = arith.constant 127 : i32
    %451 = tpu.dynamic_rotate %302 by %c127_i32_216 dim 1 : vector<32x128xf32>, i32 -> vector<32x128xf32>
    %cst_217 = arith.constant 0.000000e+00 : f32
    %452 = vector.broadcast %cst_217 : f32 to vector<32x128xf32>
    %453 = arith.select %328, %452, %451 : vector<32x128xi1>, vector<32x128xf32>
    %cst_218 = arith.constant 0.0538820028 : f32
    %454 = vector.broadcast %cst_218 : f32 to vector<32x128xf32>
    %455 = arith.mulf %454, %453 : vector<32x128xf32>
    %456 = arith.addf %447, %455 : vector<32x128xf32>
    %cst_219 = arith.constant -0.0731378645 : f32
    %457 = vector.broadcast %cst_219 : f32 to vector<32x128xf32>
    %458 = arith.mulf %457, %453 : vector<32x128xf32>
    %459 = arith.addf %450, %458 : vector<32x128xf32>
    %c31_i32_220 = arith.constant 31 : i32
    %460 = tpu.dynamic_rotate %302 by %c31_i32_220 dim 0 : vector<32x128xf32>, i32 -> vector<32x128xf32>
    %cst_221 = arith.constant 0.000000e+00 : f32
    %461 = vector.broadcast %cst_221 : f32 to vector<32x128xf32>
    %462 = arith.select %324, %461, %460 : vector<32x128xi1>, vector<32x128xf32>
    %c1_i32_222 = arith.constant 1 : i32
    %463 = tpu.dynamic_rotate %462 by %c1_i32_222 dim 1 : vector<32x128xf32>, i32 -> vector<32x128xf32>
    %cst_223 = arith.constant 0.000000e+00 : f32
    %464 = vector.broadcast %cst_223 : f32 to vector<32x128xf32>
    %465 = arith.select %326, %464, %463 : vector<32x128xi1>, vector<32x128xf32>
    %cst_224 = arith.constant 0.0579997264 : f32
    %466 = vector.broadcast %cst_224 : f32 to vector<32x128xf32>
    %467 = arith.mulf %466, %465 : vector<32x128xf32>
    %468 = arith.addf %456, %467 : vector<32x128xf32>
    %cst_225 = arith.constant 0.0130834896 : f32
    %469 = vector.broadcast %cst_225 : f32 to vector<32x128xf32>
    %470 = arith.mulf %469, %465 : vector<32x128xf32>
    %471 = arith.addf %459, %470 : vector<32x128xf32>
    %cst_226 = arith.constant -0.118861429 : f32
    %472 = vector.broadcast %cst_226 : f32 to vector<32x128xf32>
    %473 = arith.mulf %472, %462 : vector<32x128xf32>
    %474 = arith.addf %468, %473 : vector<32x128xf32>
    %cst_227 = arith.constant 0.00169173034 : f32
    %475 = vector.broadcast %cst_227 : f32 to vector<32x128xf32>
    %476 = arith.mulf %475, %462 : vector<32x128xf32>
    %477 = arith.addf %471, %476 : vector<32x128xf32>
    %c127_i32_228 = arith.constant 127 : i32
    %478 = tpu.dynamic_rotate %462 by %c127_i32_228 dim 1 : vector<32x128xf32>, i32 -> vector<32x128xf32>
    %cst_229 = arith.constant 0.000000e+00 : f32
    %479 = vector.broadcast %cst_229 : f32 to vector<32x128xf32>
    %480 = arith.select %328, %479, %478 : vector<32x128xi1>, vector<32x128xf32>
    %cst_230 = arith.constant 0.272656113 : f32
    %481 = vector.broadcast %cst_230 : f32 to vector<32x128xf32>
    %482 = arith.mulf %481, %480 : vector<32x128xf32>
    %483 = arith.addf %474, %482 : vector<32x128xf32>
    %cst_231 = arith.constant -0.0520761572 : f32
    %484 = vector.broadcast %cst_231 : f32 to vector<32x128xf32>
    %485 = arith.mulf %484, %480 : vector<32x128xf32>
    %486 = arith.addf %477, %485 : vector<32x128xf32>
    %c0_232 = arith.constant 0 : index
    %c0_233 = arith.constant 0 : index
    %c0_234 = arith.constant 0 : index
    %c0_235 = arith.constant 0 : index
    %487 = vector.load %arg3[%c0_232, %c0_233, %c0_234, %c0_235] : memref<1x2x32x128xf32, #tpu.memory_space<vmem>>, vector<1x1x32x128xf32>
    %488 = vector.shape_cast %487 : vector<1x1x32x128xf32> to vector<32x128xf32>
    %c0_236 = arith.constant 0 : index
    %c1_237 = arith.constant 1 : index
    %c0_238 = arith.constant 0 : index
    %c0_239 = arith.constant 0 : index
    %489 = vector.load %arg3[%c0_236, %c1_237, %c0_238, %c0_239] : memref<1x2x32x128xf32, #tpu.memory_space<vmem>>, vector<1x1x32x128xf32>
    %490 = vector.shape_cast %489 : vector<1x1x32x128xf32> to vector<32x128xf32>
    %491 = arith.mulf %483, %488 : vector<32x128xf32>
    %492 = arith.mulf %486, %490 : vector<32x128xf32>
    %493 = arith.subf %491, %492 : vector<32x128xf32>
    %494 = arith.mulf %483, %490 : vector<32x128xf32>
    %495 = arith.mulf %486, %488 : vector<32x128xf32>
    %496 = arith.addf %494, %495 : vector<32x128xf32>
    %c0_240 = arith.constant 0 : index
    %c0_241 = arith.constant 0 : index
    %497 = vector.load %arg6[%c0_240, %c0_241] : memref<128x256xbf16, #tpu.memory_space<vmem>>, vector<128x256xbf16>
    %498 = arith.truncf %493 : vector<32x128xf32> to vector<32x128xbf16>
    %cst_242 = arith.constant dense<0.000000e+00> : vector<32x256xf32>
    %499 = tpu.matmul %498, %497, %cst_242 {dimension_numbers = #tpu.dot_dimension_numbers<[1], [0], [0], [1], [0, 0, 1, 1], [], []>} : vector<32x128xbf16>, vector<128x256xbf16>, vector<32x256xf32> -> vector<32x256xf32>
    %c0_243 = arith.constant 0 : index
    %c0_244 = arith.constant 0 : index
    %500 = vector.load %arg6[%c0_243, %c0_244] : memref<128x256xbf16, #tpu.memory_space<vmem>>, vector<128x256xbf16>
    %501 = arith.truncf %496 : vector<32x128xf32> to vector<32x128xbf16>
    %cst_245 = arith.constant dense<0.000000e+00> : vector<32x256xf32>
    %502 = tpu.matmul %501, %500, %cst_245 {dimension_numbers = #tpu.dot_dimension_numbers<[1], [0], [0], [1], [0, 0, 1, 1], [], []>} : vector<32x128xbf16>, vector<128x256xbf16>, vector<32x256xf32> -> vector<32x256xf32>
    %503 = vector.extract_strided_slice %499 {offsets = [0, 0], sizes = [32, 128], strides = [1, 1]} : vector<32x256xf32> to vector<32x128xf32>
    %504 = vector.extract_strided_slice %502 {offsets = [0, 128], sizes = [32, 128], strides = [1, 1]} : vector<32x256xf32> to vector<32x128xf32>
    %505 = arith.subf %503, %504 : vector<32x128xf32>
    %506 = vector.extract_strided_slice %499 {offsets = [0, 128], sizes = [32, 128], strides = [1, 1]} : vector<32x256xf32> to vector<32x128xf32>
    %507 = vector.extract_strided_slice %502 {offsets = [0, 0], sizes = [32, 128], strides = [1, 1]} : vector<32x256xf32> to vector<32x128xf32>
    %508 = arith.addf %506, %507 : vector<32x128xf32>
    %509 = arith.mulf %505, %488 : vector<32x128xf32>
    %510 = arith.mulf %508, %490 : vector<32x128xf32>
    %511 = arith.addf %509, %510 : vector<32x128xf32>
    %512 = arith.mulf %508, %488 : vector<32x128xf32>
    %513 = arith.mulf %505, %490 : vector<32x128xf32>
    %514 = arith.subf %512, %513 : vector<32x128xf32>
    %c0_246 = arith.constant 0 : index
    %c0_247 = arith.constant 0 : index
    %515 = vector.load %arg7[%c0_246, %c0_247] : memref<128x128xbf16, #tpu.memory_space<vmem>>, vector<128x128xbf16>
    %516 = arith.truncf %511 : vector<32x128xf32> to vector<32x128xbf16>
    %cst_248 = arith.constant dense<0.000000e+00> : vector<32x128xf32>
    %517 = tpu.matmul %516, %515, %cst_248 {dimension_numbers = #tpu.dot_dimension_numbers<[1], [0], [0], [1], [0, 0, 1, 1], [], []>} : vector<32x128xbf16>, vector<128x128xbf16>, vector<32x128xf32> -> vector<32x128xf32>
    %c0_249 = arith.constant 0 : index
    %c0_250 = arith.constant 0 : index
    %518 = vector.load %arg7[%c0_249, %c0_250] : memref<128x128xbf16, #tpu.memory_space<vmem>>, vector<128x128xbf16>
    %519 = arith.truncf %514 : vector<32x128xf32> to vector<32x128xbf16>
    %cst_251 = arith.constant dense<0.000000e+00> : vector<32x128xf32>
    %520 = tpu.matmul %519, %518, %cst_251 {dimension_numbers = #tpu.dot_dimension_numbers<[1], [0], [0], [1], [0, 0, 1, 1], [], []>} : vector<32x128xbf16>, vector<128x128xbf16>, vector<32x128xf32> -> vector<32x128xf32>
    %521 = arith.addf %483, %35 : vector<32x128xf32>
    %522 = arith.subf %521, %517 : vector<32x128xf32>
    %523 = arith.addf %486, %38 : vector<32x128xf32>
    %524 = arith.subf %523, %520 : vector<32x128xf32>
    %525 = tpu.iota {dimensions = array<i32: 0>} : vector<32x128xi32>
    %526 = tpu.iota {dimensions = array<i32: 1>} : vector<32x128xi32>
    %c32_i32_252 = arith.constant 32 : i32
    %c0_i32_253 = arith.constant 0 : i32
    %527 = arith.cmpi eq, %c32_i32_252, %c0_i32_253 : i32
    %c1_i32_254 = arith.constant 1 : i32
    %528 = arith.select %527, %c1_i32_254, %c32_i32_252 : i32
    %529 = vector.broadcast %528 : i32 to vector<32x128xi32>
    %530 = arith.remsi %526, %529 : vector<32x128xi32>
    %c0_i32_255 = arith.constant 0 : i32
    %531 = vector.broadcast %c0_i32_255 : i32 to vector<32x128xi32>
    %532 = arith.cmpi ne, %530, %531 : vector<32x128xi32>
    %c0_i32_256 = arith.constant 0 : i32
    %533 = vector.broadcast %c0_i32_256 : i32 to vector<32x128xi32>
    %534 = arith.cmpi slt, %530, %533 : vector<32x128xi32>
    %c0_i32_257 = arith.constant 0 : i32
    %535 = arith.cmpi slt, %528, %c0_i32_257 : i32
    %536 = vector.broadcast %535 : i1 to vector<32x128xi1>
    %537 = vector.broadcast %536 : vector<32x128xi1> to vector<32x128xi1>
    %538 = arith.xori %534, %537 : vector<32x128xi1>
    %539 = arith.andi %538, %532 : vector<32x128xi1>
    %540 = vector.broadcast %528 : i32 to vector<32x128xi32>
    %541 = arith.addi %530, %540 : vector<32x128xi32>
    %542 = arith.select %539, %541, %530 : vector<32x128xi1>, vector<32x128xi32>
    %c0_i32_258 = arith.constant 0 : i32
    %543 = vector.broadcast %c0_i32_258 : i32 to vector<32x128xi32>
    %544 = arith.cmpi eq, %525, %543 : vector<32x128xi32>
    %c31_i32_259 = arith.constant 31 : i32
    %545 = vector.broadcast %c31_i32_259 : i32 to vector<32x128xi32>
    %546 = arith.cmpi eq, %525, %545 : vector<32x128xi32>
    %c0_i32_260 = arith.constant 0 : i32
    %547 = vector.broadcast %c0_i32_260 : i32 to vector<32x128xi32>
    %548 = arith.cmpi eq, %542, %547 : vector<32x128xi32>
    %c31_i32_261 = arith.constant 31 : i32
    %549 = vector.broadcast %c31_i32_261 : i32 to vector<32x128xi32>
    %550 = arith.cmpi eq, %542, %549 : vector<32x128xi32>
    %cst_262 = arith.constant -0.0134854801 : f32
    %551 = vector.broadcast %cst_262 : f32 to vector<32x128xf32>
    %cst_263 = arith.constant -0.00693677645 : f32
    %552 = vector.broadcast %cst_263 : f32 to vector<32x128xf32>
    %c1_i32_264 = arith.constant 1 : i32
    %553 = tpu.dynamic_rotate %522 by %c1_i32_264 dim 0 : vector<32x128xf32>, i32 -> vector<32x128xf32>
    %cst_265 = arith.constant 0.000000e+00 : f32
    %554 = vector.broadcast %cst_265 : f32 to vector<32x128xf32>
    %555 = arith.select %544, %554, %553 : vector<32x128xi1>, vector<32x128xf32>
    %c1_i32_266 = arith.constant 1 : i32
    %556 = tpu.dynamic_rotate %555 by %c1_i32_266 dim 1 : vector<32x128xf32>, i32 -> vector<32x128xf32>
    %cst_267 = arith.constant 0.000000e+00 : f32
    %557 = vector.broadcast %cst_267 : f32 to vector<32x128xf32>
    %558 = arith.select %548, %557, %556 : vector<32x128xi1>, vector<32x128xf32>
    %cst_268 = arith.constant -0.0445321873 : f32
    %559 = vector.broadcast %cst_268 : f32 to vector<32x128xf32>
    %560 = arith.mulf %559, %558 : vector<32x128xf32>
    %561 = arith.addf %551, %560 : vector<32x128xf32>
    %cst_269 = arith.constant 0.0542701297 : f32
    %562 = vector.broadcast %cst_269 : f32 to vector<32x128xf32>
    %563 = arith.mulf %562, %558 : vector<32x128xf32>
    %564 = arith.addf %552, %563 : vector<32x128xf32>
    %cst_270 = arith.constant 0.0273719113 : f32
    %565 = vector.broadcast %cst_270 : f32 to vector<32x128xf32>
    %566 = arith.mulf %565, %555 : vector<32x128xf32>
    %567 = arith.addf %561, %566 : vector<32x128xf32>
    %cst_271 = arith.constant 0.0220698025 : f32
    %568 = vector.broadcast %cst_271 : f32 to vector<32x128xf32>
    %569 = arith.mulf %568, %555 : vector<32x128xf32>
    %570 = arith.addf %564, %569 : vector<32x128xf32>
    %c127_i32_272 = arith.constant 127 : i32
    %571 = tpu.dynamic_rotate %555 by %c127_i32_272 dim 1 : vector<32x128xf32>, i32 -> vector<32x128xf32>
    %cst_273 = arith.constant 0.000000e+00 : f32
    %572 = vector.broadcast %cst_273 : f32 to vector<32x128xf32>
    %573 = arith.select %550, %572, %571 : vector<32x128xi1>, vector<32x128xf32>
    %cst_274 = arith.constant -0.0413910858 : f32
    %574 = vector.broadcast %cst_274 : f32 to vector<32x128xf32>
    %575 = arith.mulf %574, %573 : vector<32x128xf32>
    %576 = arith.addf %567, %575 : vector<32x128xf32>
    %cst_275 = arith.constant 0.0424383692 : f32
    %577 = vector.broadcast %cst_275 : f32 to vector<32x128xf32>
    %578 = arith.mulf %577, %573 : vector<32x128xf32>
    %579 = arith.addf %570, %578 : vector<32x128xf32>
    %c1_i32_276 = arith.constant 1 : i32
    %580 = tpu.dynamic_rotate %522 by %c1_i32_276 dim 1 : vector<32x128xf32>, i32 -> vector<32x128xf32>
    %cst_277 = arith.constant 0.000000e+00 : f32
    %581 = vector.broadcast %cst_277 : f32 to vector<32x128xf32>
    %582 = arith.select %548, %581, %580 : vector<32x128xi1>, vector<32x128xf32>
    %cst_278 = arith.constant 0.10010957 : f32
    %583 = vector.broadcast %cst_278 : f32 to vector<32x128xf32>
    %584 = arith.mulf %583, %582 : vector<32x128xf32>
    %585 = arith.addf %576, %584 : vector<32x128xf32>
    %cst_279 = arith.constant 0.00796723273 : f32
    %586 = vector.broadcast %cst_279 : f32 to vector<32x128xf32>
    %587 = arith.mulf %586, %582 : vector<32x128xf32>
    %588 = arith.addf %579, %587 : vector<32x128xf32>
    %cst_280 = arith.constant 0.11120557 : f32
    %589 = vector.broadcast %cst_280 : f32 to vector<32x128xf32>
    %590 = arith.mulf %589, %522 : vector<32x128xf32>
    %591 = arith.addf %585, %590 : vector<32x128xf32>
    %cst_281 = arith.constant -0.100358032 : f32
    %592 = vector.broadcast %cst_281 : f32 to vector<32x128xf32>
    %593 = arith.mulf %592, %522 : vector<32x128xf32>
    %594 = arith.addf %588, %593 : vector<32x128xf32>
    %c127_i32_282 = arith.constant 127 : i32
    %595 = tpu.dynamic_rotate %522 by %c127_i32_282 dim 1 : vector<32x128xf32>, i32 -> vector<32x128xf32>
    %cst_283 = arith.constant 0.000000e+00 : f32
    %596 = vector.broadcast %cst_283 : f32 to vector<32x128xf32>
    %597 = arith.select %550, %596, %595 : vector<32x128xi1>, vector<32x128xf32>
    %cst_284 = arith.constant 0.113356613 : f32
    %598 = vector.broadcast %cst_284 : f32 to vector<32x128xf32>
    %599 = arith.mulf %598, %597 : vector<32x128xf32>
    %600 = arith.addf %591, %599 : vector<32x128xf32>
    %cst_285 = arith.constant 0.156728759 : f32
    %601 = vector.broadcast %cst_285 : f32 to vector<32x128xf32>
    %602 = arith.mulf %601, %597 : vector<32x128xf32>
    %603 = arith.addf %594, %602 : vector<32x128xf32>
    %c31_i32_286 = arith.constant 31 : i32
    %604 = tpu.dynamic_rotate %522 by %c31_i32_286 dim 0 : vector<32x128xf32>, i32 -> vector<32x128xf32>
    %cst_287 = arith.constant 0.000000e+00 : f32
    %605 = vector.broadcast %cst_287 : f32 to vector<32x128xf32>
    %606 = arith.select %546, %605, %604 : vector<32x128xi1>, vector<32x128xf32>
    %c1_i32_288 = arith.constant 1 : i32
    %607 = tpu.dynamic_rotate %606 by %c1_i32_288 dim 1 : vector<32x128xf32>, i32 -> vector<32x128xf32>
    %cst_289 = arith.constant 0.000000e+00 : f32
    %608 = vector.broadcast %cst_289 : f32 to vector<32x128xf32>
    %609 = arith.select %548, %608, %607 : vector<32x128xi1>, vector<32x128xf32>
    %cst_290 = arith.constant 0.0322171859 : f32
    %610 = vector.broadcast %cst_290 : f32 to vector<32x128xf32>
    %611 = arith.mulf %610, %609 : vector<32x128xf32>
    %612 = arith.addf %600, %611 : vector<32x128xf32>
    %cst_291 = arith.constant -0.0656704158 : f32
    %613 = vector.broadcast %cst_291 : f32 to vector<32x128xf32>
    %614 = arith.mulf %613, %609 : vector<32x128xf32>
    %615 = arith.addf %603, %614 : vector<32x128xf32>
    %cst_292 = arith.constant 0.0793950781 : f32
    %616 = vector.broadcast %cst_292 : f32 to vector<32x128xf32>
    %617 = arith.mulf %616, %606 : vector<32x128xf32>
    %618 = arith.addf %612, %617 : vector<32x128xf32>
    %cst_293 = arith.constant 0.0622397065 : f32
    %619 = vector.broadcast %cst_293 : f32 to vector<32x128xf32>
    %620 = arith.mulf %619, %606 : vector<32x128xf32>
    %621 = arith.addf %615, %620 : vector<32x128xf32>
    %c127_i32_294 = arith.constant 127 : i32
    %622 = tpu.dynamic_rotate %606 by %c127_i32_294 dim 1 : vector<32x128xf32>, i32 -> vector<32x128xf32>
    %cst_295 = arith.constant 0.000000e+00 : f32
    %623 = vector.broadcast %cst_295 : f32 to vector<32x128xf32>
    %624 = arith.select %550, %623, %622 : vector<32x128xi1>, vector<32x128xf32>
    %cst_296 = arith.constant -0.0271082111 : f32
    %625 = vector.broadcast %cst_296 : f32 to vector<32x128xf32>
    %626 = arith.mulf %625, %624 : vector<32x128xf32>
    %627 = arith.addf %618, %626 : vector<32x128xf32>
    %cst_297 = arith.constant -0.123172916 : f32
    %628 = vector.broadcast %cst_297 : f32 to vector<32x128xf32>
    %629 = arith.mulf %628, %624 : vector<32x128xf32>
    %630 = arith.addf %621, %629 : vector<32x128xf32>
    %c1_i32_298 = arith.constant 1 : i32
    %631 = tpu.dynamic_rotate %524 by %c1_i32_298 dim 0 : vector<32x128xf32>, i32 -> vector<32x128xf32>
    %cst_299 = arith.constant 0.000000e+00 : f32
    %632 = vector.broadcast %cst_299 : f32 to vector<32x128xf32>
    %633 = arith.select %544, %632, %631 : vector<32x128xi1>, vector<32x128xf32>
    %c1_i32_300 = arith.constant 1 : i32
    %634 = tpu.dynamic_rotate %633 by %c1_i32_300 dim 1 : vector<32x128xf32>, i32 -> vector<32x128xf32>
    %cst_301 = arith.constant 0.000000e+00 : f32
    %635 = vector.broadcast %cst_301 : f32 to vector<32x128xf32>
    %636 = arith.select %548, %635, %634 : vector<32x128xi1>, vector<32x128xf32>
    %cst_302 = arith.constant 0.125755772 : f32
    %637 = vector.broadcast %cst_302 : f32 to vector<32x128xf32>
    %638 = arith.mulf %637, %636 : vector<32x128xf32>
    %639 = arith.addf %627, %638 : vector<32x128xf32>
    %cst_303 = arith.constant 0.0492512248 : f32
    %640 = vector.broadcast %cst_303 : f32 to vector<32x128xf32>
    %641 = arith.mulf %640, %636 : vector<32x128xf32>
    %642 = arith.addf %630, %641 : vector<32x128xf32>
    %cst_304 = arith.constant -0.0409102552 : f32
    %643 = vector.broadcast %cst_304 : f32 to vector<32x128xf32>
    %644 = arith.mulf %643, %633 : vector<32x128xf32>
    %645 = arith.addf %639, %644 : vector<32x128xf32>
    %cst_305 = arith.constant 0.244957015 : f32
    %646 = vector.broadcast %cst_305 : f32 to vector<32x128xf32>
    %647 = arith.mulf %646, %633 : vector<32x128xf32>
    %648 = arith.addf %642, %647 : vector<32x128xf32>
    %c127_i32_306 = arith.constant 127 : i32
    %649 = tpu.dynamic_rotate %633 by %c127_i32_306 dim 1 : vector<32x128xf32>, i32 -> vector<32x128xf32>
    %cst_307 = arith.constant 0.000000e+00 : f32
    %650 = vector.broadcast %cst_307 : f32 to vector<32x128xf32>
    %651 = arith.select %550, %650, %649 : vector<32x128xi1>, vector<32x128xf32>
    %cst_308 = arith.constant -0.0729093253 : f32
    %652 = vector.broadcast %cst_308 : f32 to vector<32x128xf32>
    %653 = arith.mulf %652, %651 : vector<32x128xf32>
    %654 = arith.addf %645, %653 : vector<32x128xf32>
    %cst_309 = arith.constant 0.02949504 : f32
    %655 = vector.broadcast %cst_309 : f32 to vector<32x128xf32>
    %656 = arith.mulf %655, %651 : vector<32x128xf32>
    %657 = arith.addf %648, %656 : vector<32x128xf32>
    %c1_i32_310 = arith.constant 1 : i32
    %658 = tpu.dynamic_rotate %524 by %c1_i32_310 dim 1 : vector<32x128xf32>, i32 -> vector<32x128xf32>
    %cst_311 = arith.constant 0.000000e+00 : f32
    %659 = vector.broadcast %cst_311 : f32 to vector<32x128xf32>
    %660 = arith.select %548, %659, %658 : vector<32x128xi1>, vector<32x128xf32>
    %cst_312 = arith.constant 0.0694456175 : f32
    %661 = vector.broadcast %cst_312 : f32 to vector<32x128xf32>
    %662 = arith.mulf %661, %660 : vector<32x128xf32>
    %663 = arith.addf %654, %662 : vector<32x128xf32>
    %cst_313 = arith.constant -0.0870898365 : f32
    %664 = vector.broadcast %cst_313 : f32 to vector<32x128xf32>
    %665 = arith.mulf %664, %660 : vector<32x128xf32>
    %666 = arith.addf %657, %665 : vector<32x128xf32>
    %cst_314 = arith.constant -0.127409473 : f32
    %667 = vector.broadcast %cst_314 : f32 to vector<32x128xf32>
    %668 = arith.mulf %667, %524 : vector<32x128xf32>
    %669 = arith.addf %663, %668 : vector<32x128xf32>
    %cst_315 = arith.constant -0.145707607 : f32
    %670 = vector.broadcast %cst_315 : f32 to vector<32x128xf32>
    %671 = arith.mulf %670, %524 : vector<32x128xf32>
    %672 = arith.addf %666, %671 : vector<32x128xf32>
    %c127_i32_316 = arith.constant 127 : i32
    %673 = tpu.dynamic_rotate %524 by %c127_i32_316 dim 1 : vector<32x128xf32>, i32 -> vector<32x128xf32>
    %cst_317 = arith.constant 0.000000e+00 : f32
    %674 = vector.broadcast %cst_317 : f32 to vector<32x128xf32>
    %675 = arith.select %550, %674, %673 : vector<32x128xi1>, vector<32x128xf32>
    %cst_318 = arith.constant 0.0818707048 : f32
    %676 = vector.broadcast %cst_318 : f32 to vector<32x128xf32>
    %677 = arith.mulf %676, %675 : vector<32x128xf32>
    %678 = arith.addf %669, %677 : vector<32x128xf32>
    %cst_319 = arith.constant 0.0977634489 : f32
    %679 = vector.broadcast %cst_319 : f32 to vector<32x128xf32>
    %680 = arith.mulf %679, %675 : vector<32x128xf32>
    %681 = arith.addf %672, %680 : vector<32x128xf32>
    %c31_i32_320 = arith.constant 31 : i32
    %682 = tpu.dynamic_rotate %524 by %c31_i32_320 dim 0 : vector<32x128xf32>, i32 -> vector<32x128xf32>
    %cst_321 = arith.constant 0.000000e+00 : f32
    %683 = vector.broadcast %cst_321 : f32 to vector<32x128xf32>
    %684 = arith.select %546, %683, %682 : vector<32x128xi1>, vector<32x128xf32>
    %c1_i32_322 = arith.constant 1 : i32
    %685 = tpu.dynamic_rotate %684 by %c1_i32_322 dim 1 : vector<32x128xf32>, i32 -> vector<32x128xf32>
    %cst_323 = arith.constant 0.000000e+00 : f32
    %686 = vector.broadcast %cst_323 : f32 to vector<32x128xf32>
    %687 = arith.select %548, %686, %685 : vector<32x128xi1>, vector<32x128xf32>
    %cst_324 = arith.constant -0.0236868579 : f32
    %688 = vector.broadcast %cst_324 : f32 to vector<32x128xf32>
    %689 = arith.mulf %688, %687 : vector<32x128xf32>
    %690 = arith.addf %678, %689 : vector<32x128xf32>
    %cst_325 = arith.constant 0.0407902561 : f32
    %691 = vector.broadcast %cst_325 : f32 to vector<32x128xf32>
    %692 = arith.mulf %691, %687 : vector<32x128xf32>
    %693 = arith.addf %681, %692 : vector<32x128xf32>
    %cst_326 = arith.constant -0.00997001864 : f32
    %694 = vector.broadcast %cst_326 : f32 to vector<32x128xf32>
    %695 = arith.mulf %694, %684 : vector<32x128xf32>
    %696 = arith.addf %690, %695 : vector<32x128xf32>
    %cst_327 = arith.constant -0.0122816991 : f32
    %697 = vector.broadcast %cst_327 : f32 to vector<32x128xf32>
    %698 = arith.mulf %697, %684 : vector<32x128xf32>
    %699 = arith.addf %693, %698 : vector<32x128xf32>
    %c127_i32_328 = arith.constant 127 : i32
    %700 = tpu.dynamic_rotate %684 by %c127_i32_328 dim 1 : vector<32x128xf32>, i32 -> vector<32x128xf32>
    %cst_329 = arith.constant 0.000000e+00 : f32
    %701 = vector.broadcast %cst_329 : f32 to vector<32x128xf32>
    %702 = arith.select %550, %701, %700 : vector<32x128xi1>, vector<32x128xf32>
    %cst_330 = arith.constant -0.0467714667 : f32
    %703 = vector.broadcast %cst_330 : f32 to vector<32x128xf32>
    %704 = arith.mulf %703, %702 : vector<32x128xf32>
    %705 = arith.addf %696, %704 : vector<32x128xf32>
    %cst_331 = arith.constant -0.17276834 : f32
    %706 = vector.broadcast %cst_331 : f32 to vector<32x128xf32>
    %707 = arith.mulf %706, %702 : vector<32x128xf32>
    %708 = arith.addf %699, %707 : vector<32x128xf32>
    %c0_332 = arith.constant 0 : index
    %c0_333 = arith.constant 0 : index
    %c0_334 = arith.constant 0 : index
    %c0_335 = arith.constant 0 : index
    %709 = vector.load %arg8[%c0_332, %c0_333, %c0_334, %c0_335] : memref<1x2x32x128xf32, #tpu.memory_space<vmem>>, vector<1x1x32x128xf32>
    %710 = vector.shape_cast %709 : vector<1x1x32x128xf32> to vector<32x128xf32>
    %711 = vector.shape_cast %705 : vector<32x128xf32> to vector<1x1x32x128xf32>
    tpu.vector_store %arg8[%c0_332, %c0_333, %c0_334, %c0_335], %711 {strides = array<i32>} : memref<1x2x32x128xf32, #tpu.memory_space<vmem>>, vector<1x1x32x128xf32>,
    %c0_336 = arith.constant 0 : index
    %c1_337 = arith.constant 1 : index
    %c0_338 = arith.constant 0 : index
    %c0_339 = arith.constant 0 : index
    %712 = vector.load %arg8[%c0_336, %c1_337, %c0_338, %c0_339] : memref<1x2x32x128xf32, #tpu.memory_space<vmem>>, vector<1x1x32x128xf32>
    %713 = vector.shape_cast %712 : vector<1x1x32x128xf32> to vector<32x128xf32>
    %714 = vector.shape_cast %708 : vector<32x128xf32> to vector<1x1x32x128xf32>
    tpu.vector_store %arg8[%c0_336, %c1_337, %c0_338, %c0_339], %714 {strides = array<i32>} : memref<1x2x32x128xf32, #tpu.memory_space<vmem>>, vector<1x1x32x128xf32>,
    return
  }
  func.func @transform_0(%arg0: i32) -> (i32, i32, i32, i32) {
    %c0_i32 = arith.constant 0 : i32
    %c0_i32_0 = arith.constant 0 : i32
    %c0_i32_1 = arith.constant 0 : i32
    %c0_i32_2 = arith.constant 0 : i32
    return %arg0, %c0_i32, %c0_i32_0, %c0_i32_1 : i32, i32, i32, i32
  }
  func.func @transform_1(%arg0: i32) -> (i32, i32, i32, i32) {
    %c0_i32 = arith.constant 0 : i32
    %c0_i32_0 = arith.constant 0 : i32
    %c0_i32_1 = arith.constant 0 : i32
    %c0_i32_2 = arith.constant 0 : i32
    return %arg0, %c0_i32, %c0_i32_0, %c0_i32_1 : i32, i32, i32, i32
  }
  func.func @transform_2(%arg0: i32) -> (i32, i32, i32, i32) {
    %c0_i32 = arith.constant 0 : i32
    %c0_i32_0 = arith.constant 0 : i32
    %c0_i32_1 = arith.constant 0 : i32
    %c0_i32_2 = arith.constant 0 : i32
    return %arg0, %c0_i32, %c0_i32_0, %c0_i32_1 : i32, i32, i32, i32
  }
  func.func @transform_3(%arg0: i32) -> (i32, i32) {
    %c0_i32 = arith.constant 0 : i32
    %c0_i32_0 = arith.constant 0 : i32
    %c0_i32_1 = arith.constant 0 : i32
    return %c0_i32, %c0_i32_0 : i32, i32
  }
  func.func @transform_4(%arg0: i32) -> (i32, i32) {
    %c0_i32 = arith.constant 0 : i32
    %c0_i32_0 = arith.constant 0 : i32
    %c0_i32_1 = arith.constant 0 : i32
    return %c0_i32, %c0_i32_0 : i32, i32
  }
  func.func @transform_5(%arg0: i32) -> (i32, i32) {
    %c0_i32 = arith.constant 0 : i32
    %c0_i32_0 = arith.constant 0 : i32
    %c0_i32_1 = arith.constant 0 : i32
    return %c0_i32, %c0_i32_0 : i32, i32
  }
  func.func @transform_6(%arg0: i32) -> (i32, i32) {
    %c0_i32 = arith.constant 0 : i32
    %c0_i32_0 = arith.constant 0 : i32
    %c0_i32_1 = arith.constant 0 : i32
    return %c0_i32, %c0_i32_0 : i32, i32
  }
  func.func @transform_7(%arg0: i32) -> (i32, i32, i32, i32) {
    %c0_i32 = arith.constant 0 : i32
    %c0_i32_0 = arith.constant 0 : i32
    %c0_i32_1 = arith.constant 0 : i32
    %c0_i32_2 = arith.constant 0 : i32
    return %arg0, %c0_i32, %c0_i32_0, %c0_i32_1 : i32, i32, i32, i32
  }
}

</mosaic_0001>

<llo_original>
// kernel: custom-call.3
$region0: #{custom-call.3}
  %s0 = inlined_call_operand.hbm [shape: c64[2,4,32,15], index: 0, kind: input, shape index: {}]
  %s1 = inlined_call_operand.vmem [shape: f32[2,4,32,15], index: 1, kind: output, shape index: {}]
  %s2 = scalar_lea.hbm %s0, 1920
  $region1: #{custom-call.3} parent=0
    #allocation0 [shape = 's32[1]{0}', space=sflag, size = 0x4, scoped, tag = 'scoped memory for custom-call.3']
    %3 = vsyncpa [#allocation0], 0
    %s4 = sshll.u32 %s1, 4
    %s5 = int_to_ptr.vmem [resolvable:$true] %s4
    %7 = dma.hbm_to_vmem [thread:$0]  %s2, 1920, %s5, [#allocation0]
    %8 = dma.done [#allocation0], 1920
    %9 = vsyncpa [#allocation0], 1

// kernel: custom-call.2
$region0: #{custom-call.2}
  %s0 = inlined_call_operand.hbm [shape: c64[2,4,32,15], index: 0, kind: input, shape index: {}]
  %s1 = inlined_call_operand.vmem [shape: f32[2,4,32,15], index: 1, kind: output, shape index: {}]
  $region1: #{custom-call.2} parent=0
    #allocation0 [shape = 's32[1]{0}', space=sflag, size = 0x4, scoped, tag = 'scoped memory for custom-call.2']
    %2 = vsyncpa [#allocation0], 0
    %s3 = sshll.u32 %s1, 4
    %s4 = int_to_ptr.vmem [resolvable:$true] %s3
    %6 = dma.hbm_to_vmem [thread:$0]  %s0, 1920, %s4, [#allocation0]
    %7 = dma.done [#allocation0], 1920
    %8 = vsyncpa [#allocation0], 1

// kernel: custom-call.4
$region0: #{custom-call.4}
  %s0 = inlined_call_operand.hbm [shape: c64[2,4,32,32], index: 0, kind: input, shape index: {}]
  %s1 = inlined_call_operand.vmem [shape: f32[2,4,32,32], index: 1, kind: output, shape index: {}]
  $region1: #{custom-call.4} parent=0
    #allocation0 [shape = 's32[1]{0}', space=sflag, size = 0x4, scoped, tag = 'scoped memory for custom-call.4']
    %2 = vsyncpa [#allocation0], 0
    %s3 = sshll.u32 %s1, 4
    %s4 = int_to_ptr.vmem [resolvable:$true] %s3
    %6 = dma.hbm_to_vmem [thread:$0]  %s0, 4096, %s4, [#allocation0]
    %7 = dma.done [#allocation0], 4096
    %8 = vsyncpa [#allocation0], 1

// kernel: custom-call.5
$region0: #{custom-call.5}
  %s0 = inlined_call_operand.hbm [shape: c64[2,4,32,32], index: 0, kind: input, shape index: {}]
  %s1 = inlined_call_operand.vmem [shape: f32[2,4,32,32], index: 1, kind: output, shape index: {}]
  %s2 = scalar_lea.hbm %s0, 4096
  $region1: #{custom-call.5} parent=0
    #allocation0 [shape = 's32[1]{0}', space=sflag, size = 0x4, scoped, tag = 'scoped memory for custom-call.5']
    %3 = vsyncpa [#allocation0], 0
    %s4 = sshll.u32 %s1, 4
    %s5 = int_to_ptr.vmem [resolvable:$true] %s4
    %7 = dma.hbm_to_vmem [thread:$0]  %s2, 4096, %s5, [#allocation0]
    %8 = dma.done [#allocation0], 4096
    %9 = vsyncpa [#allocation0], 1

// kernel: custom-call
$region0: #{custom-call}
  %s0 = inlined_call_operand.hbm [shape: c64[2,1,32,32], index: 0, kind: input, shape index: {}]
  %s1 = inlined_call_operand.vmem [shape: f32[2,1,32,32], index: 1, kind: output, shape index: {}]
  $region1: #{custom-call} parent=0
    #allocation0 [shape = 's32[1]{0}', space=sflag, size = 0x4, scoped, tag = 'scoped memory for custom-call']
    %2 = vsyncpa [#allocation0], 0
    %s3 = sshll.u32 %s1, 4
    %s4 = int_to_ptr.vmem [resolvable:$true] %s3
    %6 = dma.hbm_to_vmem [thread:$0]  %s0, 1024, %s4, [#allocation0]
    %7 = dma.done [#allocation0], 1024
    %8 = vsyncpa [#allocation0], 1

// kernel: custom-call.1
$region0: #{custom-call.1}
  %s0 = inlined_call_operand.hbm [shape: c64[2,1,32,32], index: 0, kind: input, shape index: {}]
  %s1 = inlined_call_operand.vmem [shape: f32[2,1,32,32], index: 1, kind: output, shape index: {}]
  %s2 = scalar_lea.hbm %s0, 1024
  $region1: #{custom-call.1} parent=0
    #allocation0 [shape = 's32[1]{0}', space=sflag, size = 0x4, scoped, tag = 'scoped memory for custom-call.1']
    %3 = vsyncpa [#allocation0], 0
    %s4 = sshll.u32 %s1, 4
    %s5 = int_to_ptr.vmem [resolvable:$true] %s4
    %7 = dma.hbm_to_vmem [thread:$0]  %s2, 1024, %s5, [#allocation0]
    %8 = dma.done [#allocation0], 1024
    %9 = vsyncpa [#allocation0], 1

// kernel: custom-call.6
$region0: #{custom-call.6}
  %s0 = inlined_call_operand.vmem [shape: f32[2,1,32,32], index: 0, kind: input, shape index: {}]
  %s1 = inlined_call_operand.vmem [shape: f32[2,1,32,32], index: 1, kind: input, shape index: {}]
  %s2 = inlined_call_operand.hbm [shape: c64[2,1,32,32], index: 2, kind: output, shape index: {}]
  %s3 = scalar_lea.hbm %s2, 1024
  $region1: #{custom-call.6} parent=0
    #allocation0 [shape = 's32[1]{0}', space=sflag, size = 0x4, scoped, tag = 'scoped memory for custom-call.6']
    %4 = vsyncpa [#allocation0], 0
    %s5 = sshll.u32 %s0, 4
    %s6 = int_to_ptr.vmem [resolvable:$true] %s5
    %8 = dma.vmem_to_hbm [thread:$0]  %s6, 1024, %s2, [#allocation0]
    %9 = dma.done [#allocation0], 1024
    %10 = vsyncpa [#allocation0], 1
  $region2: #{custom-call.6} parent=0
    #allocation1 [shape = 's32[1]{0}', space=sflag, size = 0x4, scoped, tag = 'scoped memory for custom-call.6']
    %11 = vsyncpa [#allocation1], 0
    %s12 = sshll.u32 %s1, 4
    %s13 = int_to_ptr.vmem [resolvable:$true] %s12
    %15 = dma.vmem_to_hbm [thread:$0]  %s13, 1024, %s3, [#allocation1]
    %16 = dma.done [#allocation1], 1024
    %17 = vsyncpa [#allocation1], 1

// kernel: forward.1
$region0: #{forward.1}
  #allocation0 [shape = 'u32[]', space=smem, size = 0x4, offset = 0x4, fixed_abs, tag = 'smem constant byte address 0x4 - core index']
  #allocation1 [shape = 'u32[144,128]{1,0:T(1,128)}', space=vmem, size = 0x12000, scoped, tag = 'internal scratch']
  %s0 = inlined_call_operand.vmem [shape: f32[2,2,32,128], index: 0, kind: input, shape index: {}]
  %s1 = inlined_call_operand.vmem [shape: bf16[2,2,32,64], index: 1, kind: input, shape index: {}]
  %s2 = inlined_call_operand.vmem [shape: f32[2,2,32,128], index: 2, kind: input, shape index: {}]
  %s3 = inlined_call_operand.vmem [shape: bf16[64,256], index: 3, kind: input, shape index: {}]
  %s4 = inlined_call_operand.vmem [shape: bf16[64,32], index: 4, kind: input, shape index: {}]
  %s5 = inlined_call_operand.vmem [shape: bf16[128,256], index: 5, kind: input, shape index: {}]
  %s6 = inlined_call_operand.vmem [shape: bf16[128,128], index: 6, kind: input, shape index: {}]
  %s7 = inlined_call_operand.vmem [shape: f32[2,2,32,128], index: 7, kind: output, shape index: {}]
  %s8 = sld [smem:[#allocation0]]
  $region61: #{forward.1} parent=0
    _
  %s10 = ssub.s32 1, %s8
  %s11 = scalar_select 0, %s10, %s8
  loop: start=0, step=1, limit=4
  $region2: #{forward.1} parent=0 // loop_pre_header
    _
  $region3: #{forward.1} parent=0 // loop_header
    %s13 = sphi 0, %s17
    %p14 = scmp.ge.s32.totalorder %s13, 4
    %s23 = sphi 0, %s25
    %s26 = sphi 0, %s23
    %s27 = sphi 0, %s26
    %s43 = sphi 0, %s27
    %s49 = sphi 0, %s51
    %s52 = sphi 0, %s49
    %s53 = sphi 0, %s52
    %s69 = sphi 0, %s53
    %s75 = sphi 0, %s77
    %s78 = sphi 0, %s75
    %s79 = sphi 0, %s78
    %s95 = sphi 0, %s79
    %s99 = sphi 0, %s99
    %s101 = sphi 0, %s99
    %s102 = sphi 0, %s101
    %s116 = sphi 0, %s102
    %s120 = sphi 0, %s120
    %s122 = sphi 0, %s120
    %s123 = sphi 0, %s122
    %s137 = sphi 0, %s123
    %s141 = sphi 0, %s141
    %s143 = sphi 0, %s141
    %s144 = sphi 0, %s143
    %s158 = sphi 0, %s144
    %s162 = sphi 0, %s162
    %s164 = sphi 0, %s162
    %s165 = sphi 0, %s164
    %s179 = sphi 0, %s165
    %s185 = sphi 0, %s187
    %s188 = sphi 0, %s185
    %s189 = sphi 0, %s188
    %s205 = sphi 0, %s189
  $region4: #{forward.1} parent=0 // loop_header_branch
    %16 = sbr.rel (%p14) target = $region8
  $region5: #{forward.1} parent=0 // loop_body
    %s18 = ssub.s32 %s13, 1
    %s19 = ssub.s32 %s13, 2
    %s20 = sadd.s32 %s13, 1
    %s21 = ssub.s32 %s13, %s20
    %p22 = scmp.eq.s32.totalorder %s21, 0
    %s24 = sadd.s32 %s23, 1
    %s25 = scalar_select %p22, %s23, %s24
    %p28 = pneg %p22
    %p29 = scmp.eq.s32.totalorder %s13, 1
    %p30 = por %p28, %p29
    %p31 = scmp.ne.s32.totalorder %s23, %s26
    %p32 = scmp.eq.s32.totalorder %s13, 0
    %p33 = por %p31, %p32
    %p34 = scmp.ne.s32.totalorder %s23, %s26
    %p35 = scmp.eq.s32.totalorder %s18, 1
    %p36 = por %p34, %p35
    %p37 = scmp.ne.s32.totalorder %s26, %s27
    %p38 = scmp.eq.s32.totalorder %s18, 0
    %p39 = por %p37, %p38
    %p40 = scmp.ne.s32.totalorder %s26, %s27
    %p41 = scmp.eq.s32.totalorder %s19, 1
    %p42 = por %p40, %p41
    %p44 = scmp.ne.s32.totalorder %s27, %s43
    %p45 = scmp.eq.s32.totalorder %s19, 0
    %p46 = por %p44, %p45
    %s47 = ssub.s32 %s13, %s20
    %p48 = scmp.eq.s32.totalorder %s47, 0
    %s50 = sadd.s32 %s49, 1
    %s51 = scalar_select %p48, %s49, %s50
    %p54 = pneg %p48
    %p55 = scmp.eq.s32.totalorder %s13, 1
    %p56 = por %p54, %p55
    %p57 = scmp.ne.s32.totalorder %s49, %s52
    %p58 = scmp.eq.s32.totalorder %s13, 0
    %p59 = por %p57, %p58
    %p60 = scmp.ne.s32.totalorder %s49, %s52
    %p61 = scmp.eq.s32.totalorder %s18, 1
    %p62 = por %p60, %p61
    %p63 = scmp.ne.s32.totalorder %s52, %s53
    %p64 = scmp.eq.s32.totalorder %s18, 0
    %p65 = por %p63, %p64
    %p66 = scmp.ne.s32.totalorder %s52, %s53
    %p67 = scmp.eq.s32.totalorder %s19, 1
    %p68 = por %p66, %p67
    %p70 = scmp.ne.s32.totalorder %s53, %s69
    %p71 = scmp.eq.s32.totalorder %s19, 0
    %p72 = por %p70, %p71
    %s73 = ssub.s32 %s13, %s20
    %p74 = scmp.eq.s32.totalorder %s73, 0
    %s76 = sadd.s32 %s75, 1
    %s77 = scalar_select %p74, %s75, %s76
    %p80 = pneg %p74
    %p81 = scmp.eq.s32.totalorder %s13, 1
    %p82 = por %p80, %p81
    %p83 = scmp.ne.s32.totalorder %s75, %s78
    %p84 = scmp.eq.s32.totalorder %s13, 0
    %p85 = por %p83, %p84
    %p86 = scmp.ne.s32.totalorder %s75, %s78
    %p87 = scmp.eq.s32.totalorder %s18, 1
    %p88 = por %p86, %p87
    %p89 = scmp.ne.s32.totalorder %s78, %s79
    %p90 = scmp.eq.s32.totalorder %s18, 0
    %p91 = por %p89, %p90
    %p92 = scmp.ne.s32.totalorder %s78, %s79
    %p93 = scmp.eq.s32.totalorder %s19, 1
    %p94 = por %p92, %p93
    %p96 = scmp.ne.s32.totalorder %s79, %s95
    %p97 = scmp.eq.s32.totalorder %s19, 0
    %p98 = por %p96, %p97
    %s100 = sadd.s32 %s99, 1
    %p103 = scmp.eq.s32.totalorder %s13, 1
    %p104 = scmp.ne.s32.totalorder %s99, %s101
    %p105 = scmp.eq.s32.totalorder %s13, 0
    %p106 = por %p104, %p105
    %p107 = scmp.ne.s32.totalorder %s99, %s101
    %p108 = scmp.eq.s32.totalorder %s18, 1
    %p109 = por %p107, %p108
    %p110 = scmp.ne.s32.totalorder %s101, %s102
    %p111 = scmp.eq.s32.totalorder %s18, 0
    %p112 = por %p110, %p111
    %p113 = scmp.ne.s32.totalorder %s101, %s102
    %p114 = scmp.eq.s32.totalorder %s19, 1
    %p115 = por %p113, %p114
    %p117 = scmp.ne.s32.totalorder %s102, %s116
    %p118 = scmp.eq.s32.totalorder %s19, 0
    %p119 = por %p117, %p118
    %s121 = sadd.s32 %s120, 1
    %p124 = scmp.eq.s32.totalorder %s13, 1
    %p125 = scmp.ne.s32.totalorder %s120, %s122
    %p126 = scmp.eq.s32.totalorder %s13, 0
    %p127 = por %p125, %p126
    %p128 = scmp.ne.s32.totalorder %s120, %s122
    %p129 = scmp.eq.s32.totalorder %s18, 1
    %p130 = por %p128, %p129
    %p131 = scmp.ne.s32.totalorder %s122, %s123
    %p132 = scmp.eq.s32.totalorder %s18, 0
    %p133 = por %p131, %p132
    %p134 = scmp.ne.s32.totalorder %s122, %s123
    %p135 = scmp.eq.s32.totalorder %s19, 1
    %p136 = por %p134, %p135
    %p138 = scmp.ne.s32.totalorder %s123, %s137
    %p139 = scmp.eq.s32.totalorder %s19, 0
    %p140 = por %p138, %p139
    %s142 = sadd.s32 %s141, 1
    %p145 = scmp.eq.s32.totalorder %s13, 1
    %p146 = scmp.ne.s32.totalorder %s141, %s143
    %p147 = scmp.eq.s32.totalorder %s13, 0
    %p148 = por %p146, %p147
    %p149 = scmp.ne.s32.totalorder %s141, %s143
    %p150 = scmp.eq.s32.totalorder %s18, 1
    %p151 = por %p149, %p150
    %p152 = scmp.ne.s32.totalorder %s143, %s144
    %p153 = scmp.eq.s32.totalorder %s18, 0
    %p154 = por %p152, %p153
    %p155 = scmp.ne.s32.totalorder %s143, %s144
    %p156 = scmp.eq.s32.totalorder %s19, 1
    %p157 = por %p155, %p156
    %p159 = scmp.ne.s32.totalorder %s144, %s158
    %p160 = scmp.eq.s32.totalorder %s19, 0
    %p161 = por %p159, %p160
    %s163 = sadd.s32 %s162, 1
    %p166 = scmp.eq.s32.totalorder %s13, 1
    %p167 = scmp.ne.s32.totalorder %s162, %s164
    %p168 = scmp.eq.s32.totalorder %s13, 0
    %p169 = por %p167, %p168
    %p170 = scmp.ne.s32.totalorder %s162, %s164
    %p171 = scmp.eq.s32.totalorder %s18, 1
    %p172 = por %p170, %p171
    %p173 = scmp.ne.s32.totalorder %s164, %s165
    %p174 = scmp.eq.s32.totalorder %s18, 0
    %p175 = por %p173, %p174
    %p176 = scmp.ne.s32.totalorder %s164, %s165
    %p177 = scmp.eq.s32.totalorder %s19, 1
    %p178 = por %p176, %p177
    %p180 = scmp.ne.s32.totalorder %s165, %s179
    %p181 = scmp.eq.s32.totalorder %s19, 0
    %p182 = por %p180, %p181
    %s183 = ssub.s32 %s13, %s20
    %p184 = scmp.eq.s32.totalorder %s183, 0
    %s186 = sadd.s32 %s185, 1
    %s187 = scalar_select %p184, %s185, %s186
    %p190 = pneg %p184
    %p191 = scmp.eq.s32.totalorder %s13, 1
    %p192 = por %p190, %p191
    %p193 = scmp.ne.s32.totalorder %s185, %s188
    %p194 = scmp.eq.s32.totalorder %s13, 0
    %p195 = por %p193, %p194
    %p196 = scmp.ne.s32.totalorder %s185, %s188
    %p197 = scmp.eq.s32.totalorder %s18, 1
    %p198 = por %p196, %p197
    %p199 = scmp.ne.s32.totalorder %s188, %s189
    %p200 = scmp.eq.s32.totalorder %s18, 0
    %p201 = por %p199, %p200
    %p202 = scmp.ne.s32.totalorder %s188, %s189
    %p203 = scmp.eq.s32.totalorder %s19, 1
    %p204 = por %p202, %p203
    %p206 = scmp.ne.s32.totalorder %s189, %s205
    %p207 = scmp.eq.s32.totalorder %s19, 0
    %p208 = por %p206, %p207
    %p209 = scmp.le.s32.totalorder 1, %s13
    %p210 = scmp.lt.s32.totalorder %s13, 3
    %p211 = pnand %p209, %p210
    %p212 = pneg %p211
    // Predicated region
    $region9: #{forward.1} parent=5 // pred_check
      _
    $region10: #{forward.1} parent=5 // pred_check_branch
      %214 = sbr.rel (%p211) target = $region12
    $region11: #{forward.1} parent=5 // pred_region
      %s215 = ssub.s32 %s13, 1
      // Predicated region
      $region13: #{forward.1} parent=11 // pred_check
        %p216 = pneg %p112
      $region14: #{forward.1} parent=11 // pred_check_branch
        %218 = sbr.rel (%p216) target = $region16
      $region15: #{forward.1} parent=11 // pred_region
        _
      $region16: #{forward.1} parent=11 // pred_fallthru
        _
      // Predicated region
      $region17: #{forward.1} parent=11 // pred_check
        %p219 = pneg %p133
      $region18: #{forward.1} parent=11 // pred_check_branch
        %221 = sbr.rel (%p219) target = $region20
      $region19: #{forward.1} parent=11 // pred_region
        _
      $region20: #{forward.1} parent=11 // pred_fallthru
        _
      // Predicated region
      $region21: #{forward.1} parent=11 // pred_check
        %p222 = pneg %p154
      $region22: #{forward.1} parent=11 // pred_check_branch
        %224 = sbr.rel (%p222) target = $region24
      $region23: #{forward.1} parent=11 // pred_region
        _
      $region24: #{forward.1} parent=11 // pred_fallthru
        _
      // Predicated region
      $region25: #{forward.1} parent=11 // pred_check
        %p225 = pneg %p175
      $region26: #{forward.1} parent=11 // pred_check_branch
        %227 = sbr.rel (%p225) target = $region28
      $region27: #{forward.1} parent=11 // pred_region
        _
      $region28: #{forward.1} parent=11 // pred_fallthru
        _
    $region12: #{forward.1} parent=5 // pred_fallthru
      _
    %p228 = scmp.lt.s32.totalorder %s13, 2
    // Predicated region
    $region29: #{forward.1} parent=5 // pred_check
      %p229 = pneg %p228
    $region30: #{forward.1} parent=5 // pred_check_branch
      %231 = sbr.rel (%p229) target = $region32
    $region31: #{forward.1} parent=5 // pred_region
      // Predicated region
      $region33: #{forward.1} parent=31 // pred_check
        %p232 = pneg %p33
      $region34: #{forward.1} parent=31 // pred_check_branch
        %234 = sbr.rel (%p232) target = $region36
      $region35: #{forward.1} parent=31 // pred_region
        %p235 = scmp.lt.s32.totalorder %s13, 1
        %s236 = scalar_select %p235, %s13, 1
        %s237 = smul.addr %s236, 8
        %s238 = smul.addr %s237, 8
        %s239 = scalar_lea.vmem %s0, %s238
      $region36: #{forward.1} parent=31 // pred_fallthru
        _
      // Predicated region
      $region37: #{forward.1} parent=31 // pred_check
        %p240 = pneg %p59
      $region38: #{forward.1} parent=31 // pred_check_branch
        %242 = sbr.rel (%p240) target = $region40
      $region39: #{forward.1} parent=31 // pred_region
        %p243 = scmp.lt.s32.totalorder %s13, 1
        %s244 = scalar_select %p243, %s13, 1
        %s245 = smul.addr %s244, 8
        %s246 = smul.addr %s245, 4
        %s247 = scalar_lea.vmem %s1, %s246
      $region40: #{forward.1} parent=31 // pred_fallthru
        _
      // Predicated region
      $region41: #{forward.1} parent=31 // pred_check
        %p248 = pneg %p85
      $region42: #{forward.1} parent=31 // pred_check_branch
        %250 = sbr.rel (%p248) target = $region44
      $region43: #{forward.1} parent=31 // pred_region
        %p251 = scmp.lt.s32.totalorder %s13, 1
        %s252 = scalar_select %p251, %s13, 1
        %s253 = smul.addr %s252, 8
        %s254 = smul.addr %s253, 8
        %s255 = scalar_lea.vmem %s2, %s254
      $region44: #{forward.1} parent=31 // pred_fallthru
        _
    $region32: #{forward.1} parent=5 // pred_fallthru
      _
    %p256 = scmp.le.s32.totalorder 1, %s13
    %p257 = scmp.lt.s32.totalorder %s13, 3
    %p258 = pnand %p256, %p257
    %p259 = pneg %p258
    // Predicated region
    $region45: #{forward.1} parent=5 // pred_check
      _
    $region46: #{forward.1} parent=5 // pred_check_branch
      %261 = sbr.rel (%p258) target = $region48
    $region47: #{forward.1} parent=5 // pred_region
      %s262 = ssub.s32 %s13, 1
      %p263 = scmp.lt.s32.totalorder %s18, 1
      %s264 = scalar_select %p263, %s18, 1
      %s265 = smul.addr %s264, 8
      %s266 = smul.addr %s265, 8
      %s267 = scalar_lea.vmem %s0, %s266
      %p268 = pneg %p39
      %p269 = pneg %p36
      %p270 = scmp.lt.s32.totalorder %s18, 1
      %s271 = scalar_select %p270, %s18, 1
      %s272 = smul.addr %s271, 8
      %s273 = smul.addr %s272, 4
      %s274 = scalar_lea.vmem %s1, %s273
      %p275 = pneg %p65
      %p276 = pneg %p62
      %p277 = scmp.lt.s32.totalorder %s18, 1
      %s278 = scalar_select %p277, %s18, 1
      %s279 = smul.addr %s278, 8
      %s280 = smul.addr %s279, 8
      %s281 = scalar_lea.vmem %s2, %s280
      %p282 = pneg %p91
      %p283 = pneg %p88
      %p284 = pneg %p112
      %p285 = pneg %p109
      %p286 = pneg %p133
      %p287 = pneg %p130
      %p288 = pneg %p154
      %p289 = pneg %p151
      %p290 = pneg %p175
      %p291 = pneg %p172
      %p292 = pneg %p201
      %p293 = pneg %p198
      %p294 = scmp.lt.s32.totalorder %s18, 1
      %s295 = scalar_select %p294, %s18, 1
      %s296 = smul.addr %s295, 8
      %s297 = smul.addr %s296, 8
      %s298 = scalar_lea.vmem %s7, %s297
      %p299 = scmp.lt.s32.totalorder %s18, 1
      %s300 = scalar_select %p299, %s18, 1
      %s301 = smul.addr %s300, 8
      %s302 = smul.addr %s301, 8
      %s303 = scalar_lea.vmem %s0, %s302
      %p304 = scmp.lt.s32.totalorder %s18, 1
      %s305 = scalar_select %p304, %s18, 1
      %s306 = smul.addr %s305, 8
      %s307 = smul.addr %s306, 4
      %s308 = scalar_lea.vmem %s1, %s307
      %p309 = scmp.lt.s32.totalorder %s18, 1
      %s310 = scalar_select %p309, %s18, 1
      %s311 = smul.addr %s310, 8
      %s312 = smul.addr %s311, 8
      %s313 = scalar_lea.vmem %s2, %s312
      %p314 = scmp.lt.s32.totalorder %s18, 1
      %s315 = scalar_select %p314, %s18, 1
      %s316 = smul.addr %s315, 8
      %s317 = smul.addr %s316, 8
      %s318 = scalar_lea.vmem %s7, %s317
      %v320 = vld [vmem:[%s308] sm:$0xf]
      %v321 = vld [vmem:[%s308 + $0x4] sm:$0xf]
      %v322 = vld [vmem:[%s308 + $0x8] sm:$0xf]
      %v323 = vld [vmem:[%s308 + $0xc] sm:$0xf]
      %v324 = vld [vmem:[%s3] sm:$0xff]
      %v325 = vld [vmem:[%s3 + $0x8] sm:$0xff]
      %v326 = vld [vmem:[%s3 + $0x10] sm:$0xff]
      %v327 = vld [vmem:[%s3 + $0x18] sm:$0xff]
      %v328 = vld [vmem:[%s3 + $0x20] sm:$0xff]
      %v329 = vld [vmem:[%s3 + $0x28] sm:$0xff]
      %v330 = vld [vmem:[%s3 + $0x30] sm:$0xff]
      %v331 = vld [vmem:[%s3 + $0x38] sm:$0xff]
      %v336 = vunpack.c.l.b16 %v320
      %v337 = vunpack.c.l.b16 %v321
      %v338 = vunpack.c.l.b16 %v322
      %v339 = vunpack.c.l.b16 %v323
      %v340 = vpack.c.b16 %v337, %v336
      %v341 = vpack.c.b16 %v339, %v338
      %v350 = vunpack.c.l.b16 %v324
      %v351 = vunpack.c.h.b16 %v324
      %v352 = vunpack.c.l.b16 %v325
      %v353 = vunpack.c.h.b16 %v325
      %v354 = vunpack.c.l.b16 %v326
      %v355 = vunpack.c.h.b16 %v326
      %v356 = vunpack.c.l.b16 %v327
      %v357 = vunpack.c.h.b16 %v327
      %v358 = vunpack.c.l.b16 %v328
      %v359 = vunpack.c.h.b16 %v328
      %v360 = vunpack.c.l.b16 %v329
      %v361 = vunpack.c.h.b16 %v329
      %v362 = vunpack.c.l.b16 %v330
      %v363 = vunpack.c.h.b16 %v330
      %v364 = vunpack.c.l.b16 %v331
      %v365 = vunpack.c.h.b16 %v331
      %v366 = vpack.c.b16 %v352, %v350
      %v367 = vpack.c.b16 %v353, %v351
      %v368 = vpack.c.b16 %v356, %v354
      %v369 = vpack.c.b16 %v357, %v355
      %v370 = vpack.c.b16 %v360, %v358
      %v371 = vpack.c.b16 %v361, %v359
      %v372 = vpack.c.b16 %v364, %v362
      %v373 = vpack.c.b16 %v365, %v363
      %vm382 = vcmask 523264
      %v384 = vsel %vm382, %v340, 0
      %v387 = vsel %vm382, %v341, 0
      %389 = vmatprep.subr.bf16.mxu0 0
      %390 = vmatpush1.bf16.msra.mxu0 0
      %391 = vmatprep.subr.bf16.mxu0 0
      %392 = vmatpush1.bf16.msra.mxu0 0
      %393 = vmatprep.subr.bf16.mxu0 0
      %394 = vmatpush1.bf16.msra.mxu0 0
      %395 = vmatprep.subr.bf16.mxu0 0
      %396 = vmatpush1.bf16.msra.mxu0 0
      %397 = vmatprep.subr.bf16.mxu0 %v373
      %398 = vmatpush1.bf16.msra.mxu0 %v372
      %399 = vmatprep.subr.bf16.mxu0 %v371
      %400 = vmatpush1.bf16.msra.mxu0 %v370
      %401 = vmatprep.subr.bf16.mxu0 %v369
      %402 = vmatpush1.bf16.msra.mxu0 %v368
      %403 = vmatprep.subr.bf16.mxu0 %v367
      %404 = vmatpush1.bf16.msra.mxu0 %v366
      %405 = vmatprep.subr.bf16.mxu0 0
      %406 = vmatpush2.bf16.msra.mxu0 0
      %407 = vmatprep.subr.bf16.mxu0 0
      %408 = vmatpush2.bf16.msra.mxu0 0
      %409 = vmatprep.subr.bf16.mxu0 0
      %410 = vmatpush2.bf16.msra.mxu0 0
      %411 = vmatprep.subr.bf16.mxu0 0
      %412 = vmatpush2.bf16.msra.mxu0 0
      %413 = vmatprep.subr.bf16.mxu0 0
      %414 = vmatpush2.bf16.msra.mxu0 0
      %415 = vmatprep.subr.bf16.mxu0 0
      %416 = vmatpush2.bf16.msra.mxu0 0
      %417 = vmatprep.subr.bf16.mxu0 0
      %418 = vmatpush2.bf16.msra.mxu0 0
      %419 = vmatprep.subr.bf16.mxu0 0
      %420 = vmatpush2.bf16.msra.mxu0 0
      %421 = vmatprep.mubr.bf16.mxu0 0
      %422 = vmatmul.mubr.bf16.gmra.mxu0 %v384
      %v423 = vpop.f32.mrf.mxu0
      %v424 = vadd.f32 0.0, %v423
      %v425 = vpop.f32.mrf.mxu0
      %v426 = vadd.f32 0.0, %v425
      %v427 = vpop.f32.mrf.mxu0
      %v428 = vadd.f32 0.0, %v427
      %v429 = vpop.f32.mrf.mxu0
      %v430 = vadd.f32 0.0, %v429
      %431 = vmatprep.mubr.bf16.mxu0 0
      %432 = vmatmul.mubr.bf16.gmra.mxu0 %v387
      %v433 = vpop.f32.mrf.mxu0
      %v434 = vadd.f32 0.0, %v433
      %v435 = vpop.f32.mrf.mxu0
      %v436 = vadd.f32 0.0, %v435
      %v437 = vpop.f32.mrf.mxu0
      %v438 = vadd.f32 0.0, %v437
      %v439 = vpop.f32.mrf.mxu0
      %v440 = vadd.f32 0.0, %v439
      %441 = vdwg.mxu0
      %s442 = scalar_lea.vmem %s308, 16
      %v443 = vld [vmem:[%s442] sm:$0xf]
      %v444 = vld [vmem:[%s442 + $0x4] sm:$0xf]
      %v445 = vld [vmem:[%s442 + $0x8] sm:$0xf]
      %v446 = vld [vmem:[%s442 + $0xc] sm:$0xf]
      %v451 = vunpack.c.l.b16 %v443
      %v452 = vunpack.c.l.b16 %v444
      %v453 = vunpack.c.l.b16 %v445
      %v454 = vunpack.c.l.b16 %v446
      %v455 = vpack.c.b16 %v452, %v451
      %v456 = vpack.c.b16 %v454, %v453
      %v458 = vsel %vm382, %v455, 0
      %v461 = vsel %vm382, %v456, 0
      %463 = vmatprep.subr.bf16.mxu0 0
      %464 = vmatpush1.bf16.msra.mxu0 0
      %465 = vmatprep.subr.bf16.mxu0 0
      %466 = vmatpush1.bf16.msra.mxu0 0
      %467 = vmatprep.subr.bf16.mxu0 0
      %468 = vmatpush1.bf16.msra.mxu0 0
      %469 = vmatprep.subr.bf16.mxu0 0
      %470 = vmatpush1.bf16.msra.mxu0 0
      %471 = vmatprep.subr.bf16.mxu0 %v373
      %472 = vmatpush1.bf16.msra.mxu0 %v372
      %473 = vmatprep.subr.bf16.mxu0 %v371
      %474 = vmatpush1.bf16.msra.mxu0 %v370
      %475 = vmatprep.subr.bf16.mxu0 %v369
      %476 = vmatpush1.bf16.msra.mxu0 %v368
      %477 = vmatprep.subr.bf16.mxu0 %v367
      %478 = vmatpush1.bf16.msra.mxu0 %v366
      %479 = vmatprep.subr.bf16.mxu0 0
      %480 = vmatpush2.bf16.msra.mxu0 0
      %481 = vmatprep.subr.bf16.mxu0 0
      %482 = vmatpush2.bf16.msra.mxu0 0
      %483 = vmatprep.subr.bf16.mxu0 0
      %484 = vmatpush2.bf16.msra.mxu0 0
      %485 = vmatprep.subr.bf16.mxu0 0
      %486 = vmatpush2.bf16.msra.mxu0 0
      %487 = vmatprep.subr.bf16.mxu0 0
      %488 = vmatpush2.bf16.msra.mxu0 0
      %489 = vmatprep.subr.bf16.mxu0 0
      %490 = vmatpush2.bf16.msra.mxu0 0
      %491 = vmatprep.subr.bf16.mxu0 0
      %492 = vmatpush2.bf16.msra.mxu0 0
      %493 = vmatprep.subr.bf16.mxu0 0
      %494 = vmatpush2.bf16.msra.mxu0 0
      %495 = vmatprep.mubr.bf16.mxu0 0
      %496 = vmatmul.mubr.bf16.gmra.mxu0 %v458
      %v497 = vpop.f32.mrf.mxu0
      %v498 = vadd.f32 0.0, %v497
      %v499 = vpop.f32.mrf.mxu0
      %v500 = vadd.f32 0.0, %v499
      %v501 = vpop.f32.mrf.mxu0
      %v502 = vadd.f32 0.0, %v501
      %v503 = vpop.f32.mrf.mxu0
      %v504 = vadd.f32 0.0, %v503
      %505 = vmatprep.mubr.bf16.mxu0 0
      %506 = vmatmul.mubr.bf16.gmra.mxu0 %v461
      %v507 = vpop.f32.mrf.mxu0
      %v508 = vadd.f32 0.0, %v507
      %v509 = vpop.f32.mrf.mxu0
      %v510 = vadd.f32 0.0, %v509
      %v511 = vpop.f32.mrf.mxu0
      %v512 = vadd.f32 0.0, %v511
      %v513 = vpop.f32.mrf.mxu0
      %v514 = vadd.f32 0.0, %v513
      %515 = vdwg.mxu0
      %v516 = vsub.f32 %v424, %v500
      %v517 = vsub.f32 %v428, %v504
      %v518 = vsub.f32 %v434, %v510
      %v519 = vsub.f32 %v438, %v514
      %v520 = vadd.f32 %v426, %v498
      %v521 = vadd.f32 %v430, %v502
      %v522 = vadd.f32 %v436, %v508
      %v523 = vadd.f32 %v440, %v512
      %v524 = vld [vmem:[%s4] sm:$0xf]
      %v525 = vld [vmem:[%s4 + $0x4] sm:$0xf]
      %v526 = vld [vmem:[%s4 + $0x8] sm:$0xf]
      %v527 = vld [vmem:[%s4 + $0xc] sm:$0xf]
      %v528 = vld [vmem:[%s4 + $0x10] sm:$0xf]
      %v529 = vld [vmem:[%s4 + $0x14] sm:$0xf]
      %v530 = vld [vmem:[%s4 + $0x18] sm:$0xf]
      %v531 = vld [vmem:[%s4 + $0x1c] sm:$0xf]
      %v540 = vunpack.c.l.b16 %v524
      %v541 = vunpack.c.l.b16 %v525
      %v542 = vunpack.c.l.b16 %v526
      %v543 = vunpack.c.l.b16 %v527
      %v544 = vunpack.c.l.b16 %v528
      %v545 = vunpack.c.l.b16 %v529
      %v546 = vunpack.c.l.b16 %v530
      %v547 = vunpack.c.l.b16 %v531
      %v548 = vpack.c.b16 %v541, %v540
      %v549 = vpack.c.b16 %v543, %v542
      %v550 = vpack.c.b16 %v545, %v544
      %v551 = vpack.c.b16 %v547, %v546
      %vm552 = vcmask 261120
      %v554 = vsel %vm552, %v548, 0
      %v557 = vsel %vm552, %v549, 0
      %v560 = vsel %vm552, %v550, 0
      %v563 = vsel %vm552, %v551, 0
      %565 = vmatprep.subr.mxu0 0.0
      %566 = vmatpush1.msra.mxu0 0.0
      %567 = vmatprep.subr.mxu0 0.0
      %568 = vmatpush1.msra.mxu0 0.0
      %569 = vmatprep.subr.mxu0 0.0
      %570 = vmatpush1.msra.mxu0 0.0
      %571 = vmatprep.subr.mxu0 0.0
      %572 = vmatpush1.msra.mxu0 0.0
      %573 = vmatprep.subr.mxu0 0.0
      %574 = vmatpush1.msra.mxu0 0.0
      %575 = vmatprep.subr.mxu0 0.0
      %576 = vmatpush1.msra.mxu0 0.0
      %577 = vmatprep.subr.mxu0 0.0
      %578 = vmatpush1.msra.mxu0 0.0
      %579 = vmatprep.subr.mxu0 0.0
      %580 = vmatpush1.msra.mxu0 0.0
      %581 = vmatprep.subr.mxu0 0.0
      %582 = vmatpush1.msra.mxu0 0.0
      %583 = vmatprep.subr.mxu0 0.0
      %584 = vmatpush1.msra.mxu0 0.0
      %585 = vmatprep.subr.mxu0 0.0
      %586 = vmatpush1.msra.mxu0 0.0
      %587 = vmatprep.subr.mxu0 0.0
      %588 = vmatpush1.msra.mxu0 0.0
      %589 = vmatprep.subr.mxu0 0.0
      %590 = vmatpush1.msra.mxu0 %v519
      %591 = vmatprep.subr.mxu0 0.0
      %592 = vmatpush1.msra.mxu0 %v518
      %593 = vmatprep.subr.mxu0 0.0
      %594 = vmatpush1.msra.mxu0 %v517
      %595 = vmatprep.subr.mxu0 0.0
      %596 = vmatpush1.msra.mxu0 %v516
      %597 = vmatprep.subr.mxu0 0.0
      %598 = vmatpush2.msra.mxu0 0.0
      %599 = vmatprep.subr.mxu0 0.0
      %600 = vmatpush2.msra.mxu0 0.0
      %601 = vmatprep.subr.mxu0 0.0
      %602 = vmatpush2.msra.mxu0 0.0
      %603 = vmatprep.subr.mxu0 0.0
      %604 = vmatpush2.msra.mxu0 0.0
      %605 = vmatprep.subr.mxu0 0.0
      %606 = vmatpush2.msra.mxu0 0.0
      %607 = vmatprep.subr.mxu0 0.0
      %608 = vmatpush2.msra.mxu0 0.0
      %609 = vmatprep.subr.mxu0 0.0
      %610 = vmatpush2.msra.mxu0 0.0
      %611 = vmatprep.subr.mxu0 0.0
      %612 = vmatpush2.msra.mxu0 0.0
      %613 = vmatprep.subr.mxu0 0.0
      %614 = vmatpush2.msra.mxu0 0.0
      %615 = vmatprep.subr.mxu0 0.0
      %616 = vmatpush2.msra.mxu0 0.0
      %617 = vmatprep.subr.mxu0 0.0
      %618 = vmatpush2.msra.mxu0 0.0
      %619 = vmatprep.subr.mxu0 0.0
      %620 = vmatpush2.msra.mxu0 0.0
      %621 = vmatprep.subr.mxu0 0.0
      %622 = vmatpush2.msra.mxu0 0.0
      %623 = vmatprep.subr.mxu0 0.0
      %624 = vmatpush2.msra.mxu0 0.0
      %625 = vmatprep.subr.mxu0 0.0
      %626 = vmatpush2.msra.mxu0 0.0
      %627 = vmatprep.subr.mxu0 0.0
      %628 = vmatpush2.msra.mxu0 0.0
      %629 = vmatprep.mubr.bf16.mxu0 0
      %630 = vmatmul.mubr.bf16.gmra.mxu0 %v554
      %v631 = vpop.f32.mrf.mxu0
      %v632 = vadd.f32 0.0, %v631
      %v633 = vpop.f32.mrf.mxu0
      %v634 = vpop.f32.mrf.mxu0
      %v635 = vadd.f32 0.0, %v634
      %v636 = vpop.f32.mrf.mxu0
      %637 = vmatprep.mubr.bf16.mxu0 0
      %638 = vmatmul.mubr.bf16.gmra.mxu0 %v557
      %v639 = vpop.f32.mrf.mxu0
      %v640 = vadd.f32 0.0, %v639
      %v641 = vpop.f32.mrf.mxu0
      %v642 = vpop.f32.mrf.mxu0
      %v643 = vadd.f32 0.0, %v642
      %v644 = vpop.f32.mrf.mxu0
      %645 = vmatprep.mubr.bf16.mxu0 0
      %646 = vmatmul.mubr.bf16.gmra.mxu0 %v560
      %v647 = vpop.f32.mrf.mxu0
      %v648 = vadd.f32 0.0, %v647
      %v649 = vpop.f32.mrf.mxu0
      %v650 = vpop.f32.mrf.mxu0
      %v651 = vadd.f32 0.0, %v650
      %v652 = vpop.f32.mrf.mxu0
      %653 = vmatprep.mubr.bf16.mxu0 0
      %654 = vmatmul.mubr.bf16.gmra.mxu0 %v563
      %v655 = vpop.f32.mrf.mxu0
      %v656 = vadd.f32 0.0, %v655
      %v657 = vpop.f32.mrf.mxu0
      %v658 = vpop.f32.mrf.mxu0
      %v659 = vadd.f32 0.0, %v658
      %v660 = vpop.f32.mrf.mxu0
      %661 = vdwg.mxu0
      %662 = vmatprep.subr.mxu0 0.0
      %663 = vmatpush1.msra.mxu0 0.0
      %664 = vmatprep.subr.mxu0 0.0
      %665 = vmatpush1.msra.mxu0 0.0
      %666 = vmatprep.subr.mxu0 0.0
      %667 = vmatpush1.msra.mxu0 0.0
      %668 = vmatprep.subr.mxu0 0.0
      %669 = vmatpush1.msra.mxu0 0.0
      %670 = vmatprep.subr.mxu0 0.0
      %671 = vmatpush1.msra.mxu0 0.0
      %672 = vmatprep.subr.mxu0 0.0
      %673 = vmatpush1.msra.mxu0 0.0
      %674 = vmatprep.subr.mxu0 0.0
      %675 = vmatpush1.msra.mxu0 0.0
      %676 = vmatprep.subr.mxu0 0.0
      %677 = vmatpush1.msra.mxu0 0.0
      %678 = vmatprep.subr.mxu0 0.0
      %679 = vmatpush1.msra.mxu0 0.0
      %680 = vmatprep.subr.mxu0 0.0
      %681 = vmatpush1.msra.mxu0 0.0
      %682 = vmatprep.subr.mxu0 0.0
      %683 = vmatpush1.msra.mxu0 0.0
      %684 = vmatprep.subr.mxu0 0.0
      %685 = vmatpush1.msra.mxu0 0.0
      %686 = vmatprep.subr.mxu0 0.0
      %687 = vmatpush1.msra.mxu0 %v523
      %688 = vmatprep.subr.mxu0 0.0
      %689 = vmatpush1.msra.mxu0 %v522
      %690 = vmatprep.subr.mxu0 0.0
      %691 = vmatpush1.msra.mxu0 %v521
      %692 = vmatprep.subr.mxu0 0.0
      %693 = vmatpush1.msra.mxu0 %v520
      %694 = vmatprep.subr.mxu0 0.0
      %695 = vmatpush2.msra.mxu0 0.0
      %696 = vmatprep.subr.mxu0 0.0
      %697 = vmatpush2.msra.mxu0 0.0
      %698 = vmatprep.subr.mxu0 0.0
      %699 = vmatpush2.msra.mxu0 0.0
      %700 = vmatprep.subr.mxu0 0.0
      %701 = vmatpush2.msra.mxu0 0.0
      %702 = vmatprep.subr.mxu0 0.0
      %703 = vmatpush2.msra.mxu0 0.0
      %704 = vmatprep.subr.mxu0 0.0
      %705 = vmatpush2.msra.mxu0 0.0
      %706 = vmatprep.subr.mxu0 0.0
      %707 = vmatpush2.msra.mxu0 0.0
      %708 = vmatprep.subr.mxu0 0.0
      %709 = vmatpush2.msra.mxu0 0.0
      %710 = vmatprep.subr.mxu0 0.0
      %711 = vmatpush2.msra.mxu0 0.0
      %712 = vmatprep.subr.mxu0 0.0
      %713 = vmatpush2.msra.mxu0 0.0
      %714 = vmatprep.subr.mxu0 0.0
      %715 = vmatpush2.msra.mxu0 0.0
      %716 = vmatprep.subr.mxu0 0.0
      %717 = vmatpush2.msra.mxu0 0.0
      %718 = vmatprep.subr.mxu0 0.0
      %719 = vmatpush2.msra.mxu0 0.0
      %720 = vmatprep.subr.mxu0 0.0
      %721 = vmatpush2.msra.mxu0 0.0
      %722 = vmatprep.subr.mxu0 0.0
      %723 = vmatpush2.msra.mxu0 0.0
      %724 = vmatprep.subr.mxu0 0.0
      %725 = vmatpush2.msra.mxu0 0.0
      %726 = vmatprep.mubr.bf16.mxu0 0
      %727 = vmatmul.mubr.bf16.gmra.mxu0 %v554
      %v728 = vpop.f32.mrf.mxu0
      %v729 = vadd.f32 0.0, %v728
      %v730 = vpop.f32.mrf.mxu0
      %v731 = vpop.f32.mrf.mxu0
      %v732 = vadd.f32 0.0, %v731
      %v733 = vpop.f32.mrf.mxu0
      %734 = vmatprep.mubr.bf16.mxu0 0
      %735 = vmatmul.mubr.bf16.gmra.mxu0 %v557
      %v736 = vpop.f32.mrf.mxu0
      %v737 = vadd.f32 0.0, %v736
      %v738 = vpop.f32.mrf.mxu0
      %v739 = vpop.f32.mrf.mxu0
      %v740 = vadd.f32 0.0, %v739
      %v741 = vpop.f32.mrf.mxu0
      %742 = vmatprep.mubr.bf16.mxu0 0
      %743 = vmatmul.mubr.bf16.gmra.mxu0 %v560
      %v744 = vpop.f32.mrf.mxu0
      %v745 = vadd.f32 0.0, %v744
      %v746 = vpop.f32.mrf.mxu0
      %v747 = vpop.f32.mrf.mxu0
      %v748 = vadd.f32 0.0, %v747
      %v749 = vpop.f32.mrf.mxu0
      %750 = vmatprep.mubr.bf16.mxu0 0
      %751 = vmatmul.mubr.bf16.gmra.mxu0 %v563
      %v752 = vpop.f32.mrf.mxu0
      %v753 = vadd.f32 0.0, %v752
      %v754 = vpop.f32.mrf.mxu0
      %v755 = vpop.f32.mrf.mxu0
      %v756 = vadd.f32 0.0, %v755
      %v757 = vpop.f32.mrf.mxu0
      %758 = vdwg.mxu0
      %v759 = vsub.f32 %v632, %v745
      %v760 = vsub.f32 %v635, %v748
      %v761 = vsub.f32 %v640, %v753
      %v762 = vsub.f32 %v643, %v756
      %v763 = vadd.f32 %v729, %v648
      %v764 = vadd.f32 %v732, %v651
      %v765 = vadd.f32 %v737, %v656
      %v766 = vadd.f32 %v740, %v659
      %v767 = vld [vmem:[%s313] sm:$0xff]
      %v768 = vld [vmem:[%s313 + $0x8] sm:$0xff]
      %v769 = vld [vmem:[%s313 + $0x10] sm:$0xff]
      %v770 = vld [vmem:[%s313 + $0x18] sm:$0xff]
      %s771 = scalar_lea.vmem %s313, 32
      %v772 = vld [vmem:[%s771] sm:$0xff]
      %v773 = vld [vmem:[%s771 + $0x8] sm:$0xff]
      %v774 = vld [vmem:[%s771 + $0x10] sm:$0xff]
      %v775 = vld [vmem:[%s771 + $0x18] sm:$0xff]
      %v776 = vmul.f32 %v759, %v767
      %v777 = vmul.f32 %v760, %v768
      %v778 = vmul.f32 %v761, %v769
      %v779 = vmul.f32 %v762, %v770
      %v780 = vmul.f32 %v763, %v772
      %v781 = vmul.f32 %v764, %v773
      %v782 = vmul.f32 %v765, %v774
      %v783 = vmul.f32 %v766, %v775
      %v784 = vadd.f32 %v776, %v780
      %v785 = vadd.f32 %v777, %v781
      %v786 = vadd.f32 %v778, %v782
      %v787 = vadd.f32 %v779, %v783
      %v788 = vmul.f32 %v763, %v767
      %v789 = vmul.f32 %v764, %v768
      %v790 = vmul.f32 %v765, %v769
      %v791 = vmul.f32 %v766, %v770
      %v792 = vmul.f32 %v759, %v772
      %v793 = vmul.f32 %v760, %v773
      %v794 = vmul.f32 %v761, %v774
      %v795 = vmul.f32 %v762, %v775
      %v796 = vsub.f32 %v788, %v792
      %v797 = vsub.f32 %v789, %v793
      %v798 = vsub.f32 %v790, %v794
      %v799 = vsub.f32 %v791, %v795
      %v800 = vld [vmem:[%s6] sm:$0xf]
      %v801 = vld [vmem:[%s6 + $0x4] sm:$0xf]
      %v802 = vld [vmem:[%s6 + $0x8] sm:$0xf]
      %v803 = vld [vmem:[%s6 + $0xc] sm:$0xf]
      %v804 = vld [vmem:[%s6 + $0x10] sm:$0xf]
      %v805 = vld [vmem:[%s6 + $0x14] sm:$0xf]
      %v806 = vld [vmem:[%s6 + $0x18] sm:$0xf]
      %v807 = vld [vmem:[%s6 + $0x1c] sm:$0xf]
      %v808 = vld [vmem:[%s6 + $0x20] sm:$0xf]
      %v809 = vld [vmem:[%s6 + $0x24] sm:$0xf]
      %v810 = vld [vmem:[%s6 + $0x28] sm:$0xf]
      %v811 = vld [vmem:[%s6 + $0x2c] sm:$0xf]
      %v812 = vld [vmem:[%s6 + $0x30] sm:$0xf]
      %v813 = vld [vmem:[%s6 + $0x34] sm:$0xf]
      %v814 = vld [vmem:[%s6 + $0x38] sm:$0xf]
      %v815 = vld [vmem:[%s6 + $0x3c] sm:$0xf]
      %v816 = vpack.c.bf16 %v785, %v784
      %v817 = vpack.c.bf16 %v787, %v786
      %v834 = vunpack.c.l.b16 %v800
      %v835 = vunpack.c.l.b16 %v801
      %v836 = vunpack.c.l.b16 %v802
      %v837 = vunpack.c.l.b16 %v803
      %v838 = vunpack.c.l.b16 %v804
      %v839 = vunpack.c.l.b16 %v805
      %v840 = vunpack.c.l.b16 %v806
      %v841 = vunpack.c.l.b16 %v807
      %v842 = vunpack.c.l.b16 %v808
      %v843 = vunpack.c.l.b16 %v809
      %v844 = vunpack.c.l.b16 %v810
      %v845 = vunpack.c.l.b16 %v811
      %v846 = vunpack.c.l.b16 %v812
      %v847 = vunpack.c.l.b16 %v813
      %v848 = vunpack.c.l.b16 %v814
      %v849 = vunpack.c.l.b16 %v815
      %v850 = vpack.c.b16 %v835, %v834
      %v851 = vpack.c.b16 %v837, %v836
      %v852 = vpack.c.b16 %v839, %v838
      %v853 = vpack.c.b16 %v841, %v840
      %v854 = vpack.c.b16 %v843, %v842
      %v855 = vpack.c.b16 %v845, %v844
      %v856 = vpack.c.b16 %v847, %v846
      %v857 = vpack.c.b16 %v849, %v848
      %866 = vmatprep.subr.bf16.mxu0 0
      %867 = vmatpush1.bf16.msra.mxu0 %v857
      %868 = vmatprep.subr.bf16.mxu0 0
      %869 = vmatpush1.bf16.msra.mxu0 %v856
      %870 = vmatprep.subr.bf16.mxu0 0
      %871 = vmatpush1.bf16.msra.mxu0 %v855
      %872 = vmatprep.subr.bf16.mxu0 0
      %873 = vmatpush1.bf16.msra.mxu0 %v854
      %874 = vmatprep.subr.bf16.mxu0 0
      %875 = vmatpush1.bf16.msra.mxu0 %v853
      %876 = vmatprep.subr.bf16.mxu0 0
      %877 = vmatpush1.bf16.msra.mxu0 %v852
      %878 = vmatprep.subr.bf16.mxu0 0
      %879 = vmatpush1.bf16.msra.mxu0 %v851
      %880 = vmatprep.subr.bf16.mxu0 0
      %881 = vmatpush1.bf16.msra.mxu0 %v850
      %882 = vmatprep.subr.bf16.mxu0 0
      %883 = vmatpush2.bf16.msra.mxu0 0
      %884 = vmatprep.subr.bf16.mxu0 0
      %885 = vmatpush2.bf16.msra.mxu0 0
      %886 = vmatprep.subr.bf16.mxu0 0
      %887 = vmatpush2.bf16.msra.mxu0 0
      %888 = vmatprep.subr.bf16.mxu0 0
      %889 = vmatpush2.bf16.msra.mxu0 0
      %890 = vmatprep.subr.bf16.mxu0 0
      %891 = vmatpush2.bf16.msra.mxu0 0
      %892 = vmatprep.subr.bf16.mxu0 0
      %893 = vmatpush2.bf16.msra.mxu0 0
      %894 = vmatprep.subr.bf16.mxu0 0
      %895 = vmatpush2.bf16.msra.mxu0 0
      %896 = vmatprep.subr.bf16.mxu0 0
      %897 = vmatpush2.bf16.msra.mxu0 0
      %898 = vmatprep.mubr.bf16.mxu0 0
      %899 = vmatmul.mubr.bf16.gmra.mxu0 %v816
      %v900 = vpop.f32.mrf.mxu0
      %v901 = vadd.f32 0.0, %v900
      %v902 = vpop.f32.mrf.mxu0
      %v903 = vpop.f32.mrf.mxu0
      %v904 = vadd.f32 0.0, %v903
      %v905 = vpop.f32.mrf.mxu0
      %906 = vmatprep.mubr.bf16.mxu0 0
      %907 = vmatmul.mubr.bf16.gmra.mxu0 %v817
      %v908 = vpop.f32.mrf.mxu0
      %v909 = vadd.f32 0.0, %v908
      %v910 = vpop.f32.mrf.mxu0
      %v911 = vpop.f32.mrf.mxu0
      %v912 = vadd.f32 0.0, %v911
      %v913 = vpop.f32.mrf.mxu0
      %914 = vdwg.mxu0
      %v915 = vpack.c.bf16 %v797, %v796
      %v916 = vpack.c.bf16 %v799, %v798
      %917 = vmatprep.subr.bf16.mxu0 0
      %918 = vmatpush1.bf16.msra.mxu0 %v857
      %919 = vmatprep.subr.bf16.mxu0 0
      %920 = vmatpush1.bf16.msra.mxu0 %v856
      %921 = vmatprep.subr.bf16.mxu0 0
      %922 = vmatpush1.bf16.msra.mxu0 %v855
      %923 = vmatprep.subr.bf16.mxu0 0
      %924 = vmatpush1.bf16.msra.mxu0 %v854
      %925 = vmatprep.subr.bf16.mxu0 0
      %926 = vmatpush1.bf16.msra.mxu0 %v853
      %927 = vmatprep.subr.bf16.mxu0 0
      %928 = vmatpush1.bf16.msra.mxu0 %v852
      %929 = vmatprep.subr.bf16.mxu0 0
      %930 = vmatpush1.bf16.msra.mxu0 %v851
      %931 = vmatprep.subr.bf16.mxu0 0
      %932 = vmatpush1.bf16.msra.mxu0 %v850
      %933 = vmatprep.subr.bf16.mxu0 0
      %934 = vmatpush2.bf16.msra.mxu0 0
      %935 = vmatprep.subr.bf16.mxu0 0
      %936 = vmatpush2.bf16.msra.mxu0 0
      %937 = vmatprep.subr.bf16.mxu0 0
      %938 = vmatpush2.bf16.msra.mxu0 0
      %939 = vmatprep.subr.bf16.mxu0 0
      %940 = vmatpush2.bf16.msra.mxu0 0
      %941 = vmatprep.subr.bf16.mxu0 0
      %942 = vmatpush2.bf16.msra.mxu0 0
      %943 = vmatprep.subr.bf16.mxu0 0
      %944 = vmatpush2.bf16.msra.mxu0 0
      %945 = vmatprep.subr.bf16.mxu0 0
      %946 = vmatpush2.bf16.msra.mxu0 0
      %947 = vmatprep.subr.bf16.mxu0 0
      %948 = vmatpush2.bf16.msra.mxu0 0
      %949 = vmatprep.mubr.bf16.mxu0 0
      %950 = vmatmul.mubr.bf16.gmra.mxu0 %v915
      %v951 = vpop.f32.mrf.mxu0
      %v952 = vadd.f32 0.0, %v951
      %v953 = vpop.f32.mrf.mxu0
      %v954 = vpop.f32.mrf.mxu0
      %v955 = vadd.f32 0.0, %v954
      %v956 = vpop.f32.mrf.mxu0
      %957 = vmatprep.mubr.bf16.mxu0 0
      %958 = vmatmul.mubr.bf16.gmra.mxu0 %v916
      %v959 = vpop.f32.mrf.mxu0
      %v960 = vadd.f32 0.0, %v959
      %v961 = vpop.f32.mrf.mxu0
      %v962 = vpop.f32.mrf.mxu0
      %v963 = vadd.f32 0.0, %v962
      %v964 = vpop.f32.mrf.mxu0
      %965 = vdwg.mxu0
      %v966 = vld [vmem:[%s303] sm:$0xff]
      %v967 = vld [vmem:[%s303 + $0x8] sm:$0xff]
      %v968 = vld [vmem:[%s303 + $0x10] sm:$0xff]
      %v969 = vld [vmem:[%s303 + $0x18] sm:$0xff]
      %s970 = scalar_lea.vmem %s303, 32
      %v971 = vld [vmem:[%s970] sm:$0xff]
      %v972 = vld [vmem:[%s970 + $0x8] sm:$0xff]
      %v973 = vld [vmem:[%s970 + $0x10] sm:$0xff]
      %v974 = vld [vmem:[%s970 + $0x18] sm:$0xff]
      %v975 = vmul.f32 %v966, %v767
      %v976 = vmul.f32 %v967, %v768
      %v977 = vmul.f32 %v968, %v769
      %v978 = vmul.f32 %v969, %v770
      %v979 = vmul.f32 %v971, %v772
      %v980 = vmul.f32 %v972, %v773
      %v981 = vmul.f32 %v973, %v774
      %v982 = vmul.f32 %v974, %v775
      %v983 = vsub.f32 %v975, %v979
      %v984 = vsub.f32 %v976, %v980
      %v985 = vsub.f32 %v977, %v981
      %v986 = vsub.f32 %v978, %v982
      %v987 = vmul.f32 %v966, %v772
      %v988 = vmul.f32 %v967, %v773
      %v989 = vmul.f32 %v968, %v774
      %v990 = vmul.f32 %v969, %v775
      %v991 = vmul.f32 %v971, %v767
      %v992 = vmul.f32 %v972, %v768
      %v993 = vmul.f32 %v973, %v769
      %v994 = vmul.f32 %v974, %v770
      %v995 = vadd.f32 %v987, %v991
      %v996 = vadd.f32 %v988, %v992
      %v997 = vadd.f32 %v989, %v993
      %v998 = vadd.f32 %v990, %v994
      %v999 = vld [vmem:[%s5] sm:$0xff]
      %v1000 = vld [vmem:[%s5 + $0x8] sm:$0xff]
      %v1001 = vld [vmem:[%s5 + $0x10] sm:$0xff]
      %v1002 = vld [vmem:[%s5 + $0x18] sm:$0xff]
      %v1003 = vld [vmem:[%s5 + $0x20] sm:$0xff]
      %v1004 = vld [vmem:[%s5 + $0x28] sm:$0xff]
      %v1005 = vld [vmem:[%s5 + $0x30] sm:$0xff]
      %v1006 = vld [vmem:[%s5 + $0x38] sm:$0xff]
      %v1007 = vld [vmem:[%s5 + $0x40] sm:$0xff]
      %v1008 = vld [vmem:[%s5 + $0x48] sm:$0xff]
      %v1009 = vld [vmem:[%s5 + $0x50] sm:$0xff]
      %v1010 = vld [vmem:[%s5 + $0x58] sm:$0xff]
      %v1011 = vld [vmem:[%s5 + $0x60] sm:$0xff]
      %v1012 = vld [vmem:[%s5 + $0x68] sm:$0xff]
      %v1013 = vld [vmem:[%s5 + $0x70] sm:$0xff]
      %v1014 = vld [vmem:[%s5 + $0x78] sm:$0xff]
      %v1015 = vpack.c.bf16 %v984, %v983
      %v1016 = vpack.c.bf16 %v986, %v985
      %v1033 = vunpack.c.l.b16 %v999
      %v1034 = vunpack.c.h.b16 %v999
      %v1035 = vunpack.c.l.b16 %v1000
      %v1036 = vunpack.c.h.b16 %v1000
      %v1037 = vunpack.c.l.b16 %v1001
      %v1038 = vunpack.c.h.b16 %v1001
      %v1039 = vunpack.c.l.b16 %v1002
      %v1040 = vunpack.c.h.b16 %v1002
      %v1041 = vunpack.c.l.b16 %v1003
      %v1042 = vunpack.c.h.b16 %v1003
      %v1043 = vunpack.c.l.b16 %v1004
      %v1044 = vunpack.c.h.b16 %v1004
      %v1045 = vunpack.c.l.b16 %v1005
      %v1046 = vunpack.c.h.b16 %v1005
      %v1047 = vunpack.c.l.b16 %v1006
      %v1048 = vunpack.c.h.b16 %v1006
      %v1049 = vunpack.c.l.b16 %v1007
      %v1050 = vunpack.c.h.b16 %v1007
      %v1051 = vunpack.c.l.b16 %v1008
      %v1052 = vunpack.c.h.b16 %v1008
      %v1053 = vunpack.c.l.b16 %v1009
      %v1054 = vunpack.c.h.b16 %v1009
      %v1055 = vunpack.c.l.b16 %v1010
      %v1056 = vunpack.c.h.b16 %v1010
      %v1057 = vunpack.c.l.b16 %v1011
      %v1058 = vunpack.c.h.b16 %v1011
      %v1059 = vunpack.c.l.b16 %v1012
      %v1060 = vunpack.c.h.b16 %v1012
      %v1061 = vunpack.c.l.b16 %v1013
      %v1062 = vunpack.c.h.b16 %v1013
      %v1063 = vunpack.c.l.b16 %v1014
      %v1064 = vunpack.c.h.b16 %v1014
      %v1065 = vpack.c.b16 %v1035, %v1033
      %v1066 = vpack.c.b16 %v1036, %v1034
      %v1067 = vpack.c.b16 %v1039, %v1037
      %v1068 = vpack.c.b16 %v1040, %v1038
      %v1069 = vpack.c.b16 %v1043, %v1041
      %v1070 = vpack.c.b16 %v1044, %v1042
      %v1071 = vpack.c.b16 %v1047, %v1045
      %v1072 = vpack.c.b16 %v1048, %v1046
      %v1073 = vpack.c.b16 %v1051, %v1049
      %v1074 = vpack.c.b16 %v1052, %v1050
      %v1075 = vpack.c.b16 %v1055, %v1053
      %v1076 = vpack.c.b16 %v1056, %v1054
      %v1077 = vpack.c.b16 %v1059, %v1057
      %v1078 = vpack.c.b16 %v1060, %v1058
      %v1079 = vpack.c.b16 %v1063, %v1061
      %v1080 = vpack.c.b16 %v1064, %v1062
      %1097 = vmatprep.subr.bf16.mxu0 %v1080
      %1098 = vmatpush1.bf16.msra.mxu0 %v1079
      %1099 = vmatprep.subr.bf16.mxu0 %v1078
      %1100 = vmatpush1.bf16.msra.mxu0 %v1077
      %1101 = vmatprep.subr.bf16.mxu0 %v1076
      %1102 = vmatpush1.bf16.msra.mxu0 %v1075
      %1103 = vmatprep.subr.bf16.mxu0 %v1074
      %1104 = vmatpush1.bf16.msra.mxu0 %v1073
      %1105 = vmatprep.subr.bf16.mxu0 %v1072
      %1106 = vmatpush1.bf16.msra.mxu0 %v1071
      %1107 = vmatprep.subr.bf16.mxu0 %v1070
      %1108 = vmatpush1.bf16.msra.mxu0 %v1069
      %1109 = vmatprep.subr.bf16.mxu0 %v1068
      %1110 = vmatpush1.bf16.msra.mxu0 %v1067
      %1111 = vmatprep.subr.bf16.mxu0 %v1066
      %1112 = vmatpush1.bf16.msra.mxu0 %v1065
      %1113 = vmatprep.subr.bf16.mxu0 0
      %1114 = vmatpush2.bf16.msra.mxu0 0
      %1115 = vmatprep.subr.bf16.mxu0 0
      %1116 = vmatpush2.bf16.msra.mxu0 0
      %1117 = vmatprep.subr.bf16.mxu0 0
      %1118 = vmatpush2.bf16.msra.mxu0 0
      %1119 = vmatprep.subr.bf16.mxu0 0
      %1120 = vmatpush2.bf16.msra.mxu0 0
      %1121 = vmatprep.subr.bf16.mxu0 0
      %1122 = vmatpush2.bf16.msra.mxu0 0
      %1123 = vmatprep.subr.bf16.mxu0 0
      %1124 = vmatpush2.bf16.msra.mxu0 0
      %1125 = vmatprep.subr.bf16.mxu0 0
      %1126 = vmatpush2.bf16.msra.mxu0 0
      %1127 = vmatprep.subr.bf16.mxu0 0
      %1128 = vmatpush2.bf16.msra.mxu0 0
      %1129 = vmatprep.mubr.bf16.mxu0 0
      %1130 = vmatmul.mubr.bf16.gmra.mxu0 %v1015
      %v1131 = vpop.f32.mrf.mxu0
      %v1132 = vadd.f32 0.0, %v1131
      %v1133 = vpop.f32.mrf.mxu0
      %v1134 = vadd.f32 0.0, %v1133
      %v1135 = vpop.f32.mrf.mxu0
      %v1136 = vadd.f32 0.0, %v1135
      %v1137 = vpop.f32.mrf.mxu0
      %v1138 = vadd.f32 0.0, %v1137
      %1139 = vmatprep.mubr.bf16.mxu0 0
      %1140 = vmatmul.mubr.bf16.gmra.mxu0 %v1016
      %v1141 = vpop.f32.mrf.mxu0
      %v1142 = vadd.f32 0.0, %v1141
      %v1143 = vpop.f32.mrf.mxu0
      %v1144 = vadd.f32 0.0, %v1143
      %v1145 = vpop.f32.mrf.mxu0
      %v1146 = vadd.f32 0.0, %v1145
      %v1147 = vpop.f32.mrf.mxu0
      %v1148 = vadd.f32 0.0, %v1147
      %1149 = vdwg.mxu0
      %v1150 = vpack.c.bf16 %v996, %v995
      %v1151 = vpack.c.bf16 %v998, %v997
      %1152 = vmatprep.subr.bf16.mxu0 %v1080
      %1153 = vmatpush1.bf16.msra.mxu0 %v1079
      %1154 = vmatprep.subr.bf16.mxu0 %v1078
      %1155 = vmatpush1.bf16.msra.mxu0 %v1077
      %1156 = vmatprep.subr.bf16.mxu0 %v1076
      %1157 = vmatpush1.bf16.msra.mxu0 %v1075
      %1158 = vmatprep.subr.bf16.mxu0 %v1074
      %1159 = vmatpush1.bf16.msra.mxu0 %v1073
      %1160 = vmatprep.subr.bf16.mxu0 %v1072
      %1161 = vmatpush1.bf16.msra.mxu0 %v1071
      %1162 = vmatprep.subr.bf16.mxu0 %v1070
      %1163 = vmatpush1.bf16.msra.mxu0 %v1069
      %1164 = vmatprep.subr.bf16.mxu0 %v1068
      %1165 = vmatpush1.bf16.msra.mxu0 %v1067
      %1166 = vmatprep.subr.bf16.mxu0 %v1066
      %1167 = vmatpush1.bf16.msra.mxu0 %v1065
      %1168 = vmatprep.subr.bf16.mxu0 0
      %1169 = vmatpush2.bf16.msra.mxu0 0
      %1170 = vmatprep.subr.bf16.mxu0 0
      %1171 = vmatpush2.bf16.msra.mxu0 0
      %1172 = vmatprep.subr.bf16.mxu0 0
      %1173 = vmatpush2.bf16.msra.mxu0 0
      %1174 = vmatprep.subr.bf16.mxu0 0
      %1175 = vmatpush2.bf16.msra.mxu0 0
      %1176 = vmatprep.subr.bf16.mxu0 0
      %1177 = vmatpush2.bf16.msra.mxu0 0
      %1178 = vmatprep.subr.bf16.mxu0 0
      %1179 = vmatpush2.bf16.msra.mxu0 0
      %1180 = vmatprep.subr.bf16.mxu0 0
      %1181 = vmatpush2.bf16.msra.mxu0 0
      %1182 = vmatprep.subr.bf16.mxu0 0
      %1183 = vmatpush2.bf16.msra.mxu0 0
      %1184 = vmatprep.mubr.bf16.mxu0 0
      %1185 = vmatmul.mubr.bf16.gmra.mxu0 %v1150
      %v1186 = vpop.f32.mrf.mxu0
      %v1187 = vadd.f32 0.0, %v1186
      %v1188 = vpop.f32.mrf.mxu0
      %v1189 = vadd.f32 0.0, %v1188
      %v1190 = vpop.f32.mrf.mxu0
      %v1191 = vadd.f32 0.0, %v1190
      %v1192 = vpop.f32.mrf.mxu0
      %v1193 = vadd.f32 0.0, %v1192
      %1194 = vmatprep.mubr.bf16.mxu0 0
      %1195 = vmatmul.mubr.bf16.gmra.mxu0 %v1151
      %v1196 = vpop.f32.mrf.mxu0
      %v1197 = vadd.f32 0.0, %v1196
      %v1198 = vpop.f32.mrf.mxu0
      %v1199 = vadd.f32 0.0, %v1198
      %v1200 = vpop.f32.mrf.mxu0
      %v1201 = vadd.f32 0.0, %v1200
      %v1202 = vpop.f32.mrf.mxu0
      %v1203 = vadd.f32 0.0, %v1202
      %1204 = vdwg.mxu0
      %v1205 = vsub.f32 %v1132, %v1189
      %v1206 = vsub.f32 %v1136, %v1193
      %v1207 = vsub.f32 %v1142, %v1199
      %v1208 = vsub.f32 %v1146, %v1203
      %v1209 = vadd.f32 %v1134, %v1187
      %v1210 = vadd.f32 %v1138, %v1191
      %v1211 = vadd.f32 %v1144, %v1197
      %v1212 = vadd.f32 %v1148, %v1201
      %v1213 = vmul.f32 %v1205, %v767
      %v1214 = vmul.f32 %v1206, %v768
      %v1215 = vmul.f32 %v1207, %v769
      %v1216 = vmul.f32 %v1208, %v770
      %v1217 = vmul.f32 %v1209, %v772
      %v1218 = vmul.f32 %v1210, %v773
      %v1219 = vmul.f32 %v1211, %v774
      %v1220 = vmul.f32 %v1212, %v775
      %v1221 = vadd.f32 %v1213, %v1217
      %v1222 = vadd.f32 %v1214, %v1218
      %v1223 = vadd.f32 %v1215, %v1219
      %v1224 = vadd.f32 %v1216, %v1220
      %v1225 = vmul.f32 %v1209, %v767
      %v1226 = vmul.f32 %v1210, %v768
      %v1227 = vmul.f32 %v1211, %v769
      %v1228 = vmul.f32 %v1212, %v770
      %v1229 = vmul.f32 %v1205, %v772
      %v1230 = vmul.f32 %v1206, %v773
      %v1231 = vmul.f32 %v1207, %v774
      %v1232 = vmul.f32 %v1208, %v775
      %v1233 = vsub.f32 %v1225, %v1229
      %v1234 = vsub.f32 %v1226, %v1230
      %v1235 = vsub.f32 %v1227, %v1231
      %v1236 = vsub.f32 %v1228, %v1232
      %v1237 = vpack.c.bf16 %v1222, %v1221
      %v1238 = vpack.c.bf16 %v1224, %v1223
      %1239 = vmatprep.subr.bf16.mxu0 0
      %1240 = vmatpush1.bf16.msra.mxu0 %v857
      %1241 = vmatprep.subr.bf16.mxu0 0
      %1242 = vmatpush1.bf16.msra.mxu0 %v856
      %1243 = vmatprep.subr.bf16.mxu0 0
      %1244 = vmatpush1.bf16.msra.mxu0 %v855
      %1245 = vmatprep.subr.bf16.mxu0 0
      %1246 = vmatpush1.bf16.msra.mxu0 %v854
      %1247 = vmatprep.subr.bf16.mxu0 0
      %1248 = vmatpush1.bf16.msra.mxu0 %v853
      %1249 = vmatprep.subr.bf16.mxu0 0
      %1250 = vmatpush1.bf16.msra.mxu0 %v852
      %1251 = vmatprep.subr.bf16.mxu0 0
      %1252 = vmatpush1.bf16.msra.mxu0 %v851
      %1253 = vmatprep.subr.bf16.mxu0 0
      %1254 = vmatpush1.bf16.msra.mxu0 %v850
      %1255 = vmatprep.subr.bf16.mxu0 0
      %1256 = vmatpush2.bf16.msra.mxu0 0
      %1257 = vmatprep.subr.bf16.mxu0 0
      %1258 = vmatpush2.bf16.msra.mxu0 0
      %1259 = vmatprep.subr.bf16.mxu0 0
      %1260 = vmatpush2.bf16.msra.mxu0 0
      %1261 = vmatprep.subr.bf16.mxu0 0
      %1262 = vmatpush2.bf16.msra.mxu0 0
      %1263 = vmatprep.subr.bf16.mxu0 0
      %1264 = vmatpush2.bf16.msra.mxu0 0
      %1265 = vmatprep.subr.bf16.mxu0 0
      %1266 = vmatpush2.bf16.msra.mxu0 0
      %1267 = vmatprep.subr.bf16.mxu0 0
      %1268 = vmatpush2.bf16.msra.mxu0 0
      %1269 = vmatprep.subr.bf16.mxu0 0
      %1270 = vmatpush2.bf16.msra.mxu0 0
      %1271 = vmatprep.mubr.bf16.mxu0 0
      %1272 = vmatmul.mubr.bf16.gmra.mxu0 %v1237
      %v1273 = vpop.f32.mrf.mxu0
      %v1274 = vadd.f32 0.0, %v1273
      %v1275 = vpop.f32.mrf.mxu0
      %v1276 = vpop.f32.mrf.mxu0
      %v1277 = vadd.f32 0.0, %v1276
      %v1278 = vpop.f32.mrf.mxu0
      %1279 = vmatprep.mubr.bf16.mxu0 0
      %1280 = vmatmul.mubr.bf16.gmra.mxu0 %v1238
      %v1281 = vpop.f32.mrf.mxu0
      %v1282 = vadd.f32 0.0, %v1281
      %v1283 = vpop.f32.mrf.mxu0
      %v1284 = vpop.f32.mrf.mxu0
      %v1285 = vadd.f32 0.0, %v1284
      %v1286 = vpop.f32.mrf.mxu0
      %1287 = vdwg.mxu0
      %v1288 = vpack.c.bf16 %v1234, %v1233
      %v1289 = vpack.c.bf16 %v1236, %v1235
      %1290 = vmatprep.subr.bf16.mxu0 0
      %1291 = vmatpush1.bf16.msra.mxu0 %v857
      %1292 = vmatprep.subr.bf16.mxu0 0
      %1293 = vmatpush1.bf16.msra.mxu0 %v856
      %1294 = vmatprep.subr.bf16.mxu0 0
      %1295 = vmatpush1.bf16.msra.mxu0 %v855
      %1296 = vmatprep.subr.bf16.mxu0 0
      %1297 = vmatpush1.bf16.msra.mxu0 %v854
      %1298 = vmatprep.subr.bf16.mxu0 0
      %1299 = vmatpush1.bf16.msra.mxu0 %v853
      %1300 = vmatprep.subr.bf16.mxu0 0
      %1301 = vmatpush1.bf16.msra.mxu0 %v852
      %1302 = vmatprep.subr.bf16.mxu0 0
      %1303 = vmatpush1.bf16.msra.mxu0 %v851
      %1304 = vmatprep.subr.bf16.mxu0 0
      %1305 = vmatpush1.bf16.msra.mxu0 %v850
      %1306 = vmatprep.subr.bf16.mxu0 0
      %1307 = vmatpush2.bf16.msra.mxu0 0
      %1308 = vmatprep.subr.bf16.mxu0 0
      %1309 = vmatpush2.bf16.msra.mxu0 0
      %1310 = vmatprep.subr.bf16.mxu0 0
      %1311 = vmatpush2.bf16.msra.mxu0 0
      %1312 = vmatprep.subr.bf16.mxu0 0
      %1313 = vmatpush2.bf16.msra.mxu0 0
      %1314 = vmatprep.subr.bf16.mxu0 0
      %1315 = vmatpush2.bf16.msra.mxu0 0
      %1316 = vmatprep.subr.bf16.mxu0 0
      %1317 = vmatpush2.bf16.msra.mxu0 0
      %1318 = vmatprep.subr.bf16.mxu0 0
      %1319 = vmatpush2.bf16.msra.mxu0 0
      %1320 = vmatprep.subr.bf16.mxu0 0
      %1321 = vmatpush2.bf16.msra.mxu0 0
      %1322 = vmatprep.mubr.bf16.mxu0 0
      %1323 = vmatmul.mubr.bf16.gmra.mxu0 %v1288
      %v1324 = vpop.f32.mrf.mxu0
      %v1325 = vadd.f32 0.0, %v1324
      %v1326 = vpop.f32.mrf.mxu0
      %v1327 = vpop.f32.mrf.mxu0
      %v1328 = vadd.f32 0.0, %v1327
      %v1329 = vpop.f32.mrf.mxu0
      %1330 = vmatprep.mubr.bf16.mxu0 0
      %1331 = vmatmul.mubr.bf16.gmra.mxu0 %v1289
      %v1332 = vpop.f32.mrf.mxu0
      %v1333 = vadd.f32 0.0, %v1332
      %v1334 = vpop.f32.mrf.mxu0
      %v1335 = vpop.f32.mrf.mxu0
      %v1336 = vadd.f32 0.0, %v1335
      %v1337 = vpop.f32.mrf.mxu0
      %1338 = vdwg.mxu0
      %v1339 = vadd.f32 %v966, %v901
      %v1340 = vadd.f32 %v967, %v904
      %v1341 = vadd.f32 %v968, %v909
      %v1342 = vadd.f32 %v969, %v912
      %v1343 = vsub.f32 %v1339, %v1274
      %v1344 = vsub.f32 %v1340, %v1277
      %v1345 = vsub.f32 %v1341, %v1282
      %v1346 = vsub.f32 %v1342, %v1285
      %v1347 = vadd.f32 %v971, %v952
      %v1348 = vadd.f32 %v972, %v955
      %v1349 = vadd.f32 %v973, %v960
      %v1350 = vadd.f32 %v974, %v963
      %v1351 = vsub.f32 %v1347, %v1325
      %v1352 = vsub.f32 %v1348, %v1328
      %v1353 = vsub.f32 %v1349, %v1333
      %v1354 = vsub.f32 %v1350, %v1336
      %v1355 = vlaneseq
      %v1356 = vshrl.u32 %v1355, 7
      %v1357 = vadd.s32 %v1356, 8
      %v1358 = vadd.s32 %v1356, 16
      %v1359 = vadd.s32 %v1356, 24
      %v1360 = vlaneseq
      %v1361 = vand.u32 %v1360, 127
      %vm1362 = vcmp.lt.s32.totalorder %v1361, 0
      %v1363 = vsub.s32 0, %v1361
      %v1364 = vsel %vm1362, %v1363, %v1361
      %v1365 = vshrl.u32 %v1364, 5
      %v1366 = vand.u32 %v1364, 31
      %v1367 = vsub.s32 0, %v1366
      %v1368 = vsel %vm1362, %v1367, %v1366
      %vm1369 = vcmp.ne.s32.totalorder %v1368, 0
      %vm1370 = vcmp.lt.s32.totalorder %v1368, 0
      %vm1371 = vmand %vm1370, %vm1369
      %v1372 = vadd.s32 %v1368, 32
      %v1373 = vsel %vm1371, %v1372, %v1368
      %vm1374 = vcmp.eq.s32.totalorder %v1356, 0
      %vm1375 = vcmp.eq.s32.totalorder %v1357, 0
      %vm1376 = vcmp.eq.s32.totalorder %v1358, 0
      %vm1377 = vcmp.eq.s32.totalorder %v1359, 0
      %vm1378 = vcmp.eq.s32.totalorder %v1356, 31
      %vm1379 = vcmp.eq.s32.totalorder %v1357, 31
      %vm1380 = vcmp.eq.s32.totalorder %v1358, 31
      %vm1381 = vcmp.eq.s32.totalorder %v1359, 31
      %vm1382 = vcmp.eq.s32.totalorder %v1373, 0
      %vm1383 = vcmp.eq.s32.totalorder %v1373, 31
      %v1384 = vrot.slane %v1343, 7
      %v1385 = vrot.slane %v1344, 7
      %v1386 = vrot.slane %v1345, 7
      %v1387 = vrot.slane %v1346, 7
      %vm1388 = vcmp.lt.s32.totalorder %v1356, 1
      %v1389 = vsel %vm1388, %v1386, %v1387
      %v1390 = vsel %vm1388, %v1385, %v1386
      %v1391 = vsel %vm1388, %v1384, %v1385
      %v1392 = vsel %vm1388, %v1387, %v1384
      %v1393 = vsel %vm1374, 0.0, %v1392
      %v1394 = vsel %vm1375, 0.0, %v1391
      %v1395 = vsel %vm1376, 0.0, %v1390
      %v1396 = vsel %vm1377, 0.0, %v1389
      %1397 = vrot.lane.b32.xlu0 %v1393, 1
      %v1398 = vpop.permute.xlu0 %1397
      %1399 = vrot.lane.b32.xlu0 %v1394, 1
      %v1400 = vpop.permute.xlu0 %1399
      %1401 = vrot.lane.b32.xlu0 %v1395, 1
      %v1402 = vpop.permute.xlu0 %1401
      %1403 = vrot.lane.b32.xlu0 %v1396, 1
      %v1404 = vpop.permute.xlu0 %1403
      %v1405 = vsel %vm1382, 0.0, %v1398
      %v1406 = vsel %vm1382, 0.0, %v1400
      %v1407 = vsel %vm1382, 0.0, %v1402
      %v1408 = vsel %vm1382, 0.0, %v1404
      %v1409 = vmul.f32 %v1405, -0.06219436
      %v1410 = vmul.f32 %v1406, -0.06219436
      %v1411 = vmul.f32 %v1407, -0.06219436
      %v1412 = vmul.f32 %v1408, -0.06219436
      %v1413 = vadd.f32 %v1409, -0.0102088535
      %v1414 = vadd.f32 %v1410, -0.0102088535
      %v1415 = vadd.f32 %v1411, -0.0102088535
      %v1416 = vadd.f32 %v1412, -0.0102088535
      %v1417 = vmul.f32 %v1405, 0.08043536
      %v1418 = vmul.f32 %v1406, 0.08043536
      %v1419 = vmul.f32 %v1407, 0.08043536
      %v1420 = vmul.f32 %v1408, 0.08043536
      %v1421 = vadd.f32 %v1417, 0.0060980767
      %v1422 = vadd.f32 %v1418, 0.0060980767
      %v1423 = vadd.f32 %v1419, 0.0060980767
      %v1424 = vadd.f32 %v1420, 0.0060980767
      %v1425 = vmul.f32 %v1393, 0.06248041
      %v1426 = vmul.f32 %v1394, 0.06248041
      %v1427 = vmul.f32 %v1395, 0.06248041
      %v1428 = vmul.f32 %v1396, 0.06248041
      %v1429 = vadd.f32 %v1413, %v1425
      %v1430 = vadd.f32 %v1414, %v1426
      %v1431 = vadd.f32 %v1415, %v1427
      %v1432 = vadd.f32 %v1416, %v1428
      %v1433 = vmul.f32 %v1393, 0.05346756
      %v1434 = vmul.f32 %v1394, 0.05346756
      %v1435 = vmul.f32 %v1395, 0.05346756
      %v1436 = vmul.f32 %v1396, 0.05346756
      %v1437 = vadd.f32 %v1421, %v1433
      %v1438 = vadd.f32 %v1422, %v1434
      %v1439 = vadd.f32 %v1423, %v1435
      %v1440 = vadd.f32 %v1424, %v1436
      %1441 = vrot.lane.b32.xlu0 %v1393, 127
      %v1442 = vpop.permute.xlu0 %1441
      %1443 = vrot.lane.b32.xlu0 %v1394, 127
      %v1444 = vpop.permute.xlu0 %1443
      %1445 = vrot.lane.b32.xlu0 %v1395, 127
      %v1446 = vpop.permute.xlu0 %1445
      %1447 = vrot.lane.b32.xlu0 %v1396, 127
      %v1448 = vpop.permute.xlu0 %1447
      %v1449 = vsel %vm1383, 0.0, %v1442
      %v1450 = vsel %vm1383, 0.0, %v1444
      %v1451 = vsel %vm1383, 0.0, %v1446
      %v1452 = vsel %vm1383, 0.0, %v1448
      %v1453 = vmul.f32 %v1449, 0.16820775
      %v1454 = vmul.f32 %v1450, 0.16820775
      %v1455 = vmul.f32 %v1451, 0.16820775
      %v1456 = vmul.f32 %v1452, 0.16820775
      %v1457 = vadd.f32 %v1429, %v1453
      %v1458 = vadd.f32 %v1430, %v1454
      %v1459 = vadd.f32 %v1431, %v1455
      %v1460 = vadd.f32 %v1432, %v1456
      %v1461 = vmul.f32 %v1449, 0.15578379
      %v1462 = vmul.f32 %v1450, 0.15578379
      %v1463 = vmul.f32 %v1451, 0.15578379
      %v1464 = vmul.f32 %v1452, 0.15578379
      %v1465 = vadd.f32 %v1437, %v1461
      %v1466 = vadd.f32 %v1438, %v1462
      %v1467 = vadd.f32 %v1439, %v1463
      %v1468 = vadd.f32 %v1440, %v1464
      %1469 = vrot.lane.b32.xlu0 %v1343, 1
      %v1470 = vpop.permute.xlu0 %1469
      %1471 = vrot.lane.b32.xlu0 %v1344, 1
      %v1472 = vpop.permute.xlu0 %1471
      %1473 = vrot.lane.b32.xlu0 %v1345, 1
      %v1474 = vpop.permute.xlu0 %1473
      %1475 = vrot.lane.b32.xlu0 %v1346, 1
      %v1476 = vpop.permute.xlu0 %1475
      %v1477 = vsel %vm1382, 0.0, %v1470
      %v1478 = vsel %vm1382, 0.0, %v1472
      %v1479 = vsel %vm1382, 0.0, %v1474
      %v1480 = vsel %vm1382, 0.0, %v1476
      %v1481 = vmul.f32 %v1477, -0.08080128
      %v1482 = vmul.f32 %v1478, -0.08080128
      %v1483 = vmul.f32 %v1479, -0.08080128
      %v1484 = vmul.f32 %v1480, -0.08080128
      %v1485 = vadd.f32 %v1457, %v1481
      %v1486 = vadd.f32 %v1458, %v1482
      %v1487 = vadd.f32 %v1459, %v1483
      %v1488 = vadd.f32 %v1460, %v1484
      %v1489 = vmul.f32 %v1477, -0.03772033
      %v1490 = vmul.f32 %v1478, -0.03772033
      %v1491 = vmul.f32 %v1479, -0.03772033
      %v1492 = vmul.f32 %v1480, -0.03772033
      %v1493 = vadd.f32 %v1465, %v1489
      %v1494 = vadd.f32 %v1466, %v1490
      %v1495 = vadd.f32 %v1467, %v1491
      %v1496 = vadd.f32 %v1468, %v1492
      %v1497 = vmul.f32 %v1343, -0.23662178
      %v1498 = vmul.f32 %v1344, -0.23662178
      %v1499 = vmul.f32 %v1345, -0.23662178
      %v1500 = vmul.f32 %v1346, -0.23662178
      %v1501 = vadd.f32 %v1485, %v1497
      %v1502 = vadd.f32 %v1486, %v1498
      %v1503 = vadd.f32 %v1487, %v1499
      %v1504 = vadd.f32 %v1488, %v1500
      %v1505 = vmul.f32 %v1343, -0.0939236
      %v1506 = vmul.f32 %v1344, -0.0939236
      %v1507 = vmul.f32 %v1345, -0.0939236
      %v1508 = vmul.f32 %v1346, -0.0939236
      %v1509 = vadd.f32 %v1493, %v1505
      %v1510 = vadd.f32 %v1494, %v1506
      %v1511 = vadd.f32 %v1495, %v1507
      %v1512 = vadd.f32 %v1496, %v1508
      %1513 = vrot.lane.b32.xlu0 %v1343, 127
      %v1514 = vpop.permute.xlu0 %1513
      %1515 = vrot.lane.b32.xlu0 %v1344, 127
      %v1516 = vpop.permute.xlu0 %1515
      %1517 = vrot.lane.b32.xlu0 %v1345, 127
      %v1518 = vpop.permute.xlu0 %1517
      %1519 = vrot.lane.b32.xlu0 %v1346, 127
      %v1520 = vpop.permute.xlu0 %1519
      %v1521 = vsel %vm1383, 0.0, %v1514
      %v1522 = vsel %vm1383, 0.0, %v1516
      %v1523 = vsel %vm1383, 0.0, %v1518
      %v1524 = vsel %vm1383, 0.0, %v1520
      %v1525 = vmul.f32 %v1521, 0.08959463
      %v1526 = vmul.f32 %v1522, 0.08959463
      %v1527 = vmul.f32 %v1523, 0.08959463
      %v1528 = vmul.f32 %v1524, 0.08959463
      %v1529 = vadd.f32 %v1501, %v1525
      %v1530 = vadd.f32 %v1502, %v1526
      %v1531 = vadd.f32 %v1503, %v1527
      %v1532 = vadd.f32 %v1504, %v1528
      %v1533 = vmul.f32 %v1521, -0.05140966
      %v1534 = vmul.f32 %v1522, -0.05140966
      %v1535 = vmul.f32 %v1523, -0.05140966
      %v1536 = vmul.f32 %v1524, -0.05140966
      %v1537 = vadd.f32 %v1509, %v1533
      %v1538 = vadd.f32 %v1510, %v1534
      %v1539 = vadd.f32 %v1511, %v1535
      %v1540 = vadd.f32 %v1512, %v1536
      %v1541 = vrot.slane %v1343, 1
      %v1542 = vrot.slane %v1344, 1
      %v1543 = vrot.slane %v1345, 1
      %v1544 = vrot.slane %v1346, 1
      %vm1545 = vcmp.lt.s32.totalorder %v1356, 7
      %v1546 = vsel %vm1545, %v1543, %v1544
      %v1547 = vsel %vm1545, %v1542, %v1543
      %v1548 = vsel %vm1545, %v1541, %v1542
      %v1549 = vsel %vm1545, %v1544, %v1541
      %v1550 = vsel %vm1378, 0.0, %v1548
      %v1551 = vsel %vm1379, 0.0, %v1547
      %v1552 = vsel %vm1380, 0.0, %v1546
      %v1553 = vsel %vm1381, 0.0, %v1549
      %1554 = vrot.lane.b32.xlu0 %v1550, 1
      %v1555 = vpop.permute.xlu0 %1554
      %1556 = vrot.lane.b32.xlu0 %v1551, 1
      %v1557 = vpop.permute.xlu0 %1556
      %1558 = vrot.lane.b32.xlu0 %v1552, 1
      %v1559 = vpop.permute.xlu0 %1558
      %1560 = vrot.lane.b32.xlu0 %v1553, 1
      %v1561 = vpop.permute.xlu0 %1560
      %v1562 = vsel %vm1382, 0.0, %v1555
      %v1563 = vsel %vm1382, 0.0, %v1557
      %v1564 = vsel %vm1382, 0.0, %v1559
      %v1565 = vsel %vm1382, 0.0, %v1561
      %v1566 = vmul.f32 %v1562, 0.14628075
      %v1567 = vmul.f32 %v1563, 0.14628075
      %v1568 = vmul.f32 %v1564, 0.14628075
      %v1569 = vmul.f32 %v1565, 0.14628075
      %v1570 = vadd.f32 %v1529, %v1566
      %v1571 = vadd.f32 %v1530, %v1567
      %v1572 = vadd.f32 %v1531, %v1568
      %v1573 = vadd.f32 %v1532, %v1569
      %v1574 = vmul.f32 %v1562, -0.22786525
      %v1575 = vmul.f32 %v1563, -0.22786525
      %v1576 = vmul.f32 %v1564, -0.22786525
      %v1577 = vmul.f32 %v1565, -0.22786525
      %v1578 = vadd.f32 %v1537, %v1574
      %v1579 = vadd.f32 %v1538, %v1575
      %v1580 = vadd.f32 %v1539, %v1576
      %v1581 = vadd.f32 %v1540, %v1577
      %v1582 = vmul.f32 %v1550, -0.059552874
      %v1583 = vmul.f32 %v1551, -0.059552874
      %v1584 = vmul.f32 %v1552, -0.059552874
      %v1585 = vmul.f32 %v1553, -0.059552874
      %v1586 = vadd.f32 %v1570, %v1582
      %v1587 = vadd.f32 %v1571, %v1583
      %v1588 = vadd.f32 %v1572, %v1584
      %v1589 = vadd.f32 %v1573, %v1585
      %v1590 = vmul.f32 %v1550, -0.15395713
      %v1591 = vmul.f32 %v1551, -0.15395713
      %v1592 = vmul.f32 %v1552, -0.15395713
      %v1593 = vmul.f32 %v1553, -0.15395713
      %v1594 = vadd.f32 %v1578, %v1590
      %v1595 = vadd.f32 %v1579, %v1591
      %v1596 = vadd.f32 %v1580, %v1592
      %v1597 = vadd.f32 %v1581, %v1593
      %1598 = vrot.lane.b32.xlu0 %v1550, 127
      %v1599 = vpop.permute.xlu0 %1598
      %1600 = vrot.lane.b32.xlu0 %v1551, 127
      %v1601 = vpop.permute.xlu0 %1600
      %1602 = vrot.lane.b32.xlu0 %v1552, 127
      %v1603 = vpop.permute.xlu0 %1602
      %1604 = vrot.lane.b32.xlu0 %v1553, 127
      %v1605 = vpop.permute.xlu0 %1604
      %v1606 = vsel %vm1383, 0.0, %v1599
      %v1607 = vsel %vm1383, 0.0, %v1601
      %v1608 = vsel %vm1383, 0.0, %v1603
      %v1609 = vsel %vm1383, 0.0, %v1605
      %v1610 = vmul.f32 %v1606, 0.120923474
      %v1611 = vmul.f32 %v1607, 0.120923474
      %v1612 = vmul.f32 %v1608, 0.120923474
      %v1613 = vmul.f32 %v1609, 0.120923474
      %v1614 = vadd.f32 %v1586, %v1610
      %v1615 = vadd.f32 %v1587, %v1611
      %v1616 = vadd.f32 %v1588, %v1612
      %v1617 = vadd.f32 %v1589, %v1613
      %v1618 = vmul.f32 %v1606, 0.07592548
      %v1619 = vmul.f32 %v1607, 0.07592548
      %v1620 = vmul.f32 %v1608, 0.07592548
      %v1621 = vmul.f32 %v1609, 0.07592548
      %v1622 = vadd.f32 %v1594, %v1618
      %v1623 = vadd.f32 %v1595, %v1619
      %v1624 = vadd.f32 %v1596, %v1620
      %v1625 = vadd.f32 %v1597, %v1621
      %v1626 = vrot.slane %v1351, 7
      %v1627 = vrot.slane %v1352, 7
      %v1628 = vrot.slane %v1353, 7
      %v1629 = vrot.slane %v1354, 7
      %v1630 = vsel %vm1388, %v1628, %v1629
      %v1631 = vsel %vm1388, %v1627, %v1628
      %v1632 = vsel %vm1388, %v1626, %v1627
      %v1633 = vsel %vm1388, %v1629, %v1626
      %v1634 = vsel %vm1374, 0.0, %v1633
      %v1635 = vsel %vm1375, 0.0, %v1632
      %v1636 = vsel %vm1376, 0.0, %v1631
      %v1637 = vsel %vm1377, 0.0, %v1630
      %1638 = vrot.lane.b32.xlu0 %v1634, 1
      %v1639 = vpop.permute.xlu0 %1638
      %1640 = vrot.lane.b32.xlu0 %v1635, 1
      %v1641 = vpop.permute.xlu0 %1640
      %1642 = vrot.lane.b32.xlu0 %v1636, 1
      %v1643 = vpop.permute.xlu0 %1642
      %1644 = vrot.lane.b32.xlu0 %v1637, 1
      %v1645 = vpop.permute.xlu0 %1644
      %v1646 = vsel %vm1382, 0.0, %v1639
      %v1647 = vsel %vm1382, 0.0, %v1641
      %v1648 = vsel %vm1382, 0.0, %v1643
      %v1649 = vsel %vm1382, 0.0, %v1645
      %v1650 = vmul.f32 %v1646, 0.14757536
      %v1651 = vmul.f32 %v1647, 0.14757536
      %v1652 = vmul.f32 %v1648, 0.14757536
      %v1653 = vmul.f32 %v1649, 0.14757536
      %v1654 = vadd.f32 %v1614, %v1650
      %v1655 = vadd.f32 %v1615, %v1651
      %v1656 = vadd.f32 %v1616, %v1652
      %v1657 = vadd.f32 %v1617, %v1653
      %v1658 = vmul.f32 %v1646, 0.04076759
      %v1659 = vmul.f32 %v1647, 0.04076759
      %v1660 = vmul.f32 %v1648, 0.04076759
      %v1661 = vmul.f32 %v1649, 0.04076759
      %v1662 = vadd.f32 %v1622, %v1658
      %v1663 = vadd.f32 %v1623, %v1659
      %v1664 = vadd.f32 %v1624, %v1660
      %v1665 = vadd.f32 %v1625, %v1661
      %v1666 = vmul.f32 %v1634, -0.17442565
      %v1667 = vmul.f32 %v1635, -0.17442565
      %v1668 = vmul.f32 %v1636, -0.17442565
      %v1669 = vmul.f32 %v1637, -0.17442565
      %v1670 = vadd.f32 %v1654, %v1666
      %v1671 = vadd.f32 %v1655, %v1667
      %v1672 = vadd.f32 %v1656, %v1668
      %v1673 = vadd.f32 %v1657, %v1669
      %v1674 = vmul.f32 %v1634, -0.0506553
      %v1675 = vmul.f32 %v1635, -0.0506553
      %v1676 = vmul.f32 %v1636, -0.0506553
      %v1677 = vmul.f32 %v1637, -0.0506553
      %v1678 = vadd.f32 %v1662, %v1674
      %v1679 = vadd.f32 %v1663, %v1675
      %v1680 = vadd.f32 %v1664, %v1676
      %v1681 = vadd.f32 %v1665, %v1677
      %1682 = vrot.lane.b32.xlu0 %v1634, 127
      %v1683 = vpop.permute.xlu0 %1682
      %1684 = vrot.lane.b32.xlu0 %v1635, 127
      %v1685 = vpop.permute.xlu0 %1684
      %1686 = vrot.lane.b32.xlu0 %v1636, 127
      %v1687 = vpop.permute.xlu0 %1686
      %1688 = vrot.lane.b32.xlu0 %v1637, 127
      %v1689 = vpop.permute.xlu0 %1688
      %v1690 = vsel %vm1383, 0.0, %v1683
      %v1691 = vsel %vm1383, 0.0, %v1685
      %v1692 = vsel %vm1383, 0.0, %v1687
      %v1693 = vsel %vm1383, 0.0, %v1689
      %v1694 = vmul.f32 %v1690, -0.047017913
      %v1695 = vmul.f32 %v1691, -0.047017913
      %v1696 = vmul.f32 %v1692, -0.047017913
      %v1697 = vmul.f32 %v1693, -0.047017913
      %v1698 = vadd.f32 %v1670, %v1694
      %v1699 = vadd.f32 %v1671, %v1695
      %v1700 = vadd.f32 %v1672, %v1696
      %v1701 = vadd.f32 %v1673, %v1697
      %v1702 = vmul.f32 %v1690, 0.10739102
      %v1703 = vmul.f32 %v1691, 0.10739102
      %v1704 = vmul.f32 %v1692, 0.10739102
      %v1705 = vmul.f32 %v1693, 0.10739102
      %v1706 = vadd.f32 %v1678, %v1702
      %v1707 = vadd.f32 %v1679, %v1703
      %v1708 = vadd.f32 %v1680, %v1704
      %v1709 = vadd.f32 %v1681, %v1705
      %1710 = vrot.lane.b32.xlu0 %v1351, 1
      %v1711 = vpop.permute.xlu0 %1710
      %1712 = vrot.lane.b32.xlu0 %v1352, 1
      %v1713 = vpop.permute.xlu0 %1712
      %1714 = vrot.lane.b32.xlu0 %v1353, 1
      %v1715 = vpop.permute.xlu0 %1714
      %1716 = vrot.lane.b32.xlu0 %v1354, 1
      %v1717 = vpop.permute.xlu0 %1716
      %v1718 = vsel %vm1382, 0.0, %v1711
      %v1719 = vsel %vm1382, 0.0, %v1713
      %v1720 = vsel %vm1382, 0.0, %v1715
      %v1721 = vsel %vm1382, 0.0, %v1717
      %v1722 = vmul.f32 %v1718, -0.07725489
      %v1723 = vmul.f32 %v1719, -0.07725489
      %v1724 = vmul.f32 %v1720, -0.07725489
      %v1725 = vmul.f32 %v1721, -0.07725489
      %v1726 = vadd.f32 %v1698, %v1722
      %v1727 = vadd.f32 %v1699, %v1723
      %v1728 = vadd.f32 %v1700, %v1724
      %v1729 = vadd.f32 %v1701, %v1725
      %v1730 = vmul.f32 %v1718, -0.09428366
      %v1731 = vmul.f32 %v1719, -0.09428366
      %v1732 = vmul.f32 %v1720, -0.09428366
      %v1733 = vmul.f32 %v1721, -0.09428366
      %v1734 = vadd.f32 %v1706, %v1730
      %v1735 = vadd.f32 %v1707, %v1731
      %v1736 = vadd.f32 %v1708, %v1732
      %v1737 = vadd.f32 %v1709, %v1733
      %v1738 = vmul.f32 %v1351, -0.09703968
      %v1739 = vmul.f32 %v1352, -0.09703968
      %v1740 = vmul.f32 %v1353, -0.09703968
      %v1741 = vmul.f32 %v1354, -0.09703968
      %v1742 = vadd.f32 %v1726, %v1738
      %v1743 = vadd.f32 %v1727, %v1739
      %v1744 = vadd.f32 %v1728, %v1740
      %v1745 = vadd.f32 %v1729, %v1741
      %v1746 = vmul.f32 %v1351, -0.19607027
      %v1747 = vmul.f32 %v1352, -0.19607027
      %v1748 = vmul.f32 %v1353, -0.19607027
      %v1749 = vmul.f32 %v1354, -0.19607027
      %v1750 = vadd.f32 %v1734, %v1746
      %v1751 = vadd.f32 %v1735, %v1747
      %v1752 = vadd.f32 %v1736, %v1748
      %v1753 = vadd.f32 %v1737, %v1749
      %1754 = vrot.lane.b32.xlu0 %v1351, 127
      %v1755 = vpop.permute.xlu0 %1754
      %1756 = vrot.lane.b32.xlu0 %v1352, 127
      %v1757 = vpop.permute.xlu0 %1756
      %1758 = vrot.lane.b32.xlu0 %v1353, 127
      %v1759 = vpop.permute.xlu0 %1758
      %1760 = vrot.lane.b32.xlu0 %v1354, 127
      %v1761 = vpop.permute.xlu0 %1760
      %v1762 = vsel %vm1383, 0.0, %v1755
      %v1763 = vsel %vm1383, 0.0, %v1757
      %v1764 = vsel %vm1383, 0.0, %v1759
      %v1765 = vsel %vm1383, 0.0, %v1761
      %v1766 = vmul.f32 %v1762, 0.20961478
      %v1767 = vmul.f32 %v1763, 0.20961478
      %v1768 = vmul.f32 %v1764, 0.20961478
      %v1769 = vmul.f32 %v1765, 0.20961478
      %v1770 = vadd.f32 %v1742, %v1766
      %v1771 = vadd.f32 %v1743, %v1767
      %v1772 = vadd.f32 %v1744, %v1768
      %v1773 = vadd.f32 %v1745, %v1769
      %v1774 = vmul.f32 %v1762, 0.057399344
      %v1775 = vmul.f32 %v1763, 0.057399344
      %v1776 = vmul.f32 %v1764, 0.057399344
      %v1777 = vmul.f32 %v1765, 0.057399344
      %v1778 = vadd.f32 %v1750, %v1774
      %v1779 = vadd.f32 %v1751, %v1775
      %v1780 = vadd.f32 %v1752, %v1776
      %v1781 = vadd.f32 %v1753, %v1777
      %v1782 = vrot.slane %v1351, 1
      %v1783 = vrot.slane %v1352, 1
      %v1784 = vrot.slane %v1353, 1
      %v1785 = vrot.slane %v1354, 1
      %v1786 = vsel %vm1545, %v1784, %v1785
      %v1787 = vsel %vm1545, %v1783, %v1784
      %v1788 = vsel %vm1545, %v1782, %v1783
      %v1789 = vsel %vm1545, %v1785, %v1782
      %v1790 = vsel %vm1378, 0.0, %v1788
      %v1791 = vsel %vm1379, 0.0, %v1787
      %v1792 = vsel %vm1380, 0.0, %v1786
      %v1793 = vsel %vm1381, 0.0, %v1789
      %1794 = vrot.lane.b32.xlu0 %v1790, 1
      %v1795 = vpop.permute.xlu0 %1794
      %1796 = vrot.lane.b32.xlu0 %v1791, 1
      %v1797 = vpop.permute.xlu0 %1796
      %1798 = vrot.lane.b32.xlu0 %v1792, 1
      %v1799 = vpop.permute.xlu0 %1798
      %1800 = vrot.lane.b32.xlu0 %v1793, 1
      %v1801 = vpop.permute.xlu0 %1800
      %v1802 = vsel %vm1382, 0.0, %v1795
      %v1803 = vsel %vm1382, 0.0, %v1797
      %v1804 = vsel %vm1382, 0.0, %v1799
      %v1805 = vsel %vm1382, 0.0, %v1801
      %v1806 = vmul.f32 %v1802, 0.02336106
      %v1807 = vmul.f32 %v1803, 0.02336106
      %v1808 = vmul.f32 %v1804, 0.02336106
      %v1809 = vmul.f32 %v1805, 0.02336106
      %v1810 = vadd.f32 %v1770, %v1806
      %v1811 = vadd.f32 %v1771, %v1807
      %v1812 = vadd.f32 %v1772, %v1808
      %v1813 = vadd.f32 %v1773, %v1809
      %v1814 = vmul.f32 %v1802, 0.13014865
      %v1815 = vmul.f32 %v1803, 0.13014865
      %v1816 = vmul.f32 %v1804, 0.13014865
      %v1817 = vmul.f32 %v1805, 0.13014865
      %v1818 = vadd.f32 %v1778, %v1814
      %v1819 = vadd.f32 %v1779, %v1815
      %v1820 = vadd.f32 %v1780, %v1816
      %v1821 = vadd.f32 %v1781, %v1817
      %v1822 = vmul.f32 %v1790, 0.054556053
      %v1823 = vmul.f32 %v1791, 0.054556053
      %v1824 = vmul.f32 %v1792, 0.054556053
      %v1825 = vmul.f32 %v1793, 0.054556053
      %v1826 = vadd.f32 %v1810, %v1822
      %v1827 = vadd.f32 %v1811, %v1823
      %v1828 = vadd.f32 %v1812, %v1824
      %v1829 = vadd.f32 %v1813, %v1825
      %v1830 = vmul.f32 %v1790, 0.24099343
      %v1831 = vmul.f32 %v1791, 0.24099343
      %v1832 = vmul.f32 %v1792, 0.24099343
      %v1833 = vmul.f32 %v1793, 0.24099343
      %v1834 = vadd.f32 %v1818, %v1830
      %v1835 = vadd.f32 %v1819, %v1831
      %v1836 = vadd.f32 %v1820, %v1832
      %v1837 = vadd.f32 %v1821, %v1833
      %1838 = vrot.lane.b32.xlu0 %v1790, 127
      %v1839 = vpop.permute.xlu0 %1838
      %1840 = vrot.lane.b32.xlu0 %v1791, 127
      %v1841 = vpop.permute.xlu0 %1840
      %1842 = vrot.lane.b32.xlu0 %v1792, 127
      %v1843 = vpop.permute.xlu0 %1842
      %1844 = vrot.lane.b32.xlu0 %v1793, 127
      %v1845 = vpop.permute.xlu0 %1844
      %v1846 = vsel %vm1383, 0.0, %v1839
      %v1847 = vsel %vm1383, 0.0, %v1841
      %v1848 = vsel %vm1383, 0.0, %v1843
      %v1849 = vsel %vm1383, 0.0, %v1845
      %v1850 = vmul.f32 %v1846, -0.09701481
      %v1851 = vmul.f32 %v1847, -0.09701481
      %v1852 = vmul.f32 %v1848, -0.09701481
      %v1853 = vmul.f32 %v1849, -0.09701481
      %v1854 = vadd.f32 %v1826, %v1850
      %v1855 = vadd.f32 %v1827, %v1851
      %v1856 = vadd.f32 %v1828, %v1852
      %v1857 = vadd.f32 %v1829, %v1853
      %v1858 = vmul.f32 %v1846, -0.14193949
      %v1859 = vmul.f32 %v1847, -0.14193949
      %v1860 = vmul.f32 %v1848, -0.14193949
      %v1861 = vmul.f32 %v1849, -0.14193949
      %v1862 = vadd.f32 %v1834, %v1858
      %v1863 = vadd.f32 %v1835, %v1859
      %v1864 = vadd.f32 %v1836, %v1860
      %v1865 = vadd.f32 %v1837, %v1861
      %v1866 = vmul.f32 %v1854, %v767
      %v1867 = vmul.f32 %v1855, %v768
      %v1868 = vmul.f32 %v1856, %v769
      %v1869 = vmul.f32 %v1857, %v770
      %v1870 = vmul.f32 %v1862, %v772
      %v1871 = vmul.f32 %v1863, %v773
      %v1872 = vmul.f32 %v1864, %v774
      %v1873 = vmul.f32 %v1865, %v775
      %v1874 = vsub.f32 %v1866, %v1870
      %v1875 = vsub.f32 %v1867, %v1871
      %v1876 = vsub.f32 %v1868, %v1872
      %v1877 = vsub.f32 %v1869, %v1873
      %v1878 = vmul.f32 %v1854, %v772
      %v1879 = vmul.f32 %v1855, %v773
      %v1880 = vmul.f32 %v1856, %v774
      %v1881 = vmul.f32 %v1857, %v775
      %v1882 = vmul.f32 %v1862, %v767
      %v1883 = vmul.f32 %v1863, %v768
      %v1884 = vmul.f32 %v1864, %v769
      %v1885 = vmul.f32 %v1865, %v770
      %v1886 = vadd.f32 %v1878, %v1882
      %v1887 = vadd.f32 %v1879, %v1883
      %v1888 = vadd.f32 %v1880, %v1884
      %v1889 = vadd.f32 %v1881, %v1885
      %v1890 = vpack.c.bf16 %v1875, %v1874
      %v1891 = vpack.c.bf16 %v1877, %v1876
      %1892 = vmatprep.subr.bf16.mxu0 %v1080
      %1893 = vmatpush1.bf16.msra.mxu0 %v1079
      %1894 = vmatprep.subr.bf16.mxu0 %v1078
      %1895 = vmatpush1.bf16.msra.mxu0 %v1077
      %1896 = vmatprep.subr.bf16.mxu0 %v1076
      %1897 = vmatpush1.bf16.msra.mxu0 %v1075
      %1898 = vmatprep.subr.bf16.mxu0 %v1074
      %1899 = vmatpush1.bf16.msra.mxu0 %v1073
      %1900 = vmatprep.subr.bf16.mxu0 %v1072
      %1901 = vmatpush1.bf16.msra.mxu0 %v1071
      %1902 = vmatprep.subr.bf16.mxu0 %v1070
      %1903 = vmatpush1.bf16.msra.mxu0 %v1069
      %1904 = vmatprep.subr.bf16.mxu0 %v1068
      %1905 = vmatpush1.bf16.msra.mxu0 %v1067
      %1906 = vmatprep.subr.bf16.mxu0 %v1066
      %1907 = vmatpush1.bf16.msra.mxu0 %v1065
      %1908 = vmatprep.subr.bf16.mxu0 0
      %1909 = vmatpush2.bf16.msra.mxu0 0
      %1910 = vmatprep.subr.bf16.mxu0 0
      %1911 = vmatpush2.bf16.msra.mxu0 0
      %1912 = vmatprep.subr.bf16.mxu0 0
      %1913 = vmatpush2.bf16.msra.mxu0 0
      %1914 = vmatprep.subr.bf16.mxu0 0
      %1915 = vmatpush2.bf16.msra.mxu0 0
      %1916 = vmatprep.subr.bf16.mxu0 0
      %1917 = vmatpush2.bf16.msra.mxu0 0
      %1918 = vmatprep.subr.bf16.mxu0 0
      %1919 = vmatpush2.bf16.msra.mxu0 0
      %1920 = vmatprep.subr.bf16.mxu0 0
      %1921 = vmatpush2.bf16.msra.mxu0 0
      %1922 = vmatprep.subr.bf16.mxu0 0
      %1923 = vmatpush2.bf16.msra.mxu0 0
      %1924 = vmatprep.mubr.bf16.mxu0 0
      %1925 = vmatmul.mubr.bf16.gmra.mxu0 %v1890
      %v1926 = vpop.f32.mrf.mxu0
      %v1927 = vadd.f32 0.0, %v1926
      %v1928 = vpop.f32.mrf.mxu0
      %v1929 = vadd.f32 0.0, %v1928
      %v1930 = vpop.f32.mrf.mxu0
      %v1931 = vadd.f32 0.0, %v1930
      %v1932 = vpop.f32.mrf.mxu0
      %v1933 = vadd.f32 0.0, %v1932
      %1934 = vmatprep.mubr.bf16.mxu0 0
      %1935 = vmatmul.mubr.bf16.gmra.mxu0 %v1891
      %v1936 = vpop.f32.mrf.mxu0
      %v1937 = vadd.f32 0.0, %v1936
      %v1938 = vpop.f32.mrf.mxu0
      %v1939 = vadd.f32 0.0, %v1938
      %v1940 = vpop.f32.mrf.mxu0
      %v1941 = vadd.f32 0.0, %v1940
      %v1942 = vpop.f32.mrf.mxu0
      %v1943 = vadd.f32 0.0, %v1942
      %1944 = vdwg.mxu0
      %v1945 = vpack.c.bf16 %v1887, %v1886
      %v1946 = vpack.c.bf16 %v1889, %v1888
      %1947 = vmatprep.subr.bf16.mxu0 %v1080
      %1948 = vmatpush1.bf16.msra.mxu0 %v1079
      %1949 = vmatprep.subr.bf16.mxu0 %v1078
      %1950 = vmatpush1.bf16.msra.mxu0 %v1077
      %1951 = vmatprep.subr.bf16.mxu0 %v1076
      %1952 = vmatpush1.bf16.msra.mxu0 %v1075
      %1953 = vmatprep.subr.bf16.mxu0 %v1074
      %1954 = vmatpush1.bf16.msra.mxu0 %v1073
      %1955 = vmatprep.subr.bf16.mxu0 %v1072
      %1956 = vmatpush1.bf16.msra.mxu0 %v1071
      %1957 = vmatprep.subr.bf16.mxu0 %v1070
      %1958 = vmatpush1.bf16.msra.mxu0 %v1069
      %1959 = vmatprep.subr.bf16.mxu0 %v1068
      %1960 = vmatpush1.bf16.msra.mxu0 %v1067
      %1961 = vmatprep.subr.bf16.mxu0 %v1066
      %1962 = vmatpush1.bf16.msra.mxu0 %v1065
      %1963 = vmatprep.subr.bf16.mxu0 0
      %1964 = vmatpush2.bf16.msra.mxu0 0
      %1965 = vmatprep.subr.bf16.mxu0 0
      %1966 = vmatpush2.bf16.msra.mxu0 0
      %1967 = vmatprep.subr.bf16.mxu0 0
      %1968 = vmatpush2.bf16.msra.mxu0 0
      %1969 = vmatprep.subr.bf16.mxu0 0
      %1970 = vmatpush2.bf16.msra.mxu0 0
      %1971 = vmatprep.subr.bf16.mxu0 0
      %1972 = vmatpush2.bf16.msra.mxu0 0
      %1973 = vmatprep.subr.bf16.mxu0 0
      %1974 = vmatpush2.bf16.msra.mxu0 0
      %1975 = vmatprep.subr.bf16.mxu0 0
      %1976 = vmatpush2.bf16.msra.mxu0 0
      %1977 = vmatprep.subr.bf16.mxu0 0
      %1978 = vmatpush2.bf16.msra.mxu0 0
      %1979 = vmatprep.mubr.bf16.mxu0 0
      %1980 = vmatmul.mubr.bf16.gmra.mxu0 %v1945
      %v1981 = vpop.f32.mrf.mxu0
      %v1982 = vadd.f32 0.0, %v1981
      %v1983 = vpop.f32.mrf.mxu0
      %v1984 = vadd.f32 0.0, %v1983
      %v1985 = vpop.f32.mrf.mxu0
      %v1986 = vadd.f32 0.0, %v1985
      %v1987 = vpop.f32.mrf.mxu0
      %v1988 = vadd.f32 0.0, %v1987
      %1989 = vmatprep.mubr.bf16.mxu0 0
      %1990 = vmatmul.mubr.bf16.gmra.mxu0 %v1946
      %v1991 = vpop.f32.mrf.mxu0
      %v1992 = vadd.f32 0.0, %v1991
      %v1993 = vpop.f32.mrf.mxu0
      %v1994 = vadd.f32 0.0, %v1993
      %v1995 = vpop.f32.mrf.mxu0
      %v1996 = vadd.f32 0.0, %v1995
      %v1997 = vpop.f32.mrf.mxu0
      %v1998 = vadd.f32 0.0, %v1997
      %1999 = vdwg.mxu0
      %v2000 = vsub.f32 %v1927, %v1984
      %v2001 = vsub.f32 %v1931, %v1988
      %v2002 = vsub.f32 %v1937, %v1994
      %v2003 = vsub.f32 %v1941, %v1998
      %v2004 = vadd.f32 %v1929, %v1982
      %v2005 = vadd.f32 %v1933, %v1986
      %v2006 = vadd.f32 %v1939, %v1992
      %v2007 = vadd.f32 %v1943, %v1996
      %v2008 = vmul.f32 %v2000, %v767
      %v2009 = vmul.f32 %v2001, %v768
      %v2010 = vmul.f32 %v2002, %v769
      %v2011 = vmul.f32 %v2003, %v770
      %v2012 = vmul.f32 %v2004, %v772
      %v2013 = vmul.f32 %v2005, %v773
      %v2014 = vmul.f32 %v2006, %v774
      %v2015 = vmul.f32 %v2007, %v775
      %v2016 = vadd.f32 %v2008, %v2012
      %v2017 = vadd.f32 %v2009, %v2013
      %v2018 = vadd.f32 %v2010, %v2014
      %v2019 = vadd.f32 %v2011, %v2015
      %v2020 = vmul.f32 %v2004, %v767
      %v2021 = vmul.f32 %v2005, %v768
      %v2022 = vmul.f32 %v2006, %v769
      %v2023 = vmul.f32 %v2007, %v770
      %v2024 = vmul.f32 %v2000, %v772
      %v2025 = vmul.f32 %v2001, %v773
      %v2026 = vmul.f32 %v2002, %v774
      %v2027 = vmul.f32 %v2003, %v775
      %v2028 = vsub.f32 %v2020, %v2024
      %v2029 = vsub.f32 %v2021, %v2025
      %v2030 = vsub.f32 %v2022, %v2026
      %v2031 = vsub.f32 %v2023, %v2027
      %v2032 = vpack.c.bf16 %v2017, %v2016
      %v2033 = vpack.c.bf16 %v2019, %v2018
      %2034 = vmatprep.subr.bf16.mxu0 0
      %2035 = vmatpush1.bf16.msra.mxu0 %v857
      %2036 = vmatprep.subr.bf16.mxu0 0
      %2037 = vmatpush1.bf16.msra.mxu0 %v856
      %2038 = vmatprep.subr.bf16.mxu0 0
      %2039 = vmatpush1.bf16.msra.mxu0 %v855
      %2040 = vmatprep.subr.bf16.mxu0 0
      %2041 = vmatpush1.bf16.msra.mxu0 %v854
      %2042 = vmatprep.subr.bf16.mxu0 0
      %2043 = vmatpush1.bf16.msra.mxu0 %v853
      %2044 = vmatprep.subr.bf16.mxu0 0
      %2045 = vmatpush1.bf16.msra.mxu0 %v852
      %2046 = vmatprep.subr.bf16.mxu0 0
      %2047 = vmatpush1.bf16.msra.mxu0 %v851
      %2048 = vmatprep.subr.bf16.mxu0 0
      %2049 = vmatpush1.bf16.msra.mxu0 %v850
      %2050 = vmatprep.subr.bf16.mxu0 0
      %2051 = vmatpush2.bf16.msra.mxu0 0
      %2052 = vmatprep.subr.bf16.mxu0 0
      %2053 = vmatpush2.bf16.msra.mxu0 0
      %2054 = vmatprep.subr.bf16.mxu0 0
      %2055 = vmatpush2.bf16.msra.mxu0 0
      %2056 = vmatprep.subr.bf16.mxu0 0
      %2057 = vmatpush2.bf16.msra.mxu0 0
      %2058 = vmatprep.subr.bf16.mxu0 0
      %2059 = vmatpush2.bf16.msra.mxu0 0
      %2060 = vmatprep.subr.bf16.mxu0 0
      %2061 = vmatpush2.bf16.msra.mxu0 0
      %2062 = vmatprep.subr.bf16.mxu0 0
      %2063 = vmatpush2.bf16.msra.mxu0 0
      %2064 = vmatprep.subr.bf16.mxu0 0
      %2065 = vmatpush2.bf16.msra.mxu0 0
      %2066 = vmatprep.mubr.bf16.mxu0 0
      %2067 = vmatmul.mubr.bf16.gmra.mxu0 %v2032
      %v2068 = vpop.f32.mrf.mxu0
      %v2069 = vadd.f32 0.0, %v2068
      %v2070 = vpop.f32.mrf.mxu0
      %v2071 = vpop.f32.mrf.mxu0
      %v2072 = vadd.f32 0.0, %v2071
      %v2073 = vpop.f32.mrf.mxu0
      %2074 = vmatprep.mubr.bf16.mxu0 0
      %2075 = vmatmul.mubr.bf16.gmra.mxu0 %v2033
      %v2076 = vpop.f32.mrf.mxu0
      %v2077 = vadd.f32 0.0, %v2076
      %v2078 = vpop.f32.mrf.mxu0
      %v2079 = vpop.f32.mrf.mxu0
      %v2080 = vadd.f32 0.0, %v2079
      %v2081 = vpop.f32.mrf.mxu0
      %2082 = vdwg.mxu0
      %v2083 = vpack.c.bf16 %v2029, %v2028
      %v2084 = vpack.c.bf16 %v2031, %v2030
      %2085 = vmatprep.subr.bf16.mxu0 0
      %2086 = vmatpush1.bf16.msra.mxu0 %v857
      %2087 = vmatprep.subr.bf16.mxu0 0
      %2088 = vmatpush1.bf16.msra.mxu0 %v856
      %2089 = vmatprep.subr.bf16.mxu0 0
      %2090 = vmatpush1.bf16.msra.mxu0 %v855
      %2091 = vmatprep.subr.bf16.mxu0 0
      %2092 = vmatpush1.bf16.msra.mxu0 %v854
      %2093 = vmatprep.subr.bf16.mxu0 0
      %2094 = vmatpush1.bf16.msra.mxu0 %v853
      %2095 = vmatprep.subr.bf16.mxu0 0
      %2096 = vmatpush1.bf16.msra.mxu0 %v852
      %2097 = vmatprep.subr.bf16.mxu0 0
      %2098 = vmatpush1.bf16.msra.mxu0 %v851
      %2099 = vmatprep.subr.bf16.mxu0 0
      %2100 = vmatpush1.bf16.msra.mxu0 %v850
      %2101 = vmatprep.subr.bf16.mxu0 0
      %2102 = vmatpush2.bf16.msra.mxu0 0
      %2103 = vmatprep.subr.bf16.mxu0 0
      %2104 = vmatpush2.bf16.msra.mxu0 0
      %2105 = vmatprep.subr.bf16.mxu0 0
      %2106 = vmatpush2.bf16.msra.mxu0 0
      %2107 = vmatprep.subr.bf16.mxu0 0
      %2108 = vmatpush2.bf16.msra.mxu0 0
      %2109 = vmatprep.subr.bf16.mxu0 0
      %2110 = vmatpush2.bf16.msra.mxu0 0
      %2111 = vmatprep.subr.bf16.mxu0 0
      %2112 = vmatpush2.bf16.msra.mxu0 0
      %2113 = vmatprep.subr.bf16.mxu0 0
      %2114 = vmatpush2.bf16.msra.mxu0 0
      %2115 = vmatprep.subr.bf16.mxu0 0
      %2116 = vmatpush2.bf16.msra.mxu0 0
      %2117 = vmatprep.mubr.bf16.mxu0 0
      %2118 = vmatmul.mubr.bf16.gmra.mxu0 %v2083
      %v2119 = vpop.f32.mrf.mxu0
      %v2120 = vadd.f32 0.0, %v2119
      %v2121 = vpop.f32.mrf.mxu0
      %v2122 = vpop.f32.mrf.mxu0
      %v2123 = vadd.f32 0.0, %v2122
      %v2124 = vpop.f32.mrf.mxu0
      %2125 = vmatprep.mubr.bf16.mxu0 0
      %2126 = vmatmul.mubr.bf16.gmra.mxu0 %v2084
      %v2127 = vpop.f32.mrf.mxu0
      %v2128 = vadd.f32 0.0, %v2127
      %v2129 = vpop.f32.mrf.mxu0
      %v2130 = vpop.f32.mrf.mxu0
      %v2131 = vadd.f32 0.0, %v2130
      %v2132 = vpop.f32.mrf.mxu0
      %2133 = vdwg.mxu0
      %v2134 = vadd.f32 %v1854, %v901
      %v2135 = vadd.f32 %v1855, %v904
      %v2136 = vadd.f32 %v1856, %v909
      %v2137 = vadd.f32 %v1857, %v912
      %v2138 = vsub.f32 %v2134, %v2069
      %v2139 = vsub.f32 %v2135, %v2072
      %v2140 = vsub.f32 %v2136, %v2077
      %v2141 = vsub.f32 %v2137, %v2080
      %v2142 = vadd.f32 %v1862, %v952
      %v2143 = vadd.f32 %v1863, %v955
      %v2144 = vadd.f32 %v1864, %v960
      %v2145 = vadd.f32 %v1865, %v963
      %v2146 = vsub.f32 %v2142, %v2120
      %v2147 = vsub.f32 %v2143, %v2123
      %v2148 = vsub.f32 %v2144, %v2128
      %v2149 = vsub.f32 %v2145, %v2131
      %v2150 = vrot.slane %v2138, 7
      %v2151 = vrot.slane %v2139, 7
      %v2152 = vrot.slane %v2140, 7
      %v2153 = vrot.slane %v2141, 7
      %v2154 = vsel %vm1388, %v2152, %v2153
      %v2155 = vsel %vm1388, %v2151, %v2152
      %v2156 = vsel %vm1388, %v2150, %v2151
      %v2157 = vsel %vm1388, %v2153, %v2150
      %v2158 = vsel %vm1374, 0.0, %v2157
      %v2159 = vsel %vm1375, 0.0, %v2156
      %v2160 = vsel %vm1376, 0.0, %v2155
      %v2161 = vsel %vm1377, 0.0, %v2154
      %2162 = vrot.lane.b32.xlu0 %v2158, 1
      %v2163 = vpop.permute.xlu0 %2162
      %2164 = vrot.lane.b32.xlu0 %v2159, 1
      %v2165 = vpop.permute.xlu0 %2164
      %2166 = vrot.lane.b32.xlu0 %v2160, 1
      %v2167 = vpop.permute.xlu0 %2166
      %2168 = vrot.lane.b32.xlu0 %v2161, 1
      %v2169 = vpop.permute.xlu0 %2168
      %v2170 = vsel %vm1382, 0.0, %v2163
      %v2171 = vsel %vm1382, 0.0, %v2165
      %v2172 = vsel %vm1382, 0.0, %v2167
      %v2173 = vsel %vm1382, 0.0, %v2169
      %v2174 = vmul.f32 %v2170, 0.04674345
      %v2175 = vmul.f32 %v2171, 0.04674345
      %v2176 = vmul.f32 %v2172, 0.04674345
      %v2177 = vmul.f32 %v2173, 0.04674345
      %v2178 = vadd.f32 %v2174, -0.012941693
      %v2179 = vadd.f32 %v2175, -0.012941693
      %v2180 = vadd.f32 %v2176, -0.012941693
      %v2181 = vadd.f32 %v2177, -0.012941693
      %v2182 = vmul.f32 %v2170, 0.054594617
      %v2183 = vmul.f32 %v2171, 0.054594617
      %v2184 = vmul.f32 %v2172, 0.054594617
      %v2185 = vmul.f32 %v2173, 0.054594617
      %v2186 = vadd.f32 %v2182, -0.001214472
      %v2187 = vadd.f32 %v2183, -0.001214472
      %v2188 = vadd.f32 %v2184, -0.001214472
      %v2189 = vadd.f32 %v2185, -0.001214472
      %v2190 = vmul.f32 %v2158, 0.04792246
      %v2191 = vmul.f32 %v2159, 0.04792246
      %v2192 = vmul.f32 %v2160, 0.04792246
      %v2193 = vmul.f32 %v2161, 0.04792246
      %v2194 = vadd.f32 %v2178, %v2190
      %v2195 = vadd.f32 %v2179, %v2191
      %v2196 = vadd.f32 %v2180, %v2192
      %v2197 = vadd.f32 %v2181, %v2193
      %v2198 = vmul.f32 %v2158, 0.021978509
      %v2199 = vmul.f32 %v2159, 0.021978509
      %v2200 = vmul.f32 %v2160, 0.021978509
      %v2201 = vmul.f32 %v2161, 0.021978509
      %v2202 = vadd.f32 %v2186, %v2198
      %v2203 = vadd.f32 %v2187, %v2199
      %v2204 = vadd.f32 %v2188, %v2200
      %v2205 = vadd.f32 %v2189, %v2201
      %2206 = vrot.lane.b32.xlu0 %v2158, 127
      %v2207 = vpop.permute.xlu0 %2206
      %2208 = vrot.lane.b32.xlu0 %v2159, 127
      %v2209 = vpop.permute.xlu0 %2208
      %2210 = vrot.lane.b32.xlu0 %v2160, 127
      %v2211 = vpop.permute.xlu0 %2210
      %2212 = vrot.lane.b32.xlu0 %v2161, 127
      %v2213 = vpop.permute.xlu0 %2212
      %v2214 = vsel %vm1383, 0.0, %v2207
      %v2215 = vsel %vm1383, 0.0, %v2209
      %v2216 = vsel %vm1383, 0.0, %v2211
      %v2217 = vsel %vm1383, 0.0, %v2213
      %v2218 = vmul.f32 %v2214, -0.02416519
      %v2219 = vmul.f32 %v2215, -0.02416519
      %v2220 = vmul.f32 %v2216, -0.02416519
      %v2221 = vmul.f32 %v2217, -0.02416519
      %v2222 = vadd.f32 %v2194, %v2218
      %v2223 = vadd.f32 %v2195, %v2219
      %v2224 = vadd.f32 %v2196, %v2220
      %v2225 = vadd.f32 %v2197, %v2221
      %v2226 = vmul.f32 %v2214, -0.045455277
      %v2227 = vmul.f32 %v2215, -0.045455277
      %v2228 = vmul.f32 %v2216, -0.045455277
      %v2229 = vmul.f32 %v2217, -0.045455277
      %v2230 = vadd.f32 %v2202, %v2226
      %v2231 = vadd.f32 %v2203, %v2227
      %v2232 = vadd.f32 %v2204, %v2228
      %v2233 = vadd.f32 %v2205, %v2229
      %2234 = vrot.lane.b32.xlu0 %v2138, 1
      %v2235 = vpop.permute.xlu0 %2234
      %2236 = vrot.lane.b32.xlu0 %v2139, 1
      %v2237 = vpop.permute.xlu0 %2236
      %2238 = vrot.lane.b32.xlu0 %v2140, 1
      %v2239 = vpop.permute.xlu0 %2238
      %2240 = vrot.lane.b32.xlu0 %v2141, 1
      %v2241 = vpop.permute.xlu0 %2240
      %v2242 = vsel %vm1382, 0.0, %v2235
      %v2243 = vsel %vm1382, 0.0, %v2237
      %v2244 = vsel %vm1382, 0.0, %v2239
      %v2245 = vsel %vm1382, 0.0, %v2241
      %v2246 = vmul.f32 %v2242, -0.037963737
      %v2247 = vmul.f32 %v2243, -0.037963737
      %v2248 = vmul.f32 %v2244, -0.037963737
      %v2249 = vmul.f32 %v2245, -0.037963737
      %v2250 = vadd.f32 %v2222, %v2246
      %v2251 = vadd.f32 %v2223, %v2247
      %v2252 = vadd.f32 %v2224, %v2248
      %v2253 = vadd.f32 %v2225, %v2249
      %v2254 = vmul.f32 %v2242, -0.25061482
      %v2255 = vmul.f32 %v2243, -0.25061482
      %v2256 = vmul.f32 %v2244, -0.25061482
      %v2257 = vmul.f32 %v2245, -0.25061482
      %v2258 = vadd.f32 %v2230, %v2254
      %v2259 = vadd.f32 %v2231, %v2255
      %v2260 = vadd.f32 %v2232, %v2256
      %v2261 = vadd.f32 %v2233, %v2257
      %v2262 = vmul.f32 %v2138, -0.19037591
      %v2263 = vmul.f32 %v2139, -0.19037591
      %v2264 = vmul.f32 %v2140, -0.19037591
      %v2265 = vmul.f32 %v2141, -0.19037591
      %v2266 = vadd.f32 %v2250, %v2262
      %v2267 = vadd.f32 %v2251, %v2263
      %v2268 = vadd.f32 %v2252, %v2264
      %v2269 = vadd.f32 %v2253, %v2265
      %v2270 = vmul.f32 %v2138, 0.015704876
      %v2271 = vmul.f32 %v2139, 0.015704876
      %v2272 = vmul.f32 %v2140, 0.015704876
      %v2273 = vmul.f32 %v2141, 0.015704876
      %v2274 = vadd.f32 %v2258, %v2270
      %v2275 = vadd.f32 %v2259, %v2271
      %v2276 = vadd.f32 %v2260, %v2272
      %v2277 = vadd.f32 %v2261, %v2273
      %2278 = vrot.lane.b32.xlu0 %v2138, 127
      %v2279 = vpop.permute.xlu0 %2278
      %2280 = vrot.lane.b32.xlu0 %v2139, 127
      %v2281 = vpop.permute.xlu0 %2280
      %2282 = vrot.lane.b32.xlu0 %v2140, 127
      %v2283 = vpop.permute.xlu0 %2282
      %2284 = vrot.lane.b32.xlu0 %v2141, 127
      %v2285 = vpop.permute.xlu0 %2284
      %v2286 = vsel %vm1383, 0.0, %v2279
      %v2287 = vsel %vm1383, 0.0, %v2281
      %v2288 = vsel %vm1383, 0.0, %v2283
      %v2289 = vsel %vm1383, 0.0, %v2285
      %v2290 = vmul.f32 %v2286, -0.16843377
      %v2291 = vmul.f32 %v2287, -0.16843377
      %v2292 = vmul.f32 %v2288, -0.16843377
      %v2293 = vmul.f32 %v2289, -0.16843377
      %v2294 = vadd.f32 %v2266, %v2290
      %v2295 = vadd.f32 %v2267, %v2291
      %v2296 = vadd.f32 %v2268, %v2292
      %v2297 = vadd.f32 %v2269, %v2293
      %v2298 = vmul.f32 %v2286, 0.06834512
      %v2299 = vmul.f32 %v2287, 0.06834512
      %v2300 = vmul.f32 %v2288, 0.06834512
      %v2301 = vmul.f32 %v2289, 0.06834512
      %v2302 = vadd.f32 %v2274, %v2298
      %v2303 = vadd.f32 %v2275, %v2299
      %v2304 = vadd.f32 %v2276, %v2300
      %v2305 = vadd.f32 %v2277, %v2301
      %v2306 = vrot.slane %v2138, 1
      %v2307 = vrot.slane %v2139, 1
      %v2308 = vrot.slane %v2140, 1
      %v2309 = vrot.slane %v2141, 1
      %v2310 = vsel %vm1545, %v2308, %v2309
      %v2311 = vsel %vm1545, %v2307, %v2308
      %v2312 = vsel %vm1545, %v2306, %v2307
      %v2313 = vsel %vm1545, %v2309, %v2306
      %v2314 = vsel %vm1378, 0.0, %v2312
      %v2315 = vsel %vm1379, 0.0, %v2311
      %v2316 = vsel %vm1380, 0.0, %v2310
      %v2317 = vsel %vm1381, 0.0, %v2313
      %2318 = vrot.lane.b32.xlu0 %v2314, 1
      %v2319 = vpop.permute.xlu0 %2318
      %2320 = vrot.lane.b32.xlu0 %v2315, 1
      %v2321 = vpop.permute.xlu0 %2320
      %2322 = vrot.lane.b32.xlu0 %v2316, 1
      %v2323 = vpop.permute.xlu0 %2322
      %2324 = vrot.lane.b32.xlu0 %v2317, 1
      %v2325 = vpop.permute.xlu0 %2324
      %v2326 = vsel %vm1382, 0.0, %v2319
      %v2327 = vsel %vm1382, 0.0, %v2321
      %v2328 = vsel %vm1382, 0.0, %v2323
      %v2329 = vsel %vm1382, 0.0, %v2325
      %v2330 = vmul.f32 %v2326, 0.055355318
      %v2331 = vmul.f32 %v2327, 0.055355318
      %v2332 = vmul.f32 %v2328, 0.055355318
      %v2333 = vmul.f32 %v2329, 0.055355318
      %v2334 = vadd.f32 %v2294, %v2330
      %v2335 = vadd.f32 %v2295, %v2331
      %v2336 = vadd.f32 %v2296, %v2332
      %v2337 = vadd.f32 %v2297, %v2333
      %v2338 = vmul.f32 %v2326, -0.087850764
      %v2339 = vmul.f32 %v2327, -0.087850764
      %v2340 = vmul.f32 %v2328, -0.087850764
      %v2341 = vmul.f32 %v2329, -0.087850764
      %v2342 = vadd.f32 %v2302, %v2338
      %v2343 = vadd.f32 %v2303, %v2339
      %v2344 = vadd.f32 %v2304, %v2340
      %v2345 = vadd.f32 %v2305, %v2341
      %v2346 = vmul.f32 %v2314, 0.024958773
      %v2347 = vmul.f32 %v2315, 0.024958773
      %v2348 = vmul.f32 %v2316, 0.024958773
      %v2349 = vmul.f32 %v2317, 0.024958773
      %v2350 = vadd.f32 %v2334, %v2346
      %v2351 = vadd.f32 %v2335, %v2347
      %v2352 = vadd.f32 %v2336, %v2348
      %v2353 = vadd.f32 %v2337, %v2349
      %v2354 = vmul.f32 %v2314, -0.068887144
      %v2355 = vmul.f32 %v2315, -0.068887144
      %v2356 = vmul.f32 %v2316, -0.068887144
      %v2357 = vmul.f32 %v2317, -0.068887144
      %v2358 = vadd.f32 %v2342, %v2354
      %v2359 = vadd.f32 %v2343, %v2355
      %v2360 = vadd.f32 %v2344, %v2356
      %v2361 = vadd.f32 %v2345, %v2357
      %2362 = vrot.lane.b32.xlu0 %v2314, 127
      %v2363 = vpop.permute.xlu0 %2362
      %2364 = vrot.lane.b32.xlu0 %v2315, 127
      %v2365 = vpop.permute.xlu0 %2364
      %2366 = vrot.lane.b32.xlu0 %v2316, 127
      %v2367 = vpop.permute.xlu0 %2366
      %2368 = vrot.lane.b32.xlu0 %v2317, 127
      %v2369 = vpop.permute.xlu0 %2368
      %v2370 = vsel %vm1383, 0.0, %v2363
      %v2371 = vsel %vm1383, 0.0, %v2365
      %v2372 = vsel %vm1383, 0.0, %v2367
      %v2373 = vsel %vm1383, 0.0, %v2369
      %v2374 = vmul.f32 %v2370, 0.12058579
      %v2375 = vmul.f32 %v2371, 0.12058579
      %v2376 = vmul.f32 %v2372, 0.12058579
      %v2377 = vmul.f32 %v2373, 0.12058579
      %v2378 = vadd.f32 %v2350, %v2374
      %v2379 = vadd.f32 %v2351, %v2375
      %v2380 = vadd.f32 %v2352, %v2376
      %v2381 = vadd.f32 %v2353, %v2377
      %v2382 = vmul.f32 %v2370, 0.087950334
      %v2383 = vmul.f32 %v2371, 0.087950334
      %v2384 = vmul.f32 %v2372, 0.087950334
      %v2385 = vmul.f32 %v2373, 0.087950334
      %v2386 = vadd.f32 %v2358, %v2382
      %v2387 = vadd.f32 %v2359, %v2383
      %v2388 = vadd.f32 %v2360, %v2384
      %v2389 = vadd.f32 %v2361, %v2385
      %v2390 = vrot.slane %v2146, 7
      %v2391 = vrot.slane %v2147, 7
      %v2392 = vrot.slane %v2148, 7
      %v2393 = vrot.slane %v2149, 7
      %v2394 = vsel %vm1388, %v2392, %v2393
      %v2395 = vsel %vm1388, %v2391, %v2392
      %v2396 = vsel %vm1388, %v2390, %v2391
      %v2397 = vsel %vm1388, %v2393, %v2390
      %v2398 = vsel %vm1374, 0.0, %v2397
      %v2399 = vsel %vm1375, 0.0, %v2396
      %v2400 = vsel %vm1376, 0.0, %v2395
      %v2401 = vsel %vm1377, 0.0, %v2394
      %2402 = vrot.lane.b32.xlu0 %v2398, 1
      %v2403 = vpop.permute.xlu0 %2402
      %2404 = vrot.lane.b32.xlu0 %v2399, 1
      %v2405 = vpop.permute.xlu0 %2404
      %2406 = vrot.lane.b32.xlu0 %v2400, 1
      %v2407 = vpop.permute.xlu0 %2406
      %2408 = vrot.lane.b32.xlu0 %v2401, 1
      %v2409 = vpop.permute.xlu0 %2408
      %v2410 = vsel %vm1382, 0.0, %v2403
      %v2411 = vsel %vm1382, 0.0, %v2405
      %v2412 = vsel %vm1382, 0.0, %v2407
      %v2413 = vsel %vm1382, 0.0, %v2409
      %v2414 = vmul.f32 %v2410, -0.0156564
      %v2415 = vmul.f32 %v2411, -0.0156564
      %v2416 = vmul.f32 %v2412, -0.0156564
      %v2417 = vmul.f32 %v2413, -0.0156564
      %v2418 = vadd.f32 %v2378, %v2414
      %v2419 = vadd.f32 %v2379, %v2415
      %v2420 = vadd.f32 %v2380, %v2416
      %v2421 = vadd.f32 %v2381, %v2417
      %v2422 = vmul.f32 %v2410, -0.013164218
      %v2423 = vmul.f32 %v2411, -0.013164218
      %v2424 = vmul.f32 %v2412, -0.013164218
      %v2425 = vmul.f32 %v2413, -0.013164218
      %v2426 = vadd.f32 %v2386, %v2422
      %v2427 = vadd.f32 %v2387, %v2423
      %v2428 = vadd.f32 %v2388, %v2424
      %v2429 = vadd.f32 %v2389, %v2425
      %v2430 = vmul.f32 %v2398, -0.00426945
      %v2431 = vmul.f32 %v2399, -0.00426945
      %v2432 = vmul.f32 %v2400, -0.00426945
      %v2433 = vmul.f32 %v2401, -0.00426945
      %v2434 = vadd.f32 %v2418, %v2430
      %v2435 = vadd.f32 %v2419, %v2431
      %v2436 = vadd.f32 %v2420, %v2432
      %v2437 = vadd.f32 %v2421, %v2433
      %v2438 = vmul.f32 %v2398, 0.007639034
      %v2439 = vmul.f32 %v2399, 0.007639034
      %v2440 = vmul.f32 %v2400, 0.007639034
      %v2441 = vmul.f32 %v2401, 0.007639034
      %v2442 = vadd.f32 %v2426, %v2438
      %v2443 = vadd.f32 %v2427, %v2439
      %v2444 = vadd.f32 %v2428, %v2440
      %v2445 = vadd.f32 %v2429, %v2441
      %2446 = vrot.lane.b32.xlu0 %v2398, 127
      %v2447 = vpop.permute.xlu0 %2446
      %2448 = vrot.lane.b32.xlu0 %v2399, 127
      %v2449 = vpop.permute.xlu0 %2448
      %2450 = vrot.lane.b32.xlu0 %v2400, 127
      %v2451 = vpop.permute.xlu0 %2450
      %2452 = vrot.lane.b32.xlu0 %v2401, 127
      %v2453 = vpop.permute.xlu0 %2452
      %v2454 = vsel %vm1383, 0.0, %v2447
      %v2455 = vsel %vm1383, 0.0, %v2449
      %v2456 = vsel %vm1383, 0.0, %v2451
      %v2457 = vsel %vm1383, 0.0, %v2453
      %v2458 = vmul.f32 %v2454, -0.01227923
      %v2459 = vmul.f32 %v2455, -0.01227923
      %v2460 = vmul.f32 %v2456, -0.01227923
      %v2461 = vmul.f32 %v2457, -0.01227923
      %v2462 = vadd.f32 %v2434, %v2458
      %v2463 = vadd.f32 %v2435, %v2459
      %v2464 = vadd.f32 %v2436, %v2460
      %v2465 = vadd.f32 %v2437, %v2461
      %v2466 = vmul.f32 %v2454, -0.08098842
      %v2467 = vmul.f32 %v2455, -0.08098842
      %v2468 = vmul.f32 %v2456, -0.08098842
      %v2469 = vmul.f32 %v2457, -0.08098842
      %v2470 = vadd.f32 %v2442, %v2466
      %v2471 = vadd.f32 %v2443, %v2467
      %v2472 = vadd.f32 %v2444, %v2468
      %v2473 = vadd.f32 %v2445, %v2469
      %2474 = vrot.lane.b32.xlu0 %v2146, 1
      %v2475 = vpop.permute.xlu0 %2474
      %2476 = vrot.lane.b32.xlu0 %v2147, 1
      %v2477 = vpop.permute.xlu0 %2476
      %2478 = vrot.lane.b32.xlu0 %v2148, 1
      %v2479 = vpop.permute.xlu0 %2478
      %2480 = vrot.lane.b32.xlu0 %v2149, 1
      %v2481 = vpop.permute.xlu0 %2480
      %v2482 = vsel %vm1382, 0.0, %v2475
      %v2483 = vsel %vm1382, 0.0, %v2477
      %v2484 = vsel %vm1382, 0.0, %v2479
      %v2485 = vsel %vm1382, 0.0, %v2481
      %v2486 = vmul.f32 %v2482, 0.041124802
      %v2487 = vmul.f32 %v2483, 0.041124802
      %v2488 = vmul.f32 %v2484, 0.041124802
      %v2489 = vmul.f32 %v2485, 0.041124802
      %v2490 = vadd.f32 %v2462, %v2486
      %v2491 = vadd.f32 %v2463, %v2487
      %v2492 = vadd.f32 %v2464, %v2488
      %v2493 = vadd.f32 %v2465, %v2489
      %v2494 = vmul.f32 %v2482, 0.07891052
      %v2495 = vmul.f32 %v2483, 0.07891052
      %v2496 = vmul.f32 %v2484, 0.07891052
      %v2497 = vmul.f32 %v2485, 0.07891052
      %v2498 = vadd.f32 %v2470, %v2494
      %v2499 = vadd.f32 %v2471, %v2495
      %v2500 = vadd.f32 %v2472, %v2496
      %v2501 = vadd.f32 %v2473, %v2497
      %v2502 = vmul.f32 %v2146, 0.033575334
      %v2503 = vmul.f32 %v2147, 0.033575334
      %v2504 = vmul.f32 %v2148, 0.033575334
      %v2505 = vmul.f32 %v2149, 0.033575334
      %v2506 = vadd.f32 %v2490, %v2502
      %v2507 = vadd.f32 %v2491, %v2503
      %v2508 = vadd.f32 %v2492, %v2504
      %v2509 = vadd.f32 %v2493, %v2505
      %v2510 = vmul.f32 %v2146, -0.07430086
      %v2511 = vmul.f32 %v2147, -0.07430086
      %v2512 = vmul.f32 %v2148, -0.07430086
      %v2513 = vmul.f32 %v2149, -0.07430086
      %v2514 = vadd.f32 %v2498, %v2510
      %v2515 = vadd.f32 %v2499, %v2511
      %v2516 = vadd.f32 %v2500, %v2512
      %v2517 = vadd.f32 %v2501, %v2513
      %2518 = vrot.lane.b32.xlu0 %v2146, 127
      %v2519 = vpop.permute.xlu0 %2518
      %2520 = vrot.lane.b32.xlu0 %v2147, 127
      %v2521 = vpop.permute.xlu0 %2520
      %2522 = vrot.lane.b32.xlu0 %v2148, 127
      %v2523 = vpop.permute.xlu0 %2522
      %2524 = vrot.lane.b32.xlu0 %v2149, 127
      %v2525 = vpop.permute.xlu0 %2524
      %v2526 = vsel %vm1383, 0.0, %v2519
      %v2527 = vsel %vm1383, 0.0, %v2521
      %v2528 = vsel %vm1383, 0.0, %v2523
      %v2529 = vsel %vm1383, 0.0, %v2525
      %v2530 = vmul.f32 %v2526, 0.053882003
      %v2531 = vmul.f32 %v2527, 0.053882003
      %v2532 = vmul.f32 %v2528, 0.053882003
      %v2533 = vmul.f32 %v2529, 0.053882003
      %v2534 = vadd.f32 %v2506, %v2530
      %v2535 = vadd.f32 %v2507, %v2531
      %v2536 = vadd.f32 %v2508, %v2532
      %v2537 = vadd.f32 %v2509, %v2533
      %v2538 = vmul.f32 %v2526, -0.073137864
      %v2539 = vmul.f32 %v2527, -0.073137864
      %v2540 = vmul.f32 %v2528, -0.073137864
      %v2541 = vmul.f32 %v2529, -0.073137864
      %v2542 = vadd.f32 %v2514, %v2538
      %v2543 = vadd.f32 %v2515, %v2539
      %v2544 = vadd.f32 %v2516, %v2540
      %v2545 = vadd.f32 %v2517, %v2541
      %v2546 = vrot.slane %v2146, 1
      %v2547 = vrot.slane %v2147, 1
      %v2548 = vrot.slane %v2148, 1
      %v2549 = vrot.slane %v2149, 1
      %v2550 = vsel %vm1545, %v2548, %v2549
      %v2551 = vsel %vm1545, %v2547, %v2548
      %v2552 = vsel %vm1545, %v2546, %v2547
      %v2553 = vsel %vm1545, %v2549, %v2546
      %v2554 = vsel %vm1378, 0.0, %v2552
      %v2555 = vsel %vm1379, 0.0, %v2551
      %v2556 = vsel %vm1380, 0.0, %v2550
      %v2557 = vsel %vm1381, 0.0, %v2553
      %2558 = vrot.lane.b32.xlu0 %v2554, 1
      %v2559 = vpop.permute.xlu0 %2558
      %2560 = vrot.lane.b32.xlu0 %v2555, 1
      %v2561 = vpop.permute.xlu0 %2560
      %2562 = vrot.lane.b32.xlu0 %v2556, 1
      %v2563 = vpop.permute.xlu0 %2562
      %2564 = vrot.lane.b32.xlu0 %v2557, 1
      %v2565 = vpop.permute.xlu0 %2564
      %v2566 = vsel %vm1382, 0.0, %v2559
      %v2567 = vsel %vm1382, 0.0, %v2561
      %v2568 = vsel %vm1382, 0.0, %v2563
      %v2569 = vsel %vm1382, 0.0, %v2565
      %v2570 = vmul.f32 %v2566, 0.057999726
      %v2571 = vmul.f32 %v2567, 0.057999726
      %v2572 = vmul.f32 %v2568, 0.057999726
      %v2573 = vmul.f32 %v2569, 0.057999726
      %v2574 = vadd.f32 %v2534, %v2570
      %v2575 = vadd.f32 %v2535, %v2571
      %v2576 = vadd.f32 %v2536, %v2572
      %v2577 = vadd.f32 %v2537, %v2573
      %v2578 = vmul.f32 %v2566, 0.01308349
      %v2579 = vmul.f32 %v2567, 0.01308349
      %v2580 = vmul.f32 %v2568, 0.01308349
      %v2581 = vmul.f32 %v2569, 0.01308349
      %v2582 = vadd.f32 %v2542, %v2578
      %v2583 = vadd.f32 %v2543, %v2579
      %v2584 = vadd.f32 %v2544, %v2580
      %v2585 = vadd.f32 %v2545, %v2581
      %v2586 = vmul.f32 %v2554, -0.11886143
      %v2587 = vmul.f32 %v2555, -0.11886143
      %v2588 = vmul.f32 %v2556, -0.11886143
      %v2589 = vmul.f32 %v2557, -0.11886143
      %v2590 = vadd.f32 %v2574, %v2586
      %v2591 = vadd.f32 %v2575, %v2587
      %v2592 = vadd.f32 %v2576, %v2588
      %v2593 = vadd.f32 %v2577, %v2589
      %v2594 = vmul.f32 %v2554, 0.0016917303
      %v2595 = vmul.f32 %v2555, 0.0016917303
      %v2596 = vmul.f32 %v2556, 0.0016917303
      %v2597 = vmul.f32 %v2557, 0.0016917303
      %v2598 = vadd.f32 %v2582, %v2594
      %v2599 = vadd.f32 %v2583, %v2595
      %v2600 = vadd.f32 %v2584, %v2596
      %v2601 = vadd.f32 %v2585, %v2597
      %2602 = vrot.lane.b32.xlu0 %v2554, 127
      %v2603 = vpop.permute.xlu0 %2602
      %2604 = vrot.lane.b32.xlu0 %v2555, 127
      %v2605 = vpop.permute.xlu0 %2604
      %2606 = vrot.lane.b32.xlu0 %v2556, 127
      %v2607 = vpop.permute.xlu0 %2606
      %2608 = vrot.lane.b32.xlu0 %v2557, 127
      %v2609 = vpop.permute.xlu0 %2608
      %v2610 = vsel %vm1383, 0.0, %v2603
      %v2611 = vsel %vm1383, 0.0, %v2605
      %v2612 = vsel %vm1383, 0.0, %v2607
      %v2613 = vsel %vm1383, 0.0, %v2609
      %v2614 = vmul.f32 %v2610, 0.2726561
      %v2615 = vmul.f32 %v2611, 0.2726561
      %v2616 = vmul.f32 %v2612, 0.2726561
      %v2617 = vmul.f32 %v2613, 0.2726561
      %v2618 = vadd.f32 %v2590, %v2614
      %v2619 = vadd.f32 %v2591, %v2615
      %v2620 = vadd.f32 %v2592, %v2616
      %v2621 = vadd.f32 %v2593, %v2617
      %v2622 = vmul.f32 %v2610, -0.052076157
      %v2623 = vmul.f32 %v2611, -0.052076157
      %v2624 = vmul.f32 %v2612, -0.052076157
      %v2625 = vmul.f32 %v2613, -0.052076157
      %v2626 = vadd.f32 %v2598, %v2622
      %v2627 = vadd.f32 %v2599, %v2623
      %v2628 = vadd.f32 %v2600, %v2624
      %v2629 = vadd.f32 %v2601, %v2625
      %v2630 = vmul.f32 %v2618, %v767
      %v2631 = vmul.f32 %v2619, %v768
      %v2632 = vmul.f32 %v2620, %v769
      %v2633 = vmul.f32 %v2621, %v770
      %v2634 = vmul.f32 %v2626, %v772
      %v2635 = vmul.f32 %v2627, %v773
      %v2636 = vmul.f32 %v2628, %v774
      %v2637 = vmul.f32 %v2629, %v775
      %v2638 = vsub.f32 %v2630, %v2634
      %v2639 = vsub.f32 %v2631, %v2635
      %v2640 = vsub.f32 %v2632, %v2636
      %v2641 = vsub.f32 %v2633, %v2637
      %v2642 = vmul.f32 %v2618, %v772
      %v2643 = vmul.f32 %v2619, %v773
      %v2644 = vmul.f32 %v2620, %v774
      %v2645 = vmul.f32 %v2621, %v775
      %v2646 = vmul.f32 %v2626, %v767
      %v2647 = vmul.f32 %v2627, %v768
      %v2648 = vmul.f32 %v2628, %v769
      %v2649 = vmul.f32 %v2629, %v770
      %v2650 = vadd.f32 %v2642, %v2646
      %v2651 = vadd.f32 %v2643, %v2647
      %v2652 = vadd.f32 %v2644, %v2648
      %v2653 = vadd.f32 %v2645, %v2649
      %v2654 = vpack.c.bf16 %v2639, %v2638
      %v2655 = vpack.c.bf16 %v2641, %v2640
      %2656 = vmatprep.subr.bf16.mxu0 %v1080
      %2657 = vmatpush1.bf16.msra.mxu0 %v1079
      %2658 = vmatprep.subr.bf16.mxu0 %v1078
      %2659 = vmatpush1.bf16.msra.mxu0 %v1077
      %2660 = vmatprep.subr.bf16.mxu0 %v1076
      %2661 = vmatpush1.bf16.msra.mxu0 %v1075
      %2662 = vmatprep.subr.bf16.mxu0 %v1074
      %2663 = vmatpush1.bf16.msra.mxu0 %v1073
      %2664 = vmatprep.subr.bf16.mxu0 %v1072
      %2665 = vmatpush1.bf16.msra.mxu0 %v1071
      %2666 = vmatprep.subr.bf16.mxu0 %v1070
      %2667 = vmatpush1.bf16.msra.mxu0 %v1069
      %2668 = vmatprep.subr.bf16.mxu0 %v1068
      %2669 = vmatpush1.bf16.msra.mxu0 %v1067
      %2670 = vmatprep.subr.bf16.mxu0 %v1066
      %2671 = vmatpush1.bf16.msra.mxu0 %v1065
      %2672 = vmatprep.subr.bf16.mxu0 0
      %2673 = vmatpush2.bf16.msra.mxu0 0
      %2674 = vmatprep.subr.bf16.mxu0 0
      %2675 = vmatpush2.bf16.msra.mxu0 0
      %2676 = vmatprep.subr.bf16.mxu0 0
      %2677 = vmatpush2.bf16.msra.mxu0 0
      %2678 = vmatprep.subr.bf16.mxu0 0
      %2679 = vmatpush2.bf16.msra.mxu0 0
      %2680 = vmatprep.subr.bf16.mxu0 0
      %2681 = vmatpush2.bf16.msra.mxu0 0
      %2682 = vmatprep.subr.bf16.mxu0 0
      %2683 = vmatpush2.bf16.msra.mxu0 0
      %2684 = vmatprep.subr.bf16.mxu0 0
      %2685 = vmatpush2.bf16.msra.mxu0 0
      %2686 = vmatprep.subr.bf16.mxu0 0
      %2687 = vmatpush2.bf16.msra.mxu0 0
      %2688 = vmatprep.mubr.bf16.mxu0 0
      %2689 = vmatmul.mubr.bf16.gmra.mxu0 %v2654
      %v2690 = vpop.f32.mrf.mxu0
      %v2691 = vadd.f32 0.0, %v2690
      %v2692 = vpop.f32.mrf.mxu0
      %v2693 = vadd.f32 0.0, %v2692
      %v2694 = vpop.f32.mrf.mxu0
      %v2695 = vadd.f32 0.0, %v2694
      %v2696 = vpop.f32.mrf.mxu0
      %v2697 = vadd.f32 0.0, %v2696
      %2698 = vmatprep.mubr.bf16.mxu0 0
      %2699 = vmatmul.mubr.bf16.gmra.mxu0 %v2655
      %v2700 = vpop.f32.mrf.mxu0
      %v2701 = vadd.f32 0.0, %v2700
      %v2702 = vpop.f32.mrf.mxu0
      %v2703 = vadd.f32 0.0, %v2702
      %v2704 = vpop.f32.mrf.mxu0
      %v2705 = vadd.f32 0.0, %v2704
      %v2706 = vpop.f32.mrf.mxu0
      %v2707 = vadd.f32 0.0, %v2706
      %2708 = vdwg.mxu0
      %v2709 = vpack.c.bf16 %v2651, %v2650
      %v2710 = vpack.c.bf16 %v2653, %v2652
      %2711 = vmatprep.subr.bf16.mxu0 %v1080
      %2712 = vmatpush1.bf16.msra.mxu0 %v1079
      %2713 = vmatprep.subr.bf16.mxu0 %v1078
      %2714 = vmatpush1.bf16.msra.mxu0 %v1077
      %2715 = vmatprep.subr.bf16.mxu0 %v1076
      %2716 = vmatpush1.bf16.msra.mxu0 %v1075
      %2717 = vmatprep.subr.bf16.mxu0 %v1074
      %2718 = vmatpush1.bf16.msra.mxu0 %v1073
      %2719 = vmatprep.subr.bf16.mxu0 %v1072
      %2720 = vmatpush1.bf16.msra.mxu0 %v1071
      %2721 = vmatprep.subr.bf16.mxu0 %v1070
      %2722 = vmatpush1.bf16.msra.mxu0 %v1069
      %2723 = vmatprep.subr.bf16.mxu0 %v1068
      %2724 = vmatpush1.bf16.msra.mxu0 %v1067
      %2725 = vmatprep.subr.bf16.mxu0 %v1066
      %2726 = vmatpush1.bf16.msra.mxu0 %v1065
      %2727 = vmatprep.subr.bf16.mxu0 0
      %2728 = vmatpush2.bf16.msra.mxu0 0
      %2729 = vmatprep.subr.bf16.mxu0 0
      %2730 = vmatpush2.bf16.msra.mxu0 0
      %2731 = vmatprep.subr.bf16.mxu0 0
      %2732 = vmatpush2.bf16.msra.mxu0 0
      %2733 = vmatprep.subr.bf16.mxu0 0
      %2734 = vmatpush2.bf16.msra.mxu0 0
      %2735 = vmatprep.subr.bf16.mxu0 0
      %2736 = vmatpush2.bf16.msra.mxu0 0
      %2737 = vmatprep.subr.bf16.mxu0 0
      %2738 = vmatpush2.bf16.msra.mxu0 0
      %2739 = vmatprep.subr.bf16.mxu0 0
      %2740 = vmatpush2.bf16.msra.mxu0 0
      %2741 = vmatprep.subr.bf16.mxu0 0
      %2742 = vmatpush2.bf16.msra.mxu0 0
      %2743 = vmatprep.mubr.bf16.mxu0 0
      %2744 = vmatmul.mubr.bf16.gmra.mxu0 %v2709
      %v2745 = vpop.f32.mrf.mxu0
      %v2746 = vadd.f32 0.0, %v2745
      %v2747 = vpop.f32.mrf.mxu0
      %v2748 = vadd.f32 0.0, %v2747
      %v2749 = vpop.f32.mrf.mxu0
      %v2750 = vadd.f32 0.0, %v2749
      %v2751 = vpop.f32.mrf.mxu0
      %v2752 = vadd.f32 0.0, %v2751
      %2753 = vmatprep.mubr.bf16.mxu0 0
      %2754 = vmatmul.mubr.bf16.gmra.mxu0 %v2710
      %v2755 = vpop.f32.mrf.mxu0
      %v2756 = vadd.f32 0.0, %v2755
      %v2757 = vpop.f32.mrf.mxu0
      %v2758 = vadd.f32 0.0, %v2757
      %v2759 = vpop.f32.mrf.mxu0
      %v2760 = vadd.f32 0.0, %v2759
      %v2761 = vpop.f32.mrf.mxu0
      %v2762 = vadd.f32 0.0, %v2761
      %2763 = vdwg.mxu0
      %v2764 = vsub.f32 %v2691, %v2748
      %v2765 = vsub.f32 %v2695, %v2752
      %v2766 = vsub.f32 %v2701, %v2758
      %v2767 = vsub.f32 %v2705, %v2762
      %v2768 = vadd.f32 %v2693, %v2746
      %v2769 = vadd.f32 %v2697, %v2750
      %v2770 = vadd.f32 %v2703, %v2756
      %v2771 = vadd.f32 %v2707, %v2760
      %v2772 = vmul.f32 %v2764, %v767
      %v2773 = vmul.f32 %v2765, %v768
      %v2774 = vmul.f32 %v2766, %v769
      %v2775 = vmul.f32 %v2767, %v770
      %v2776 = vmul.f32 %v2768, %v772
      %v2777 = vmul.f32 %v2769, %v773
      %v2778 = vmul.f32 %v2770, %v774
      %v2779 = vmul.f32 %v2771, %v775
      %v2780 = vadd.f32 %v2772, %v2776
      %v2781 = vadd.f32 %v2773, %v2777
      %v2782 = vadd.f32 %v2774, %v2778
      %v2783 = vadd.f32 %v2775, %v2779
      %v2784 = vmul.f32 %v2768, %v767
      %v2785 = vmul.f32 %v2769, %v768
      %v2786 = vmul.f32 %v2770, %v769
      %v2787 = vmul.f32 %v2771, %v770
      %v2788 = vmul.f32 %v2764, %v772
      %v2789 = vmul.f32 %v2765, %v773
      %v2790 = vmul.f32 %v2766, %v774
      %v2791 = vmul.f32 %v2767, %v775
      %v2792 = vsub.f32 %v2784, %v2788
      %v2793 = vsub.f32 %v2785, %v2789
      %v2794 = vsub.f32 %v2786, %v2790
      %v2795 = vsub.f32 %v2787, %v2791
      %v2796 = vpack.c.bf16 %v2781, %v2780
      %v2797 = vpack.c.bf16 %v2783, %v2782
      %2798 = vmatprep.subr.bf16.mxu0 0
      %2799 = vmatpush1.bf16.msra.mxu0 %v857
      %2800 = vmatprep.subr.bf16.mxu0 0
      %2801 = vmatpush1.bf16.msra.mxu0 %v856
      %2802 = vmatprep.subr.bf16.mxu0 0
      %2803 = vmatpush1.bf16.msra.mxu0 %v855
      %2804 = vmatprep.subr.bf16.mxu0 0
      %2805 = vmatpush1.bf16.msra.mxu0 %v854
      %2806 = vmatprep.subr.bf16.mxu0 0
      %2807 = vmatpush1.bf16.msra.mxu0 %v853
      %2808 = vmatprep.subr.bf16.mxu0 0
      %2809 = vmatpush1.bf16.msra.mxu0 %v852
      %2810 = vmatprep.subr.bf16.mxu0 0
      %2811 = vmatpush1.bf16.msra.mxu0 %v851
      %2812 = vmatprep.subr.bf16.mxu0 0
      %2813 = vmatpush1.bf16.msra.mxu0 %v850
      %2814 = vmatprep.subr.bf16.mxu0 0
      %2815 = vmatpush2.bf16.msra.mxu0 0
      %2816 = vmatprep.subr.bf16.mxu0 0
      %2817 = vmatpush2.bf16.msra.mxu0 0
      %2818 = vmatprep.subr.bf16.mxu0 0
      %2819 = vmatpush2.bf16.msra.mxu0 0
      %2820 = vmatprep.subr.bf16.mxu0 0
      %2821 = vmatpush2.bf16.msra.mxu0 0
      %2822 = vmatprep.subr.bf16.mxu0 0
      %2823 = vmatpush2.bf16.msra.mxu0 0
      %2824 = vmatprep.subr.bf16.mxu0 0
      %2825 = vmatpush2.bf16.msra.mxu0 0
      %2826 = vmatprep.subr.bf16.mxu0 0
      %2827 = vmatpush2.bf16.msra.mxu0 0
      %2828 = vmatprep.subr.bf16.mxu0 0
      %2829 = vmatpush2.bf16.msra.mxu0 0
      %2830 = vmatprep.mubr.bf16.mxu0 0
      %2831 = vmatmul.mubr.bf16.gmra.mxu0 %v2796
      %v2832 = vpop.f32.mrf.mxu0
      %v2833 = vadd.f32 0.0, %v2832
      %v2834 = vpop.f32.mrf.mxu0
      %v2835 = vpop.f32.mrf.mxu0
      %v2836 = vadd.f32 0.0, %v2835
      %v2837 = vpop.f32.mrf.mxu0
      %2838 = vmatprep.mubr.bf16.mxu0 0
      %2839 = vmatmul.mubr.bf16.gmra.mxu0 %v2797
      %v2840 = vpop.f32.mrf.mxu0
      %v2841 = vadd.f32 0.0, %v2840
      %v2842 = vpop.f32.mrf.mxu0
      %v2843 = vpop.f32.mrf.mxu0
      %v2844 = vadd.f32 0.0, %v2843
      %v2845 = vpop.f32.mrf.mxu0
      %2846 = vdwg.mxu0
      %v2847 = vpack.c.bf16 %v2793, %v2792
      %v2848 = vpack.c.bf16 %v2795, %v2794
      %2849 = vmatprep.subr.bf16.mxu0 0
      %2850 = vmatpush1.bf16.msra.mxu0 %v857
      %2851 = vmatprep.subr.bf16.mxu0 0
      %2852 = vmatpush1.bf16.msra.mxu0 %v856
      %2853 = vmatprep.subr.bf16.mxu0 0
      %2854 = vmatpush1.bf16.msra.mxu0 %v855
      %2855 = vmatprep.subr.bf16.mxu0 0
      %2856 = vmatpush1.bf16.msra.mxu0 %v854
      %2857 = vmatprep.subr.bf16.mxu0 0
      %2858 = vmatpush1.bf16.msra.mxu0 %v853
      %2859 = vmatprep.subr.bf16.mxu0 0
      %2860 = vmatpush1.bf16.msra.mxu0 %v852
      %2861 = vmatprep.subr.bf16.mxu0 0
      %2862 = vmatpush1.bf16.msra.mxu0 %v851
      %2863 = vmatprep.subr.bf16.mxu0 0
      %2864 = vmatpush1.bf16.msra.mxu0 %v850
      %2865 = vmatprep.subr.bf16.mxu0 0
      %2866 = vmatpush2.bf16.msra.mxu0 0
      %2867 = vmatprep.subr.bf16.mxu0 0
      %2868 = vmatpush2.bf16.msra.mxu0 0
      %2869 = vmatprep.subr.bf16.mxu0 0
      %2870 = vmatpush2.bf16.msra.mxu0 0
      %2871 = vmatprep.subr.bf16.mxu0 0
      %2872 = vmatpush2.bf16.msra.mxu0 0
      %2873 = vmatprep.subr.bf16.mxu0 0
      %2874 = vmatpush2.bf16.msra.mxu0 0
      %2875 = vmatprep.subr.bf16.mxu0 0
      %2876 = vmatpush2.bf16.msra.mxu0 0
      %2877 = vmatprep.subr.bf16.mxu0 0
      %2878 = vmatpush2.bf16.msra.mxu0 0
      %2879 = vmatprep.subr.bf16.mxu0 0
      %2880 = vmatpush2.bf16.msra.mxu0 0
      %2881 = vmatprep.mubr.bf16.mxu0 0
      %2882 = vmatmul.mubr.bf16.gmra.mxu0 %v2847
      %v2883 = vpop.f32.mrf.mxu0
      %v2884 = vadd.f32 0.0, %v2883
      %v2885 = vpop.f32.mrf.mxu0
      %v2886 = vpop.f32.mrf.mxu0
      %v2887 = vadd.f32 0.0, %v2886
      %v2888 = vpop.f32.mrf.mxu0
      %2889 = vmatprep.mubr.bf16.mxu0 0
      %2890 = vmatmul.mubr.bf16.gmra.mxu0 %v2848
      %v2891 = vpop.f32.mrf.mxu0
      %v2892 = vadd.f32 0.0, %v2891
      %v2893 = vpop.f32.mrf.mxu0
      %v2894 = vpop.f32.mrf.mxu0
      %v2895 = vadd.f32 0.0, %v2894
      %v2896 = vpop.f32.mrf.mxu0
      %2897 = vdwg.mxu0
      %v2898 = vadd.f32 %v2618, %v901
      %v2899 = vadd.f32 %v2619, %v904
      %v2900 = vadd.f32 %v2620, %v909
      %v2901 = vadd.f32 %v2621, %v912
      %v2902 = vsub.f32 %v2898, %v2833
      %v2903 = vsub.f32 %v2899, %v2836
      %v2904 = vsub.f32 %v2900, %v2841
      %v2905 = vsub.f32 %v2901, %v2844
      %v2906 = vadd.f32 %v2626, %v952
      %v2907 = vadd.f32 %v2627, %v955
      %v2908 = vadd.f32 %v2628, %v960
      %v2909 = vadd.f32 %v2629, %v963
      %v2910 = vsub.f32 %v2906, %v2884
      %v2911 = vsub.f32 %v2907, %v2887
      %v2912 = vsub.f32 %v2908, %v2892
      %v2913 = vsub.f32 %v2909, %v2895
      %v2914 = vrot.slane %v2902, 7
      %v2915 = vrot.slane %v2903, 7
      %v2916 = vrot.slane %v2904, 7
      %v2917 = vrot.slane %v2905, 7
      %v2918 = vsel %vm1388, %v2916, %v2917
      %v2919 = vsel %vm1388, %v2915, %v2916
      %v2920 = vsel %vm1388, %v2914, %v2915
      %v2921 = vsel %vm1388, %v2917, %v2914
      %v2922 = vsel %vm1374, 0.0, %v2921
      %v2923 = vsel %vm1375, 0.0, %v2920
      %v2924 = vsel %vm1376, 0.0, %v2919
      %v2925 = vsel %vm1377, 0.0, %v2918
      %2926 = vrot.lane.b32.xlu0 %v2922, 1
      %v2927 = vpop.permute.xlu0 %2926
      %2928 = vrot.lane.b32.xlu0 %v2923, 1
      %v2929 = vpop.permute.xlu0 %2928
      %2930 = vrot.lane.b32.xlu0 %v2924, 1
      %v2931 = vpop.permute.xlu0 %2930
      %2932 = vrot.lane.b32.xlu0 %v2925, 1
      %v2933 = vpop.permute.xlu0 %2932
      %v2934 = vsel %vm1382, 0.0, %v2927
      %v2935 = vsel %vm1382, 0.0, %v2929
      %v2936 = vsel %vm1382, 0.0, %v2931
      %v2937 = vsel %vm1382, 0.0, %v2933
      %v2938 = vmul.f32 %v2934, -0.044532187
      %v2939 = vmul.f32 %v2935, -0.044532187
      %v2940 = vmul.f32 %v2936, -0.044532187
      %v2941 = vmul.f32 %v2937, -0.044532187
      %v2942 = vadd.f32 %v2938, -0.01348548
      %v2943 = vadd.f32 %v2939, -0.01348548
      %v2944 = vadd.f32 %v2940, -0.01348548
      %v2945 = vadd.f32 %v2941, -0.01348548
      %v2946 = vmul.f32 %v2934, 0.05427013
      %v2947 = vmul.f32 %v2935, 0.05427013
      %v2948 = vmul.f32 %v2936, 0.05427013
      %v2949 = vmul.f32 %v2937, 0.05427013
      %v2950 = vadd.f32 %v2946, -0.0069367765
      %v2951 = vadd.f32 %v2947, -0.0069367765
      %v2952 = vadd.f32 %v2948, -0.0069367765
      %v2953 = vadd.f32 %v2949, -0.0069367765
      %v2954 = vmul.f32 %v2922, 0.027371911
      %v2955 = vmul.f32 %v2923, 0.027371911
      %v2956 = vmul.f32 %v2924, 0.027371911
      %v2957 = vmul.f32 %v2925, 0.027371911
      %v2958 = vadd.f32 %v2942, %v2954
      %v2959 = vadd.f32 %v2943, %v2955
      %v2960 = vadd.f32 %v2944, %v2956
      %v2961 = vadd.f32 %v2945, %v2957
      %v2962 = vmul.f32 %v2922, 0.022069803
      %v2963 = vmul.f32 %v2923, 0.022069803
      %v2964 = vmul.f32 %v2924, 0.022069803
      %v2965 = vmul.f32 %v2925, 0.022069803
      %v2966 = vadd.f32 %v2950, %v2962
      %v2967 = vadd.f32 %v2951, %v2963
      %v2968 = vadd.f32 %v2952, %v2964
      %v2969 = vadd.f32 %v2953, %v2965
      %2970 = vrot.lane.b32.xlu0 %v2922, 127
      %v2971 = vpop.permute.xlu0 %2970
      %2972 = vrot.lane.b32.xlu0 %v2923, 127
      %v2973 = vpop.permute.xlu0 %2972
      %2974 = vrot.lane.b32.xlu0 %v2924, 127
      %v2975 = vpop.permute.xlu0 %2974
      %2976 = vrot.lane.b32.xlu0 %v2925, 127
      %v2977 = vpop.permute.xlu0 %2976
      %v2978 = vsel %vm1383, 0.0, %v2971
      %v2979 = vsel %vm1383, 0.0, %v2973
      %v2980 = vsel %vm1383, 0.0, %v2975
      %v2981 = vsel %vm1383, 0.0, %v2977
      %v2982 = vmul.f32 %v2978, -0.041391086
      %v2983 = vmul.f32 %v2979, -0.041391086
      %v2984 = vmul.f32 %v2980, -0.041391086
      %v2985 = vmul.f32 %v2981, -0.041391086
      %v2986 = vadd.f32 %v2958, %v2982
      %v2987 = vadd.f32 %v2959, %v2983
      %v2988 = vadd.f32 %v2960, %v2984
      %v2989 = vadd.f32 %v2961, %v2985
      %v2990 = vmul.f32 %v2978, 0.04243837
      %v2991 = vmul.f32 %v2979, 0.04243837
      %v2992 = vmul.f32 %v2980, 0.04243837
      %v2993 = vmul.f32 %v2981, 0.04243837
      %v2994 = vadd.f32 %v2966, %v2990
      %v2995 = vadd.f32 %v2967, %v2991
      %v2996 = vadd.f32 %v2968, %v2992
      %v2997 = vadd.f32 %v2969, %v2993
      %2998 = vrot.lane.b32.xlu0 %v2902, 1
      %v2999 = vpop.permute.xlu0 %2998
      %3000 = vrot.lane.b32.xlu0 %v2903, 1
      %v3001 = vpop.permute.xlu0 %3000
      %3002 = vrot.lane.b32.xlu0 %v2904, 1
      %v3003 = vpop.permute.xlu0 %3002
      %3004 = vrot.lane.b32.xlu0 %v2905, 1
      %v3005 = vpop.permute.xlu0 %3004
      %v3006 = vsel %vm1382, 0.0, %v2999
      %v3007 = vsel %vm1382, 0.0, %v3001
      %v3008 = vsel %vm1382, 0.0, %v3003
      %v3009 = vsel %vm1382, 0.0, %v3005
      %v3010 = vmul.f32 %v3006, 0.10010957
      %v3011 = vmul.f32 %v3007, 0.10010957
      %v3012 = vmul.f32 %v3008, 0.10010957
      %v3013 = vmul.f32 %v3009, 0.10010957
      %v3014 = vadd.f32 %v2986, %v3010
      %v3015 = vadd.f32 %v2987, %v3011
      %v3016 = vadd.f32 %v2988, %v3012
      %v3017 = vadd.f32 %v2989, %v3013
      %v3018 = vmul.f32 %v3006, 0.007967233
      %v3019 = vmul.f32 %v3007, 0.007967233
      %v3020 = vmul.f32 %v3008, 0.007967233
      %v3021 = vmul.f32 %v3009, 0.007967233
      %v3022 = vadd.f32 %v2994, %v3018
      %v3023 = vadd.f32 %v2995, %v3019
      %v3024 = vadd.f32 %v2996, %v3020
      %v3025 = vadd.f32 %v2997, %v3021
      %v3026 = vmul.f32 %v2902, 0.11120557
      %v3027 = vmul.f32 %v2903, 0.11120557
      %v3028 = vmul.f32 %v2904, 0.11120557
      %v3029 = vmul.f32 %v2905, 0.11120557
      %v3030 = vadd.f32 %v3014, %v3026
      %v3031 = vadd.f32 %v3015, %v3027
      %v3032 = vadd.f32 %v3016, %v3028
      %v3033 = vadd.f32 %v3017, %v3029
      %v3034 = vmul.f32 %v2902, -0.10035803
      %v3035 = vmul.f32 %v2903, -0.10035803
      %v3036 = vmul.f32 %v2904, -0.10035803
      %v3037 = vmul.f32 %v2905, -0.10035803
      %v3038 = vadd.f32 %v3022, %v3034
      %v3039 = vadd.f32 %v3023, %v3035
      %v3040 = vadd.f32 %v3024, %v3036
      %v3041 = vadd.f32 %v3025, %v3037
      %3042 = vrot.lane.b32.xlu0 %v2902, 127
      %v3043 = vpop.permute.xlu0 %3042
      %3044 = vrot.lane.b32.xlu0 %v2903, 127
      %v3045 = vpop.permute.xlu0 %3044
      %3046 = vrot.lane.b32.xlu0 %v2904, 127
      %v3047 = vpop.permute.xlu0 %3046
      %3048 = vrot.lane.b32.xlu0 %v2905, 127
      %v3049 = vpop.permute.xlu0 %3048
      %v3050 = vsel %vm1383, 0.0, %v3043
      %v3051 = vsel %vm1383, 0.0, %v3045
      %v3052 = vsel %vm1383, 0.0, %v3047
      %v3053 = vsel %vm1383, 0.0, %v3049
      %v3054 = vmul.f32 %v3050, 0.11335661
      %v3055 = vmul.f32 %v3051, 0.11335661
      %v3056 = vmul.f32 %v3052, 0.11335661
      %v3057 = vmul.f32 %v3053, 0.11335661
      %v3058 = vadd.f32 %v3030, %v3054
      %v3059 = vadd.f32 %v3031, %v3055
      %v3060 = vadd.f32 %v3032, %v3056
      %v3061 = vadd.f32 %v3033, %v3057
      %v3062 = vmul.f32 %v3050, 0.15672876
      %v3063 = vmul.f32 %v3051, 0.15672876
      %v3064 = vmul.f32 %v3052, 0.15672876
      %v3065 = vmul.f32 %v3053, 0.15672876
      %v3066 = vadd.f32 %v3038, %v3062
      %v3067 = vadd.f32 %v3039, %v3063
      %v3068 = vadd.f32 %v3040, %v3064
      %v3069 = vadd.f32 %v3041, %v3065
      %v3070 = vrot.slane %v2902, 1
      %v3071 = vrot.slane %v2903, 1
      %v3072 = vrot.slane %v2904, 1
      %v3073 = vrot.slane %v2905, 1
      %v3074 = vsel %vm1545, %v3072, %v3073
      %v3075 = vsel %vm1545, %v3071, %v3072
      %v3076 = vsel %vm1545, %v3070, %v3071
      %v3077 = vsel %vm1545, %v3073, %v3070
      %v3078 = vsel %vm1378, 0.0, %v3076
      %v3079 = vsel %vm1379, 0.0, %v3075
      %v3080 = vsel %vm1380, 0.0, %v3074
      %v3081 = vsel %vm1381, 0.0, %v3077
      %3082 = vrot.lane.b32.xlu0 %v3078, 1
      %v3083 = vpop.permute.xlu0 %3082
      %3084 = vrot.lane.b32.xlu0 %v3079, 1
      %v3085 = vpop.permute.xlu0 %3084
      %3086 = vrot.lane.b32.xlu0 %v3080, 1
      %v3087 = vpop.permute.xlu0 %3086
      %3088 = vrot.lane.b32.xlu0 %v3081, 1
      %v3089 = vpop.permute.xlu0 %3088
      %v3090 = vsel %vm1382, 0.0, %v3083
      %v3091 = vsel %vm1382, 0.0, %v3085
      %v3092 = vsel %vm1382, 0.0, %v3087
      %v3093 = vsel %vm1382, 0.0, %v3089
      %v3094 = vmul.f32 %v3090, 0.032217186
      %v3095 = vmul.f32 %v3091, 0.032217186
      %v3096 = vmul.f32 %v3092, 0.032217186
      %v3097 = vmul.f32 %v3093, 0.032217186
      %v3098 = vadd.f32 %v3058, %v3094
      %v3099 = vadd.f32 %v3059, %v3095
      %v3100 = vadd.f32 %v3060, %v3096
      %v3101 = vadd.f32 %v3061, %v3097
      %v3102 = vmul.f32 %v3090, -0.065670416
      %v3103 = vmul.f32 %v3091, -0.065670416
      %v3104 = vmul.f32 %v3092, -0.065670416
      %v3105 = vmul.f32 %v3093, -0.065670416
      %v3106 = vadd.f32 %v3066, %v3102
      %v3107 = vadd.f32 %v3067, %v3103
      %v3108 = vadd.f32 %v3068, %v3104
      %v3109 = vadd.f32 %v3069, %v3105
      %v3110 = vmul.f32 %v3078, 0.07939508
      %v3111 = vmul.f32 %v3079, 0.07939508
      %v3112 = vmul.f32 %v3080, 0.07939508
      %v3113 = vmul.f32 %v3081, 0.07939508
      %v3114 = vadd.f32 %v3098, %v3110
      %v3115 = vadd.f32 %v3099, %v3111
      %v3116 = vadd.f32 %v3100, %v3112
      %v3117 = vadd.f32 %v3101, %v3113
      %v3118 = vmul.f32 %v3078, 0.062239707
      %v3119 = vmul.f32 %v3079, 0.062239707
      %v3120 = vmul.f32 %v3080, 0.062239707
      %v3121 = vmul.f32 %v3081, 0.062239707
      %v3122 = vadd.f32 %v3106, %v3118
      %v3123 = vadd.f32 %v3107, %v3119
      %v3124 = vadd.f32 %v3108, %v3120
      %v3125 = vadd.f32 %v3109, %v3121
      %3126 = vrot.lane.b32.xlu0 %v3078, 127
      %v3127 = vpop.permute.xlu0 %3126
      %3128 = vrot.lane.b32.xlu0 %v3079, 127
      %v3129 = vpop.permute.xlu0 %3128
      %3130 = vrot.lane.b32.xlu0 %v3080, 127
      %v3131 = vpop.permute.xlu0 %3130
      %3132 = vrot.lane.b32.xlu0 %v3081, 127
      %v3133 = vpop.permute.xlu0 %3132
      %v3134 = vsel %vm1383, 0.0, %v3127
      %v3135 = vsel %vm1383, 0.0, %v3129
      %v3136 = vsel %vm1383, 0.0, %v3131
      %v3137 = vsel %vm1383, 0.0, %v3133
      %v3138 = vmul.f32 %v3134, -0.027108211
      %v3139 = vmul.f32 %v3135, -0.027108211
      %v3140 = vmul.f32 %v3136, -0.027108211
      %v3141 = vmul.f32 %v3137, -0.027108211
      %v3142 = vadd.f32 %v3114, %v3138
      %v3143 = vadd.f32 %v3115, %v3139
      %v3144 = vadd.f32 %v3116, %v3140
      %v3145 = vadd.f32 %v3117, %v3141
      %v3146 = vmul.f32 %v3134, -0.12317292
      %v3147 = vmul.f32 %v3135, -0.12317292
      %v3148 = vmul.f32 %v3136, -0.12317292
      %v3149 = vmul.f32 %v3137, -0.12317292
      %v3150 = vadd.f32 %v3122, %v3146
      %v3151 = vadd.f32 %v3123, %v3147
      %v3152 = vadd.f32 %v3124, %v3148
      %v3153 = vadd.f32 %v3125, %v3149
      %v3154 = vrot.slane %v2910, 7
      %v3155 = vrot.slane %v2911, 7
      %v3156 = vrot.slane %v2912, 7
      %v3157 = vrot.slane %v2913, 7
      %v3158 = vsel %vm1388, %v3156, %v3157
      %v3159 = vsel %vm1388, %v3155, %v3156
      %v3160 = vsel %vm1388, %v3154, %v3155
      %v3161 = vsel %vm1388, %v3157, %v3154
      %v3162 = vsel %vm1374, 0.0, %v3161
      %v3163 = vsel %vm1375, 0.0, %v3160
      %v3164 = vsel %vm1376, 0.0, %v3159
      %v3165 = vsel %vm1377, 0.0, %v3158
      %3166 = vrot.lane.b32.xlu0 %v3162, 1
      %v3167 = vpop.permute.xlu0 %3166
      %3168 = vrot.lane.b32.xlu0 %v3163, 1
      %v3169 = vpop.permute.xlu0 %3168
      %3170 = vrot.lane.b32.xlu0 %v3164, 1
      %v3171 = vpop.permute.xlu0 %3170
      %3172 = vrot.lane.b32.xlu0 %v3165, 1
      %v3173 = vpop.permute.xlu0 %3172
      %v3174 = vsel %vm1382, 0.0, %v3167
      %v3175 = vsel %vm1382, 0.0, %v3169
      %v3176 = vsel %vm1382, 0.0, %v3171
      %v3177 = vsel %vm1382, 0.0, %v3173
      %v3178 = vmul.f32 %v3174, 0.12575577
      %v3179 = vmul.f32 %v3175, 0.12575577
      %v3180 = vmul.f32 %v3176, 0.12575577
      %v3181 = vmul.f32 %v3177, 0.12575577
      %v3182 = vadd.f32 %v3142, %v3178
      %v3183 = vadd.f32 %v3143, %v3179
      %v3184 = vadd.f32 %v3144, %v3180
      %v3185 = vadd.f32 %v3145, %v3181
      %v3186 = vmul.f32 %v3174, 0.049251225
      %v3187 = vmul.f32 %v3175, 0.049251225
      %v3188 = vmul.f32 %v3176, 0.049251225
      %v3189 = vmul.f32 %v3177, 0.049251225
      %v3190 = vadd.f32 %v3150, %v3186
      %v3191 = vadd.f32 %v3151, %v3187
      %v3192 = vadd.f32 %v3152, %v3188
      %v3193 = vadd.f32 %v3153, %v3189
      %v3194 = vmul.f32 %v3162, -0.040910255
      %v3195 = vmul.f32 %v3163, -0.040910255
      %v3196 = vmul.f32 %v3164, -0.040910255
      %v3197 = vmul.f32 %v3165, -0.040910255
      %v3198 = vadd.f32 %v3182, %v3194
      %v3199 = vadd.f32 %v3183, %v3195
      %v3200 = vadd.f32 %v3184, %v3196
      %v3201 = vadd.f32 %v3185, %v3197
      %v3202 = vmul.f32 %v3162, 0.24495701
      %v3203 = vmul.f32 %v3163, 0.24495701
      %v3204 = vmul.f32 %v3164, 0.24495701
      %v3205 = vmul.f32 %v3165, 0.24495701
      %v3206 = vadd.f32 %v3190, %v3202
      %v3207 = vadd.f32 %v3191, %v3203
      %v3208 = vadd.f32 %v3192, %v3204
      %v3209 = vadd.f32 %v3193, %v3205
      %3210 = vrot.lane.b32.xlu0 %v3162, 127
      %v3211 = vpop.permute.xlu0 %3210
      %3212 = vrot.lane.b32.xlu0 %v3163, 127
      %v3213 = vpop.permute.xlu0 %3212
      %3214 = vrot.lane.b32.xlu0 %v3164, 127
      %v3215 = vpop.permute.xlu0 %3214
      %3216 = vrot.lane.b32.xlu0 %v3165, 127
      %v3217 = vpop.permute.xlu0 %3216
      %v3218 = vsel %vm1383, 0.0, %v3211
      %v3219 = vsel %vm1383, 0.0, %v3213
      %v3220 = vsel %vm1383, 0.0, %v3215
      %v3221 = vsel %vm1383, 0.0, %v3217
      %v3222 = vmul.f32 %v3218, -0.072909325
      %v3223 = vmul.f32 %v3219, -0.072909325
      %v3224 = vmul.f32 %v3220, -0.072909325
      %v3225 = vmul.f32 %v3221, -0.072909325
      %v3226 = vadd.f32 %v3198, %v3222
      %v3227 = vadd.f32 %v3199, %v3223
      %v3228 = vadd.f32 %v3200, %v3224
      %v3229 = vadd.f32 %v3201, %v3225
      %v3230 = vmul.f32 %v3218, 0.02949504
      %v3231 = vmul.f32 %v3219, 0.02949504
      %v3232 = vmul.f32 %v3220, 0.02949504
      %v3233 = vmul.f32 %v3221, 0.02949504
      %v3234 = vadd.f32 %v3206, %v3230
      %v3235 = vadd.f32 %v3207, %v3231
      %v3236 = vadd.f32 %v3208, %v3232
      %v3237 = vadd.f32 %v3209, %v3233
      %3238 = vrot.lane.b32.xlu0 %v2910, 1
      %v3239 = vpop.permute.xlu0 %3238
      %3240 = vrot.lane.b32.xlu0 %v2911, 1
      %v3241 = vpop.permute.xlu0 %3240
      %3242 = vrot.lane.b32.xlu0 %v2912, 1
      %v3243 = vpop.permute.xlu0 %3242
      %3244 = vrot.lane.b32.xlu0 %v2913, 1
      %v3245 = vpop.permute.xlu0 %3244
      %v3246 = vsel %vm1382, 0.0, %v3239
      %v3247 = vsel %vm1382, 0.0, %v3241
      %v3248 = vsel %vm1382, 0.0, %v3243
      %v3249 = vsel %vm1382, 0.0, %v3245
      %v3250 = vmul.f32 %v3246, 0.06944562
      %v3251 = vmul.f32 %v3247, 0.06944562
      %v3252 = vmul.f32 %v3248, 0.06944562
      %v3253 = vmul.f32 %v3249, 0.06944562
      %v3254 = vadd.f32 %v3226, %v3250
      %v3255 = vadd.f32 %v3227, %v3251
      %v3256 = vadd.f32 %v3228, %v3252
      %v3257 = vadd.f32 %v3229, %v3253
      %v3258 = vmul.f32 %v3246, -0.08708984
      %v3259 = vmul.f32 %v3247, -0.08708984
      %v3260 = vmul.f32 %v3248, -0.08708984
      %v3261 = vmul.f32 %v3249, -0.08708984
      %v3262 = vadd.f32 %v3234, %v3258
      %v3263 = vadd.f32 %v3235, %v3259
      %v3264 = vadd.f32 %v3236, %v3260
      %v3265 = vadd.f32 %v3237, %v3261
      %v3266 = vmul.f32 %v2910, -0.12740947
      %v3267 = vmul.f32 %v2911, -0.12740947
      %v3268 = vmul.f32 %v2912, -0.12740947
      %v3269 = vmul.f32 %v2913, -0.12740947
      %v3270 = vadd.f32 %v3254, %v3266
      %v3271 = vadd.f32 %v3255, %v3267
      %v3272 = vadd.f32 %v3256, %v3268
      %v3273 = vadd.f32 %v3257, %v3269
      %v3274 = vmul.f32 %v2910, -0.1457076
      %v3275 = vmul.f32 %v2911, -0.1457076
      %v3276 = vmul.f32 %v2912, -0.1457076
      %v3277 = vmul.f32 %v2913, -0.1457076
      %v3278 = vadd.f32 %v3262, %v3274
      %v3279 = vadd.f32 %v3263, %v3275
      %v3280 = vadd.f32 %v3264, %v3276
      %v3281 = vadd.f32 %v3265, %v3277
      %3282 = vrot.lane.b32.xlu0 %v2910, 127
      %v3283 = vpop.permute.xlu0 %3282
      %3284 = vrot.lane.b32.xlu0 %v2911, 127
      %v3285 = vpop.permute.xlu0 %3284
      %3286 = vrot.lane.b32.xlu0 %v2912, 127
      %v3287 = vpop.permute.xlu0 %3286
      %3288 = vrot.lane.b32.xlu0 %v2913, 127
      %v3289 = vpop.permute.xlu0 %3288
      %v3290 = vsel %vm1383, 0.0, %v3283
      %v3291 = vsel %vm1383, 0.0, %v3285
      %v3292 = vsel %vm1383, 0.0, %v3287
      %v3293 = vsel %vm1383, 0.0, %v3289
      %v3294 = vmul.f32 %v3290, 0.081870705
      %v3295 = vmul.f32 %v3291, 0.081870705
      %v3296 = vmul.f32 %v3292, 0.081870705
      %v3297 = vmul.f32 %v3293, 0.081870705
      %v3298 = vadd.f32 %v3270, %v3294
      %v3299 = vadd.f32 %v3271, %v3295
      %v3300 = vadd.f32 %v3272, %v3296
      %v3301 = vadd.f32 %v3273, %v3297
      %v3302 = vmul.f32 %v3290, 0.09776345
      %v3303 = vmul.f32 %v3291, 0.09776345
      %v3304 = vmul.f32 %v3292, 0.09776345
      %v3305 = vmul.f32 %v3293, 0.09776345
      %v3306 = vadd.f32 %v3278, %v3302
      %v3307 = vadd.f32 %v3279, %v3303
      %v3308 = vadd.f32 %v3280, %v3304
      %v3309 = vadd.f32 %v3281, %v3305
      %v3310 = vrot.slane %v2910, 1
      %v3311 = vrot.slane %v2911, 1
      %v3312 = vrot.slane %v2912, 1
      %v3313 = vrot.slane %v2913, 1
      %v3314 = vsel %vm1545, %v3312, %v3313
      %v3315 = vsel %vm1545, %v3311, %v3312
      %v3316 = vsel %vm1545, %v3310, %v3311
      %v3317 = vsel %vm1545, %v3313, %v3310
      %v3318 = vsel %vm1378, 0.0, %v3316
      %v3319 = vsel %vm1379, 0.0, %v3315
      %v3320 = vsel %vm1380, 0.0, %v3314
      %v3321 = vsel %vm1381, 0.0, %v3317
      %3322 = vrot.lane.b32.xlu0 %v3318, 1
      %v3323 = vpop.permute.xlu0 %3322
      %3324 = vrot.lane.b32.xlu0 %v3319, 1
      %v3325 = vpop.permute.xlu0 %3324
      %3326 = vrot.lane.b32.xlu0 %v3320, 1
      %v3327 = vpop.permute.xlu0 %3326
      %3328 = vrot.lane.b32.xlu0 %v3321, 1
      %v3329 = vpop.permute.xlu0 %3328
      %v3330 = vsel %vm1382, 0.0, %v3323
      %v3331 = vsel %vm1382, 0.0, %v3325
      %v3332 = vsel %vm1382, 0.0, %v3327
      %v3333 = vsel %vm1382, 0.0, %v3329
      %v3334 = vmul.f32 %v3330, -0.023686858
      %v3335 = vmul.f32 %v3331, -0.023686858
      %v3336 = vmul.f32 %v3332, -0.023686858
      %v3337 = vmul.f32 %v3333, -0.023686858
      %v3338 = vadd.f32 %v3298, %v3334
      %v3339 = vadd.f32 %v3299, %v3335
      %v3340 = vadd.f32 %v3300, %v3336
      %v3341 = vadd.f32 %v3301, %v3337
      %v3342 = vmul.f32 %v3330, 0.040790256
      %v3343 = vmul.f32 %v3331, 0.040790256
      %v3344 = vmul.f32 %v3332, 0.040790256
      %v3345 = vmul.f32 %v3333, 0.040790256
      %v3346 = vadd.f32 %v3306, %v3342
      %v3347 = vadd.f32 %v3307, %v3343
      %v3348 = vadd.f32 %v3308, %v3344
      %v3349 = vadd.f32 %v3309, %v3345
      %v3350 = vmul.f32 %v3318, -0.009970019
      %v3351 = vmul.f32 %v3319, -0.009970019
      %v3352 = vmul.f32 %v3320, -0.009970019
      %v3353 = vmul.f32 %v3321, -0.009970019
      %v3354 = vadd.f32 %v3338, %v3350
      %v3355 = vadd.f32 %v3339, %v3351
      %v3356 = vadd.f32 %v3340, %v3352
      %v3357 = vadd.f32 %v3341, %v3353
      %v3358 = vmul.f32 %v3318, -0.012281699
      %v3359 = vmul.f32 %v3319, -0.012281699
      %v3360 = vmul.f32 %v3320, -0.012281699
      %v3361 = vmul.f32 %v3321, -0.012281699
      %v3362 = vadd.f32 %v3346, %v3358
      %v3363 = vadd.f32 %v3347, %v3359
      %v3364 = vadd.f32 %v3348, %v3360
      %v3365 = vadd.f32 %v3349, %v3361
      %3366 = vrot.lane.b32.xlu0 %v3318, 127
      %v3367 = vpop.permute.xlu0 %3366
      %3368 = vrot.lane.b32.xlu0 %v3319, 127
      %v3369 = vpop.permute.xlu0 %3368
      %3370 = vrot.lane.b32.xlu0 %v3320, 127
      %v3371 = vpop.permute.xlu0 %3370
      %3372 = vrot.lane.b32.xlu0 %v3321, 127
      %v3373 = vpop.permute.xlu0 %3372
      %v3374 = vsel %vm1383, 0.0, %v3367
      %v3375 = vsel %vm1383, 0.0, %v3369
      %v3376 = vsel %vm1383, 0.0, %v3371
      %v3377 = vsel %vm1383, 0.0, %v3373
      %v3378 = vmul.f32 %v3374, -0.046771467
      %v3379 = vmul.f32 %v3375, -0.046771467
      %v3380 = vmul.f32 %v3376, -0.046771467
      %v3381 = vmul.f32 %v3377, -0.046771467
      %v3382 = vadd.f32 %v3354, %v3378
      %v3383 = vadd.f32 %v3355, %v3379
      %v3384 = vadd.f32 %v3356, %v3380
      %v3385 = vadd.f32 %v3357, %v3381
      %v3386 = vmul.f32 %v3374, -0.17276834
      %v3387 = vmul.f32 %v3375, -0.17276834
      %v3388 = vmul.f32 %v3376, -0.17276834
      %v3389 = vmul.f32 %v3377, -0.17276834
      %v3390 = vadd.f32 %v3362, %v3386
      %v3391 = vadd.f32 %v3363, %v3387
      %v3392 = vadd.f32 %v3364, %v3388
      %v3393 = vadd.f32 %v3365, %v3389
      %3394 = vst [vmem:[%s318] sm:$0xff] %v3382
      %3395 = vst [vmem:[%s318 + $0x8] sm:$0xff] %v3383
      %3396 = vst [vmem:[%s318 + $0x10] sm:$0xff] %v3384
      %3397 = vst [vmem:[%s318 + $0x18] sm:$0xff] %v3385
      %s3398 = scalar_lea.vmem %s318, 32
      %3399 = vst [vmem:[%s3398] sm:$0xff] %v3390
      %3400 = vst [vmem:[%s3398 + $0x8] sm:$0xff] %v3391
      %3401 = vst [vmem:[%s3398 + $0x10] sm:$0xff] %v3392
      %3402 = vst [vmem:[%s3398 + $0x18] sm:$0xff] %v3393
      %p3403 = scmp.lt.s32.totalorder %s18, 1
      %s3404 = scalar_select %p3403, %s18, 1
      %s3405 = smul.addr %s3404, 8
      %s3406 = smul.addr %s3405, 8
      %s3407 = scalar_lea.vmem %s7, %s3406
      // Predicated region
      $region49: #{forward.1} parent=47 // pred_check
        %p3408 = pneg %p198
      $region50: #{forward.1} parent=47 // pred_check_branch
        %3410 = sbr.rel (%p3408) target = $region52
      $region51: #{forward.1} parent=47 // pred_region
        _
      $region52: #{forward.1} parent=47 // pred_fallthru
        _
    $region48: #{forward.1} parent=5 // pred_fallthru
      _
    %p3411 = scmp.le.s32.totalorder 2, %s13
    // Predicated region
    $region53: #{forward.1} parent=5 // pred_check
      %p3412 = pneg %p3411
    $region54: #{forward.1} parent=5 // pred_check_branch
      %3414 = sbr.rel (%p3412) target = $region56
    $region55: #{forward.1} parent=5 // pred_region
      %s3415 = ssub.s32 %s13, 2
      // Predicated region
      $region57: #{forward.1} parent=55 // pred_check
        %p3416 = pneg %p204
      $region58: #{forward.1} parent=55 // pred_check_branch
        %3418 = sbr.rel (%p3416) target = $region60
      $region59: #{forward.1} parent=55 // pred_region
        %p3419 = scmp.lt.s32.totalorder %s19, 1
        %s3420 = scalar_select %p3419, %s19, 1
        %s3421 = smul.addr %s3420, 8
        %s3422 = smul.addr %s3421, 8
        %s3423 = scalar_lea.vmem %s7, %s3422
      $region60: #{forward.1} parent=55 // pred_fallthru
        _
    $region56: #{forward.1} parent=5 // pred_fallthru
      _
  $region6: #{forward.1} parent=0 // loop_footer
    %s17 = sadd.s32 1, %s13
  $region7: #{forward.1} parent=0 // loop_footer_branch
    %12 = sbr.rel target = $region3
  $region8: #{forward.1} parent=0 // loop_exit
    _

</llo_original>
